<compile_context>
chip_gen: v7x
topology: tpu7x:2x2x1
jax: 0.10.0
libtpu: 0.0.40
codegen_flags: <defaults>
</compile_context>

<pallas_src>
import math

import jax
import jax.numpy as jnp
import numpy as np
from jax.experimental import pallas as pl
from jax.experimental.pallas import tpu as pltpu


def make_params(key, channels, ks=3):
    """Deterministic parameters matching the PyTorch module's __init__ shapes."""
    # ECA kernel size: t = int(abs((log2(C) + b) / gamma)), k = t if odd else t + 1
    t = int(abs((math.log(channels, 2) + 1) / 2))
    k_eca = t if t % 2 else t + 1

    keys = jax.random.split(key, 8)

    def fold_gate(wkey, bkey):
        # BasicConv2d: Conv2d(2, 1, ks, padding=(ks-1)//2, bias=True) + BN(1) (eval)
        w = jax.random.normal(wkey, (1, 2, ks, ks), jnp.float32) * 0.3
        b = jax.random.normal(bkey, (1,), jnp.float32) * 0.1
        gamma, beta, rm, rv, eps = 1.0, 0.0, 0.0, 1.0, 1e-5
        scale = gamma / math.sqrt(rv + eps)
        w_f = (w * scale).reshape(-1)                  # (2*ks*ks,)
        b_f = (b - rm) * scale + beta                  # (1,)
        return jnp.concatenate([w_f, b_f]).astype(jnp.float32)   # (2*ks*ks + 1,)

    return dict(
        sig_w=jax.nn.sigmoid(jnp.ones((2,), jnp.float32)),  # sigmoid(nn.Parameter(ones(2)))
        eca_w=jax.random.normal(keys[6], (k_eca,), jnp.float32) * 0.5,  # Conv1d(1,1,k,bias=False)
        w_hw=fold_gate(keys[0], keys[1]),
        w_ch=fold_gate(keys[2], keys[3]),
        w_cw=fold_gate(keys[4], keys[5]),
        ks=ks,
        eca_k=k_eca,
    )


def _shift_zero(a, axis, d):
    """out[..., i, ...] = a[..., i + d, ...] along `axis`; zero-filled outside.

    Built from static slices + concatenate so the shifted window stays in vregs
    (Mosaic lowers these to lane/sublane shifts) — no VMEM pad scratch, no masked
    partial stores.
    """
    if d == 0:
        return a
    n = a.shape[axis]
    if abs(d) >= n:
        return jnp.zeros_like(a)
    pad_shape = list(a.shape)
    pad_shape[axis] = abs(d)
    zeros = jnp.zeros(pad_shape, a.dtype)
    if d > 0:
        body = jax.lax.slice_in_dim(a, d, n, axis=axis)
        return jnp.concatenate([body, zeros], axis=axis)
    body = jax.lax.slice_in_dim(a, 0, n + d, axis=axis)
    return jnp.concatenate([zeros, body], axis=axis)


def _vmem_limit_bytes():
    """~3/4 of physical VMEM, capped at 100 MiB (v5e/v6e ~96 MiB, v7x ~48 MiB)."""
    try:
        cap = int(pltpu.get_tpu_info().vmem_capacity_bytes)
        return max(32 * 1024 * 1024, min(cap * 3 // 4, 100 * 1024 * 1024))
    except Exception:
        return 48 * 1024 * 1024


def quadro_attention_pallas(x, params, io_dtype=None):
    B, C, H, W = x.shape
    HW = H * W
    ks = int(params["ks"])
    pd = (ks - 1) // 2
    k_eca = int(params["eca_k"])
    pe = (k_eca - 1) // 2

    if io_dtype is not None:
        x = x.astype(io_dtype)          # optional bf16 I/O (halves HBM traffic)
    xf_in = x.reshape(B, C, HW)         # free wrapper reshape -> lane-dense last dim

    def kernel(sigw_ref, ecaw_ref, whw_ref, wch_ref, wcw_ref, x_ref, o_ref):
        # (C, HW) lane-dense slab; arithmetic in f32 regardless of I/O dtype.
        xfv = x_ref[0].astype(jnp.float32)
        # TODO(synk): for production C*H*W, do this pooling + the combine as a
        # fori_loop over row-chunks of x_ref so no full-slab value is live.

        # ---- ZPool pooled maps from contiguous lane slices (one vreg pass) -----
        mw_cols, xw_cols = [], []               # -> (C, H)   ch-gate inputs
        mc_rows, xc_rows = [], []               # -> (H, W)   hw-gate inputs
        sum_h, max_h = None, None               # -> (C, W)   cw-gate inputs
        for h in range(H):
            grp = xfv[:, h * W:(h + 1) * W]     # (C, W) contiguous lane slice
            mw_cols.append(jnp.mean(grp, axis=1, keepdims=True))   # (C, 1)
            xw_cols.append(jnp.max(grp, axis=1, keepdims=True))    # (C, 1)
            mc_rows.append(jnp.mean(grp, axis=0, keepdims=True))   # (1, W)
            xc_rows.append(jnp.max(grp, axis=0, keepdims=True))    # (1, W)
            sum_h = grp if sum_h is None else sum_h + grp
            max_h = grp if max_h is None else jnp.maximum(max_h, grp)
        mean_w = jnp.concatenate(mw_cols, axis=1)   # (C, H)  mean over W
        max_w = jnp.concatenate(xw_cols, axis=1)    # (C, H)  max  over W
        mean_c = jnp.concatenate(mc_rows, axis=0)   # (H, W)  mean over C
        max_c = jnp.concatenate(xc_rows, axis=0)    # (H, W)  max  over C
        mean_h = sum_h * (1.0 / H)                  # (C, W)  mean over H
        # max_h is already (C, W)                           max  over H

        # ---- ECA: GAP -> k-tap 1-D conv over channels -> sigmoid ---------------
        gap = jnp.mean(xfv, axis=1, keepdims=True)  # (C, 1) broadcast-ready column
        eca_y = jnp.zeros((C, 1), jnp.float32)
        for j in range(k_eca):
            eca_y = eca_y + ecaw_ref[j] * _shift_zero(gap, 0, j - pe)
        s_eca = jax.nn.sigmoid(eca_y)               # (C, 1)
        # TODO(synk): for large C, run this conv on a (1, C) lane-major vector with
        # pltpu.roll taps and relayout once to the (C, 1) broadcast shape.

        # ---- shared AttentionGate: ZPool -> ks x ks conv (BN folded) -> ReLU -> sigmoid
        # All maps are squeezed 2-D; row (ky) shifts are hoisted out of the kx loop.
        def gate(mean_map, max_map, w_ref):
            mrows = [_shift_zero(mean_map, 0, ky - pd) for ky in range(ks)]
            xrows = [_shift_zero(max_map, 0, ky - pd) for ky in range(ks)]
            acc_m = jnp.zeros(mean_map.shape, jnp.float32)
            acc_x = jnp.zeros(max_map.shape, jnp.float32)
            for ky in range(ks):
                for kx in range(ks):
                    acc_m = acc_m + w_ref[ky * ks + kx] * _shift_zero(mrows[ky], 1, kx - pd)
                    acc_x = acc_x + w_ref[ks * ks + ky * ks + kx] * _shift_zero(xrows[ky], 1, kx - pd)
            acc = acc_m + acc_x + w_ref[2 * ks * ks]   # folded BN bias
            return jax.nn.sigmoid(jnp.maximum(acc, 0.0))

        m_hw = gate(mean_c, max_c, whw_ref)   # (H, W): conv over (H, W)
        m_ch = gate(mean_w, max_w, wch_ref)   # (C, H): conv over (C, H)
        m_cw = gate(mean_h, max_h, wcw_ref)   # (C, W): conv over (C, W)

        # ---- weighted combine, assembled lane-dense ----------------------------
        # x * (w0*s_eca + w1/3*(m_hw + m_ch + m_cw)) == w0*ECA(x) + w1*TA3(x)
        w0 = sigw_ref[0]
        w13 = sigw_ref[1] * (1.0 / 3.0)
        blocks = []
        for h in range(H):
            blk = (w0 * s_eca                                   # (C, 1)
                   + w13 * (m_hw[h:h + 1, :]                    # (1, W)
                            + m_ch[:, h:h + 1]                  # (C, 1)
                            + m_cw))                            # (C, W)
            blocks.append(blk)                                  # (C, W)
        scale = jnp.concatenate(blocks, axis=1)                 # (C, HW) lane-dense
        o_ref[0] = (xfv * scale).astype(o_ref.dtype)            # unmasked lane-dense store

    smem = pl.BlockSpec(memory_space=pltpu.MemorySpace.SMEM)
    out = pl.pallas_call(
        kernel,
        out_shape=jax.ShapeDtypeStruct((B, C, HW), x.dtype),
        grid=(B,),
        in_specs=[smem, smem, smem, smem, smem,
                  pl.BlockSpec((1, C, HW), lambda b: (b, 0, 0))],
        out_specs=pl.BlockSpec((1, C, HW), lambda b: (b, 0, 0)),
        compiler_params=pltpu.CompilerParams(
            dimension_semantics=("parallel",),
            vmem_limit_bytes=_vmem_limit_bytes(),
        ),
    )(params["sig_w"], params["eca_w"], params["w_hw"], params["w_ch"],
      params["w_cw"], xf_in)
    return out.reshape(B, C, H, W)


def reference_forward(x, params):
    """Pure-JAX reference of the PyTorch forward (BN folded, eval mode)."""
    B, C, H, W = x.shape
    ks = int(params["ks"])
    pd = (ks - 1) // 2
    k = int(params["eca_k"])

    # ECA
    gap = jnp.mean(x, axis=(2, 3))                                   # (B, C)
    pe = (k - 1) // 2
    gpad = jnp.pad(gap, ((0, 0), (pe, pe)))
    eca_y = jnp.zeros_like(gap)
    for j in range(k):
        eca_y = eca_y + params["eca_w"][j] * gpad[:, j:j + C]
    eca_out = x * jax.nn.sigmoid(eca_y)[:, :, None, None]

    def gate(xg, wflat):
        zm = jnp.mean(xg, axis=1, keepdims=True)
        zx = jnp.max(xg, axis=1, keepdims=True)
        z = jnp.concatenate([zm, zx], axis=1)                        # (B, 2, d1, d2)
        w = wflat[:2 * ks * ks].reshape(1, 2, ks, ks)
        b = wflat[2 * ks * ks]
        y = jax.lax.conv_general_dilated(
            z, w, (1, 1), [(pd, pd), (pd, pd)],
            dimension_numbers=("NCHW", "OIHW", "NCHW")) + b
        y = jax.nn.sigmoid(jnp.maximum(y, 0.0))
        return xg * y

    x_ch = jnp.transpose(gate(jnp.transpose(x, (0, 3, 1, 2)), params["w_ch"]),
                         (0, 2, 3, 1))
    x_cw = jnp.transpose(gate(jnp.transpose(x, (0, 2, 1, 3)), params["w_cw"]),
                         (0, 2, 1, 3))
    x_hw = gate(x, params["w_hw"])
    ta3 = (x_ch + x_cw + x_hw) / 3.0
    return params["sig_w"][0] * eca_out + params["sig_w"][1] * ta3


if __name__ == "__main__":
    key = jax.random.PRNGKey(0)
    B, C, H, W = 2, 4, 16, 16
    kx, kp = jax.random.split(key)
    x = jax.random.normal(kx, (B, C, H, W), jnp.float32)

    params = make_params(kp, C, ks=3)

    out = jax.block_until_ready(quadro_attention_pallas(x, params))
    ref = reference_forward(x, params)

    assert out.shape == x.shape
    np.testing.assert_allclose(np.asarray(out), np.asarray(ref),
                               rtol=1e-3, atol=1e-5)

    print("KERNEL_OK")
</pallas_src>

<mosaic_0001>
module attributes {stable_mosaic.version = 11 : i64} {
  func.func @kernel(%arg0: i32, %arg1: memref<2xf32, #tpu.memory_space<smem>>, %arg2: memref<1xf32, #tpu.memory_space<smem>>, %arg3: memref<19xf32, #tpu.memory_space<smem>>, %arg4: memref<19xf32, #tpu.memory_space<smem>>, %arg5: memref<19xf32, #tpu.memory_space<smem>>, %arg6: memref<1x4x256xf32, #tpu.memory_space<vmem>>, %arg7: memref<1x4x256xf32, #tpu.memory_space<vmem>>) attributes {dimension_semantics = [#tpu.dimension_semantics<parallel>], iteration_bounds = array<i64: 2>, scalar_prefetch = 0 : i64, scratch_operands = 0 : i64, tpu.core_type = #tpu.core_type<tc>, window_params = [{transform_indices = @transform_0, window_bounds = array<i64: 2>}, {transform_indices = @transform_1, window_bounds = array<i64: 1>}, {transform_indices = @transform_2, window_bounds = array<i64: 19>}, {transform_indices = @transform_3, window_bounds = array<i64: 19>}, {transform_indices = @transform_4, window_bounds = array<i64: 19>}, {transform_indices = @transform_5, window_bounds = array<i64: 1, 4, 256>}, {transform_indices = @transform_6, window_bounds = array<i64: 1, 4, 256>}]} {
    %c0 = arith.constant 0 : index
    %c0_0 = arith.constant 0 : index
    %c0_1 = arith.constant 0 : index
    %0 = vector.load %arg6[%c0, %c0_0, %c0_1] : memref<1x4x256xf32, #tpu.memory_space<vmem>>, vector<1x4x256xf32>
    %1 = vector.shape_cast %0 : vector<1x4x256xf32> to vector<4x256xf32>
    %2 = vector.extract_strided_slice %1 {offsets = [0, 0], sizes = [4, 16], strides = [1, 1]} : vector<4x256xf32> to vector<4x16xf32>
    %cst = arith.constant dense<0.000000e+00> : vector<4xf32>
    %3 = vector.multi_reduction <add>, %2, %cst [1] : vector<4x16xf32> to vector<4xf32>
    %4 = vector.shape_cast %3 : vector<4xf32> to vector<4x1xf32>
    %cst_2 = arith.constant 1.600000e+01 : f32
    %5 = vector.broadcast %cst_2 : f32 to vector<4x1xf32>
    %6 = arith.divf %4, %5 : vector<4x1xf32>
    %cst_3 = arith.constant dense<0xFF800000> : vector<4xf32>
    %7 = vector.multi_reduction <maximumf>, %2, %cst_3 [1] : vector<4x16xf32> to vector<4xf32>
    %8 = vector.shape_cast %7 : vector<4xf32> to vector<4x1xf32>
    %cst_4 = arith.constant dense<0.000000e+00> : vector<16xf32>
    %9 = vector.multi_reduction <add>, %2, %cst_4 [0] : vector<4x16xf32> to vector<16xf32>
    %10 = vector.shape_cast %9 : vector<16xf32> to vector<1x16xf32>
    %cst_5 = arith.constant 4.000000e+00 : f32
    %11 = vector.broadcast %cst_5 : f32 to vector<1x16xf32>
    %12 = arith.divf %10, %11 : vector<1x16xf32>
    %cst_6 = arith.constant dense<0xFF800000> : vector<16xf32>
    %13 = vector.multi_reduction <maximumf>, %2, %cst_6 [0] : vector<4x16xf32> to vector<16xf32>
    %14 = vector.shape_cast %13 : vector<16xf32> to vector<1x16xf32>
    %15 = vector.extract_strided_slice %1 {offsets = [0, 16], sizes = [4, 16], strides = [1, 1]} : vector<4x256xf32> to vector<4x16xf32>
    %cst_7 = arith.constant dense<0.000000e+00> : vector<4xf32>
    %16 = vector.multi_reduction <add>, %15, %cst_7 [1] : vector<4x16xf32> to vector<4xf32>
    %17 = vector.shape_cast %16 : vector<4xf32> to vector<4x1xf32>
    %cst_8 = arith.constant 1.600000e+01 : f32
    %18 = vector.broadcast %cst_8 : f32 to vector<4x1xf32>
    %19 = arith.divf %17, %18 : vector<4x1xf32>
    %cst_9 = arith.constant dense<0xFF800000> : vector<4xf32>
    %20 = vector.multi_reduction <maximumf>, %15, %cst_9 [1] : vector<4x16xf32> to vector<4xf32>
    %21 = vector.shape_cast %20 : vector<4xf32> to vector<4x1xf32>
    %cst_10 = arith.constant dense<0.000000e+00> : vector<16xf32>
    %22 = vector.multi_reduction <add>, %15, %cst_10 [0] : vector<4x16xf32> to vector<16xf32>
    %23 = vector.shape_cast %22 : vector<16xf32> to vector<1x16xf32>
    %cst_11 = arith.constant 4.000000e+00 : f32
    %24 = vector.broadcast %cst_11 : f32 to vector<1x16xf32>
    %25 = arith.divf %23, %24 : vector<1x16xf32>
    %cst_12 = arith.constant dense<0xFF800000> : vector<16xf32>
    %26 = vector.multi_reduction <maximumf>, %15, %cst_12 [0] : vector<4x16xf32> to vector<16xf32>
    %27 = vector.shape_cast %26 : vector<16xf32> to vector<1x16xf32>
    %28 = arith.addf %2, %15 : vector<4x16xf32>
    %29 = arith.maximumf %2, %15 : vector<4x16xf32>
    %30 = vector.extract_strided_slice %1 {offsets = [0, 32], sizes = [4, 16], strides = [1, 1]} : vector<4x256xf32> to vector<4x16xf32>
    %cst_13 = arith.constant dense<0.000000e+00> : vector<4xf32>
    %31 = vector.multi_reduction <add>, %30, %cst_13 [1] : vector<4x16xf32> to vector<4xf32>
    %32 = vector.shape_cast %31 : vector<4xf32> to vector<4x1xf32>
    %cst_14 = arith.constant 1.600000e+01 : f32
    %33 = vector.broadcast %cst_14 : f32 to vector<4x1xf32>
    %34 = arith.divf %32, %33 : vector<4x1xf32>
    %cst_15 = arith.constant dense<0xFF800000> : vector<4xf32>
    %35 = vector.multi_reduction <maximumf>, %30, %cst_15 [1] : vector<4x16xf32> to vector<4xf32>
    %36 = vector.shape_cast %35 : vector<4xf32> to vector<4x1xf32>
    %cst_16 = arith.constant dense<0.000000e+00> : vector<16xf32>
    %37 = vector.multi_reduction <add>, %30, %cst_16 [0] : vector<4x16xf32> to vector<16xf32>
    %38 = vector.shape_cast %37 : vector<16xf32> to vector<1x16xf32>
    %cst_17 = arith.constant 4.000000e+00 : f32
    %39 = vector.broadcast %cst_17 : f32 to vector<1x16xf32>
    %40 = arith.divf %38, %39 : vector<1x16xf32>
    %cst_18 = arith.constant dense<0xFF800000> : vector<16xf32>
    %41 = vector.multi_reduction <maximumf>, %30, %cst_18 [0] : vector<4x16xf32> to vector<16xf32>
    %42 = vector.shape_cast %41 : vector<16xf32> to vector<1x16xf32>
    %43 = arith.addf %28, %30 : vector<4x16xf32>
    %44 = arith.maximumf %29, %30 : vector<4x16xf32>
    %45 = vector.extract_strided_slice %1 {offsets = [0, 48], sizes = [4, 16], strides = [1, 1]} : vector<4x256xf32> to vector<4x16xf32>
    %cst_19 = arith.constant dense<0.000000e+00> : vector<4xf32>
    %46 = vector.multi_reduction <add>, %45, %cst_19 [1] : vector<4x16xf32> to vector<4xf32>
    %47 = vector.shape_cast %46 : vector<4xf32> to vector<4x1xf32>
    %cst_20 = arith.constant 1.600000e+01 : f32
    %48 = vector.broadcast %cst_20 : f32 to vector<4x1xf32>
    %49 = arith.divf %47, %48 : vector<4x1xf32>
    %cst_21 = arith.constant dense<0xFF800000> : vector<4xf32>
    %50 = vector.multi_reduction <maximumf>, %45, %cst_21 [1] : vector<4x16xf32> to vector<4xf32>
    %51 = vector.shape_cast %50 : vector<4xf32> to vector<4x1xf32>
    %cst_22 = arith.constant dense<0.000000e+00> : vector<16xf32>
    %52 = vector.multi_reduction <add>, %45, %cst_22 [0] : vector<4x16xf32> to vector<16xf32>
    %53 = vector.shape_cast %52 : vector<16xf32> to vector<1x16xf32>
    %cst_23 = arith.constant 4.000000e+00 : f32
    %54 = vector.broadcast %cst_23 : f32 to vector<1x16xf32>
    %55 = arith.divf %53, %54 : vector<1x16xf32>
    %cst_24 = arith.constant dense<0xFF800000> : vector<16xf32>
    %56 = vector.multi_reduction <maximumf>, %45, %cst_24 [0] : vector<4x16xf32> to vector<16xf32>
    %57 = vector.shape_cast %56 : vector<16xf32> to vector<1x16xf32>
    %58 = arith.addf %43, %45 : vector<4x16xf32>
    %59 = arith.maximumf %44, %45 : vector<4x16xf32>
    %60 = vector.extract_strided_slice %1 {offsets = [0, 64], sizes = [4, 16], strides = [1, 1]} : vector<4x256xf32> to vector<4x16xf32>
    %cst_25 = arith.constant dense<0.000000e+00> : vector<4xf32>
    %61 = vector.multi_reduction <add>, %60, %cst_25 [1] : vector<4x16xf32> to vector<4xf32>
    %62 = vector.shape_cast %61 : vector<4xf32> to vector<4x1xf32>
    %cst_26 = arith.constant 1.600000e+01 : f32
    %63 = vector.broadcast %cst_26 : f32 to vector<4x1xf32>
    %64 = arith.divf %62, %63 : vector<4x1xf32>
    %cst_27 = arith.constant dense<0xFF800000> : vector<4xf32>
    %65 = vector.multi_reduction <maximumf>, %60, %cst_27 [1] : vector<4x16xf32> to vector<4xf32>
    %66 = vector.shape_cast %65 : vector<4xf32> to vector<4x1xf32>
    %cst_28 = arith.constant dense<0.000000e+00> : vector<16xf32>
    %67 = vector.multi_reduction <add>, %60, %cst_28 [0] : vector<4x16xf32> to vector<16xf32>
    %68 = vector.shape_cast %67 : vector<16xf32> to vector<1x16xf32>
    %cst_29 = arith.constant 4.000000e+00 : f32
    %69 = vector.broadcast %cst_29 : f32 to vector<1x16xf32>
    %70 = arith.divf %68, %69 : vector<1x16xf32>
    %cst_30 = arith.constant dense<0xFF800000> : vector<16xf32>
    %71 = vector.multi_reduction <maximumf>, %60, %cst_30 [0] : vector<4x16xf32> to vector<16xf32>
    %72 = vector.shape_cast %71 : vector<16xf32> to vector<1x16xf32>
    %73 = arith.addf %58, %60 : vector<4x16xf32>
    %74 = arith.maximumf %59, %60 : vector<4x16xf32>
    %75 = vector.extract_strided_slice %1 {offsets = [0, 80], sizes = [4, 16], strides = [1, 1]} : vector<4x256xf32> to vector<4x16xf32>
    %cst_31 = arith.constant dense<0.000000e+00> : vector<4xf32>
    %76 = vector.multi_reduction <add>, %75, %cst_31 [1] : vector<4x16xf32> to vector<4xf32>
    %77 = vector.shape_cast %76 : vector<4xf32> to vector<4x1xf32>
    %cst_32 = arith.constant 1.600000e+01 : f32
    %78 = vector.broadcast %cst_32 : f32 to vector<4x1xf32>
    %79 = arith.divf %77, %78 : vector<4x1xf32>
    %cst_33 = arith.constant dense<0xFF800000> : vector<4xf32>
    %80 = vector.multi_reduction <maximumf>, %75, %cst_33 [1] : vector<4x16xf32> to vector<4xf32>
    %81 = vector.shape_cast %80 : vector<4xf32> to vector<4x1xf32>
    %cst_34 = arith.constant dense<0.000000e+00> : vector<16xf32>
    %82 = vector.multi_reduction <add>, %75, %cst_34 [0] : vector<4x16xf32> to vector<16xf32>
    %83 = vector.shape_cast %82 : vector<16xf32> to vector<1x16xf32>
    %cst_35 = arith.constant 4.000000e+00 : f32
    %84 = vector.broadcast %cst_35 : f32 to vector<1x16xf32>
    %85 = arith.divf %83, %84 : vector<1x16xf32>
    %cst_36 = arith.constant dense<0xFF800000> : vector<16xf32>
    %86 = vector.multi_reduction <maximumf>, %75, %cst_36 [0] : vector<4x16xf32> to vector<16xf32>
    %87 = vector.shape_cast %86 : vector<16xf32> to vector<1x16xf32>
    %88 = arith.addf %73, %75 : vector<4x16xf32>
    %89 = arith.maximumf %74, %75 : vector<4x16xf32>
    %90 = vector.extract_strided_slice %1 {offsets = [0, 96], sizes = [4, 16], strides = [1, 1]} : vector<4x256xf32> to vector<4x16xf32>
    %cst_37 = arith.constant dense<0.000000e+00> : vector<4xf32>
    %91 = vector.multi_reduction <add>, %90, %cst_37 [1] : vector<4x16xf32> to vector<4xf32>
    %92 = vector.shape_cast %91 : vector<4xf32> to vector<4x1xf32>
    %cst_38 = arith.constant 1.600000e+01 : f32
    %93 = vector.broadcast %cst_38 : f32 to vector<4x1xf32>
    %94 = arith.divf %92, %93 : vector<4x1xf32>
    %cst_39 = arith.constant dense<0xFF800000> : vector<4xf32>
    %95 = vector.multi_reduction <maximumf>, %90, %cst_39 [1] : vector<4x16xf32> to vector<4xf32>
    %96 = vector.shape_cast %95 : vector<4xf32> to vector<4x1xf32>
    %cst_40 = arith.constant dense<0.000000e+00> : vector<16xf32>
    %97 = vector.multi_reduction <add>, %90, %cst_40 [0] : vector<4x16xf32> to vector<16xf32>
    %98 = vector.shape_cast %97 : vector<16xf32> to vector<1x16xf32>
    %cst_41 = arith.constant 4.000000e+00 : f32
    %99 = vector.broadcast %cst_41 : f32 to vector<1x16xf32>
    %100 = arith.divf %98, %99 : vector<1x16xf32>
    %cst_42 = arith.constant dense<0xFF800000> : vector<16xf32>
    %101 = vector.multi_reduction <maximumf>, %90, %cst_42 [0] : vector<4x16xf32> to vector<16xf32>
    %102 = vector.shape_cast %101 : vector<16xf32> to vector<1x16xf32>
    %103 = arith.addf %88, %90 : vector<4x16xf32>
    %104 = arith.maximumf %89, %90 : vector<4x16xf32>
    %105 = vector.extract_strided_slice %1 {offsets = [0, 112], sizes = [4, 16], strides = [1, 1]} : vector<4x256xf32> to vector<4x16xf32>
    %cst_43 = arith.constant dense<0.000000e+00> : vector<4xf32>
    %106 = vector.multi_reduction <add>, %105, %cst_43 [1] : vector<4x16xf32> to vector<4xf32>
    %107 = vector.shape_cast %106 : vector<4xf32> to vector<4x1xf32>
    %cst_44 = arith.constant 1.600000e+01 : f32
    %108 = vector.broadcast %cst_44 : f32 to vector<4x1xf32>
    %109 = arith.divf %107, %108 : vector<4x1xf32>
    %cst_45 = arith.constant dense<0xFF800000> : vector<4xf32>
    %110 = vector.multi_reduction <maximumf>, %105, %cst_45 [1] : vector<4x16xf32> to vector<4xf32>
    %111 = vector.shape_cast %110 : vector<4xf32> to vector<4x1xf32>
    %cst_46 = arith.constant dense<0.000000e+00> : vector<16xf32>
    %112 = vector.multi_reduction <add>, %105, %cst_46 [0] : vector<4x16xf32> to vector<16xf32>
    %113 = vector.shape_cast %112 : vector<16xf32> to vector<1x16xf32>
    %cst_47 = arith.constant 4.000000e+00 : f32
    %114 = vector.broadcast %cst_47 : f32 to vector<1x16xf32>
    %115 = arith.divf %113, %114 : vector<1x16xf32>
    %cst_48 = arith.constant dense<0xFF800000> : vector<16xf32>
    %116 = vector.multi_reduction <maximumf>, %105, %cst_48 [0] : vector<4x16xf32> to vector<16xf32>
    %117 = vector.shape_cast %116 : vector<16xf32> to vector<1x16xf32>
    %118 = arith.addf %103, %105 : vector<4x16xf32>
    %119 = arith.maximumf %104, %105 : vector<4x16xf32>
    %120 = vector.extract_strided_slice %1 {offsets = [0, 128], sizes = [4, 16], strides = [1, 1]} : vector<4x256xf32> to vector<4x16xf32>
    %cst_49 = arith.constant dense<0.000000e+00> : vector<4xf32>
    %121 = vector.multi_reduction <add>, %120, %cst_49 [1] : vector<4x16xf32> to vector<4xf32>
    %122 = vector.shape_cast %121 : vector<4xf32> to vector<4x1xf32>
    %cst_50 = arith.constant 1.600000e+01 : f32
    %123 = vector.broadcast %cst_50 : f32 to vector<4x1xf32>
    %124 = arith.divf %122, %123 : vector<4x1xf32>
    %cst_51 = arith.constant dense<0xFF800000> : vector<4xf32>
    %125 = vector.multi_reduction <maximumf>, %120, %cst_51 [1] : vector<4x16xf32> to vector<4xf32>
    %126 = vector.shape_cast %125 : vector<4xf32> to vector<4x1xf32>
    %cst_52 = arith.constant dense<0.000000e+00> : vector<16xf32>
    %127 = vector.multi_reduction <add>, %120, %cst_52 [0] : vector<4x16xf32> to vector<16xf32>
    %128 = vector.shape_cast %127 : vector<16xf32> to vector<1x16xf32>
    %cst_53 = arith.constant 4.000000e+00 : f32
    %129 = vector.broadcast %cst_53 : f32 to vector<1x16xf32>
    %130 = arith.divf %128, %129 : vector<1x16xf32>
    %cst_54 = arith.constant dense<0xFF800000> : vector<16xf32>
    %131 = vector.multi_reduction <maximumf>, %120, %cst_54 [0] : vector<4x16xf32> to vector<16xf32>
    %132 = vector.shape_cast %131 : vector<16xf32> to vector<1x16xf32>
    %133 = arith.addf %118, %120 : vector<4x16xf32>
    %134 = arith.maximumf %119, %120 : vector<4x16xf32>
    %135 = vector.extract_strided_slice %1 {offsets = [0, 144], sizes = [4, 16], strides = [1, 1]} : vector<4x256xf32> to vector<4x16xf32>
    %cst_55 = arith.constant dense<0.000000e+00> : vector<4xf32>
    %136 = vector.multi_reduction <add>, %135, %cst_55 [1] : vector<4x16xf32> to vector<4xf32>
    %137 = vector.shape_cast %136 : vector<4xf32> to vector<4x1xf32>
    %cst_56 = arith.constant 1.600000e+01 : f32
    %138 = vector.broadcast %cst_56 : f32 to vector<4x1xf32>
    %139 = arith.divf %137, %138 : vector<4x1xf32>
    %cst_57 = arith.constant dense<0xFF800000> : vector<4xf32>
    %140 = vector.multi_reduction <maximumf>, %135, %cst_57 [1] : vector<4x16xf32> to vector<4xf32>
    %141 = vector.shape_cast %140 : vector<4xf32> to vector<4x1xf32>
    %cst_58 = arith.constant dense<0.000000e+00> : vector<16xf32>
    %142 = vector.multi_reduction <add>, %135, %cst_58 [0] : vector<4x16xf32> to vector<16xf32>
    %143 = vector.shape_cast %142 : vector<16xf32> to vector<1x16xf32>
    %cst_59 = arith.constant 4.000000e+00 : f32
    %144 = vector.broadcast %cst_59 : f32 to vector<1x16xf32>
    %145 = arith.divf %143, %144 : vector<1x16xf32>
    %cst_60 = arith.constant dense<0xFF800000> : vector<16xf32>
    %146 = vector.multi_reduction <maximumf>, %135, %cst_60 [0] : vector<4x16xf32> to vector<16xf32>
    %147 = vector.shape_cast %146 : vector<16xf32> to vector<1x16xf32>
    %148 = arith.addf %133, %135 : vector<4x16xf32>
    %149 = arith.maximumf %134, %135 : vector<4x16xf32>
    %150 = vector.extract_strided_slice %1 {offsets = [0, 160], sizes = [4, 16], strides = [1, 1]} : vector<4x256xf32> to vector<4x16xf32>
    %cst_61 = arith.constant dense<0.000000e+00> : vector<4xf32>
    %151 = vector.multi_reduction <add>, %150, %cst_61 [1] : vector<4x16xf32> to vector<4xf32>
    %152 = vector.shape_cast %151 : vector<4xf32> to vector<4x1xf32>
    %cst_62 = arith.constant 1.600000e+01 : f32
    %153 = vector.broadcast %cst_62 : f32 to vector<4x1xf32>
    %154 = arith.divf %152, %153 : vector<4x1xf32>
    %cst_63 = arith.constant dense<0xFF800000> : vector<4xf32>
    %155 = vector.multi_reduction <maximumf>, %150, %cst_63 [1] : vector<4x16xf32> to vector<4xf32>
    %156 = vector.shape_cast %155 : vector<4xf32> to vector<4x1xf32>
    %cst_64 = arith.constant dense<0.000000e+00> : vector<16xf32>
    %157 = vector.multi_reduction <add>, %150, %cst_64 [0] : vector<4x16xf32> to vector<16xf32>
    %158 = vector.shape_cast %157 : vector<16xf32> to vector<1x16xf32>
    %cst_65 = arith.constant 4.000000e+00 : f32
    %159 = vector.broadcast %cst_65 : f32 to vector<1x16xf32>
    %160 = arith.divf %158, %159 : vector<1x16xf32>
    %cst_66 = arith.constant dense<0xFF800000> : vector<16xf32>
    %161 = vector.multi_reduction <maximumf>, %150, %cst_66 [0] : vector<4x16xf32> to vector<16xf32>
    %162 = vector.shape_cast %161 : vector<16xf32> to vector<1x16xf32>
    %163 = arith.addf %148, %150 : vector<4x16xf32>
    %164 = arith.maximumf %149, %150 : vector<4x16xf32>
    %165 = vector.extract_strided_slice %1 {offsets = [0, 176], sizes = [4, 16], strides = [1, 1]} : vector<4x256xf32> to vector<4x16xf32>
    %cst_67 = arith.constant dense<0.000000e+00> : vector<4xf32>
    %166 = vector.multi_reduction <add>, %165, %cst_67 [1] : vector<4x16xf32> to vector<4xf32>
    %167 = vector.shape_cast %166 : vector<4xf32> to vector<4x1xf32>
    %cst_68 = arith.constant 1.600000e+01 : f32
    %168 = vector.broadcast %cst_68 : f32 to vector<4x1xf32>
    %169 = arith.divf %167, %168 : vector<4x1xf32>
    %cst_69 = arith.constant dense<0xFF800000> : vector<4xf32>
    %170 = vector.multi_reduction <maximumf>, %165, %cst_69 [1] : vector<4x16xf32> to vector<4xf32>
    %171 = vector.shape_cast %170 : vector<4xf32> to vector<4x1xf32>
    %cst_70 = arith.constant dense<0.000000e+00> : vector<16xf32>
    %172 = vector.multi_reduction <add>, %165, %cst_70 [0] : vector<4x16xf32> to vector<16xf32>
    %173 = vector.shape_cast %172 : vector<16xf32> to vector<1x16xf32>
    %cst_71 = arith.constant 4.000000e+00 : f32
    %174 = vector.broadcast %cst_71 : f32 to vector<1x16xf32>
    %175 = arith.divf %173, %174 : vector<1x16xf32>
    %cst_72 = arith.constant dense<0xFF800000> : vector<16xf32>
    %176 = vector.multi_reduction <maximumf>, %165, %cst_72 [0] : vector<4x16xf32> to vector<16xf32>
    %177 = vector.shape_cast %176 : vector<16xf32> to vector<1x16xf32>
    %178 = arith.addf %163, %165 : vector<4x16xf32>
    %179 = arith.maximumf %164, %165 : vector<4x16xf32>
    %180 = vector.extract_strided_slice %1 {offsets = [0, 192], sizes = [4, 16], strides = [1, 1]} : vector<4x256xf32> to vector<4x16xf32>
    %cst_73 = arith.constant dense<0.000000e+00> : vector<4xf32>
    %181 = vector.multi_reduction <add>, %180, %cst_73 [1] : vector<4x16xf32> to vector<4xf32>
    %182 = vector.shape_cast %181 : vector<4xf32> to vector<4x1xf32>
    %cst_74 = arith.constant 1.600000e+01 : f32
    %183 = vector.broadcast %cst_74 : f32 to vector<4x1xf32>
    %184 = arith.divf %182, %183 : vector<4x1xf32>
    %cst_75 = arith.constant dense<0xFF800000> : vector<4xf32>
    %185 = vector.multi_reduction <maximumf>, %180, %cst_75 [1] : vector<4x16xf32> to vector<4xf32>
    %186 = vector.shape_cast %185 : vector<4xf32> to vector<4x1xf32>
    %cst_76 = arith.constant dense<0.000000e+00> : vector<16xf32>
    %187 = vector.multi_reduction <add>, %180, %cst_76 [0] : vector<4x16xf32> to vector<16xf32>
    %188 = vector.shape_cast %187 : vector<16xf32> to vector<1x16xf32>
    %cst_77 = arith.constant 4.000000e+00 : f32
    %189 = vector.broadcast %cst_77 : f32 to vector<1x16xf32>
    %190 = arith.divf %188, %189 : vector<1x16xf32>
    %cst_78 = arith.constant dense<0xFF800000> : vector<16xf32>
    %191 = vector.multi_reduction <maximumf>, %180, %cst_78 [0] : vector<4x16xf32> to vector<16xf32>
    %192 = vector.shape_cast %191 : vector<16xf32> to vector<1x16xf32>
    %193 = arith.addf %178, %180 : vector<4x16xf32>
    %194 = arith.maximumf %179, %180 : vector<4x16xf32>
    %195 = vector.extract_strided_slice %1 {offsets = [0, 208], sizes = [4, 16], strides = [1, 1]} : vector<4x256xf32> to vector<4x16xf32>
    %cst_79 = arith.constant dense<0.000000e+00> : vector<4xf32>
    %196 = vector.multi_reduction <add>, %195, %cst_79 [1] : vector<4x16xf32> to vector<4xf32>
    %197 = vector.shape_cast %196 : vector<4xf32> to vector<4x1xf32>
    %cst_80 = arith.constant 1.600000e+01 : f32
    %198 = vector.broadcast %cst_80 : f32 to vector<4x1xf32>
    %199 = arith.divf %197, %198 : vector<4x1xf32>
    %cst_81 = arith.constant dense<0xFF800000> : vector<4xf32>
    %200 = vector.multi_reduction <maximumf>, %195, %cst_81 [1] : vector<4x16xf32> to vector<4xf32>
    %201 = vector.shape_cast %200 : vector<4xf32> to vector<4x1xf32>
    %cst_82 = arith.constant dense<0.000000e+00> : vector<16xf32>
    %202 = vector.multi_reduction <add>, %195, %cst_82 [0] : vector<4x16xf32> to vector<16xf32>
    %203 = vector.shape_cast %202 : vector<16xf32> to vector<1x16xf32>
    %cst_83 = arith.constant 4.000000e+00 : f32
    %204 = vector.broadcast %cst_83 : f32 to vector<1x16xf32>
    %205 = arith.divf %203, %204 : vector<1x16xf32>
    %cst_84 = arith.constant dense<0xFF800000> : vector<16xf32>
    %206 = vector.multi_reduction <maximumf>, %195, %cst_84 [0] : vector<4x16xf32> to vector<16xf32>
    %207 = vector.shape_cast %206 : vector<16xf32> to vector<1x16xf32>
    %208 = arith.addf %193, %195 : vector<4x16xf32>
    %209 = arith.maximumf %194, %195 : vector<4x16xf32>
    %210 = vector.extract_strided_slice %1 {offsets = [0, 224], sizes = [4, 16], strides = [1, 1]} : vector<4x256xf32> to vector<4x16xf32>
    %cst_85 = arith.constant dense<0.000000e+00> : vector<4xf32>
    %211 = vector.multi_reduction <add>, %210, %cst_85 [1] : vector<4x16xf32> to vector<4xf32>
    %212 = vector.shape_cast %211 : vector<4xf32> to vector<4x1xf32>
    %cst_86 = arith.constant 1.600000e+01 : f32
    %213 = vector.broadcast %cst_86 : f32 to vector<4x1xf32>
    %214 = arith.divf %212, %213 : vector<4x1xf32>
    %cst_87 = arith.constant dense<0xFF800000> : vector<4xf32>
    %215 = vector.multi_reduction <maximumf>, %210, %cst_87 [1] : vector<4x16xf32> to vector<4xf32>
    %216 = vector.shape_cast %215 : vector<4xf32> to vector<4x1xf32>
    %cst_88 = arith.constant dense<0.000000e+00> : vector<16xf32>
    %217 = vector.multi_reduction <add>, %210, %cst_88 [0] : vector<4x16xf32> to vector<16xf32>
    %218 = vector.shape_cast %217 : vector<16xf32> to vector<1x16xf32>
    %cst_89 = arith.constant 4.000000e+00 : f32
    %219 = vector.broadcast %cst_89 : f32 to vector<1x16xf32>
    %220 = arith.divf %218, %219 : vector<1x16xf32>
    %cst_90 = arith.constant dense<0xFF800000> : vector<16xf32>
    %221 = vector.multi_reduction <maximumf>, %210, %cst_90 [0] : vector<4x16xf32> to vector<16xf32>
    %222 = vector.shape_cast %221 : vector<16xf32> to vector<1x16xf32>
    %223 = arith.addf %208, %210 : vector<4x16xf32>
    %224 = arith.maximumf %209, %210 : vector<4x16xf32>
    %225 = vector.extract_strided_slice %1 {offsets = [0, 240], sizes = [4, 16], strides = [1, 1]} : vector<4x256xf32> to vector<4x16xf32>
    %cst_91 = arith.constant dense<0.000000e+00> : vector<4xf32>
    %226 = vector.multi_reduction <add>, %225, %cst_91 [1] : vector<4x16xf32> to vector<4xf32>
    %227 = vector.shape_cast %226 : vector<4xf32> to vector<4x1xf32>
    %cst_92 = arith.constant 1.600000e+01 : f32
    %228 = vector.broadcast %cst_92 : f32 to vector<4x1xf32>
    %229 = arith.divf %227, %228 : vector<4x1xf32>
    %cst_93 = arith.constant dense<0xFF800000> : vector<4xf32>
    %230 = vector.multi_reduction <maximumf>, %225, %cst_93 [1] : vector<4x16xf32> to vector<4xf32>
    %231 = vector.shape_cast %230 : vector<4xf32> to vector<4x1xf32>
    %cst_94 = arith.constant dense<0.000000e+00> : vector<16xf32>
    %232 = vector.multi_reduction <add>, %225, %cst_94 [0] : vector<4x16xf32> to vector<16xf32>
    %233 = vector.shape_cast %232 : vector<16xf32> to vector<1x16xf32>
    %cst_95 = arith.constant 4.000000e+00 : f32
    %234 = vector.broadcast %cst_95 : f32 to vector<1x16xf32>
    %235 = arith.divf %233, %234 : vector<1x16xf32>
    %cst_96 = arith.constant dense<0xFF800000> : vector<16xf32>
    %236 = vector.multi_reduction <maximumf>, %225, %cst_96 [0] : vector<4x16xf32> to vector<16xf32>
    %237 = vector.shape_cast %236 : vector<16xf32> to vector<1x16xf32>
    %238 = arith.addf %223, %225 : vector<4x16xf32>
    %239 = arith.maximumf %224, %225 : vector<4x16xf32>
    %240 = tpu.concatenate %6, %19, %34, %49, %64, %79, %94, %109, %124, %139, %154, %169, %184, %199, %214, %229 in 1 : vector<4x1xf32>, vector<4x1xf32>, vector<4x1xf32>, vector<4x1xf32>, vector<4x1xf32>, vector<4x1xf32>, vector<4x1xf32>, vector<4x1xf32>, vector<4x1xf32>, vector<4x1xf32>, vector<4x1xf32>, vector<4x1xf32>, vector<4x1xf32>, vector<4x1xf32>, vector<4x1xf32>, vector<4x1xf32> -> vector<4x16xf32>
    %241 = tpu.concatenate %8, %21, %36, %51, %66, %81, %96, %111, %126, %141, %156, %171, %186, %201, %216, %231 in 1 : vector<4x1xf32>, vector<4x1xf32>, vector<4x1xf32>, vector<4x1xf32>, vector<4x1xf32>, vector<4x1xf32>, vector<4x1xf32>, vector<4x1xf32>, vector<4x1xf32>, vector<4x1xf32>, vector<4x1xf32>, vector<4x1xf32>, vector<4x1xf32>, vector<4x1xf32>, vector<4x1xf32>, vector<4x1xf32> -> vector<4x16xf32>
    %242 = tpu.concatenate %12, %25, %40, %55, %70, %85, %100, %115, %130, %145, %160, %175, %190, %205, %220, %235 in 0 : vector<1x16xf32>, vector<1x16xf32>, vector<1x16xf32>, vector<1x16xf32>, vector<1x16xf32>, vector<1x16xf32>, vector<1x16xf32>, vector<1x16xf32>, vector<1x16xf32>, vector<1x16xf32>, vector<1x16xf32>, vector<1x16xf32>, vector<1x16xf32>, vector<1x16xf32>, vector<1x16xf32>, vector<1x16xf32> -> vector<16x16xf32>
    %243 = tpu.concatenate %14, %27, %42, %57, %72, %87, %102, %117, %132, %147, %162, %177, %192, %207, %222, %237 in 0 : vector<1x16xf32>, vector<1x16xf32>, vector<1x16xf32>, vector<1x16xf32>, vector<1x16xf32>, vector<1x16xf32>, vector<1x16xf32>, vector<1x16xf32>, vector<1x16xf32>, vector<1x16xf32>, vector<1x16xf32>, vector<1x16xf32>, vector<1x16xf32>, vector<1x16xf32>, vector<1x16xf32>, vector<1x16xf32> -> vector<16x16xf32>
    %cst_97 = arith.constant 6.250000e-02 : f32
    %244 = vector.broadcast %cst_97 : f32 to vector<4x16xf32>
    %245 = arith.mulf %238, %244 : vector<4x16xf32>
    %cst_98 = arith.constant dense<0.000000e+00> : vector<4xf32>
    %246 = vector.multi_reduction <add>, %1, %cst_98 [1] : vector<4x256xf32> to vector<4xf32>
    %247 = vector.shape_cast %246 : vector<4xf32> to vector<4x1xf32>
    %cst_99 = arith.constant 2.560000e+02 : f32
    %248 = vector.broadcast %cst_99 : f32 to vector<4x1xf32>
    %249 = arith.divf %247, %248 : vector<4x1xf32>
    %cst_100 = arith.constant 0.000000e+00 : f32
    %250 = vector.broadcast %cst_100 : f32 to vector<4x1xf32>
    %c0_101 = arith.constant 0 : index
    %251 = memref.load %arg2[%c0_101] : memref<1xf32, #tpu.memory_space<smem>>
    %252 = vector.broadcast %251 : f32 to vector<4x1xf32>
    %253 = arith.mulf %252, %249 : vector<4x1xf32>
    %254 = arith.addf %250, %253 : vector<4x1xf32>
    %255 = arith.negf %254 : vector<4x1xf32>
    %256 = math.exp %255 : vector<4x1xf32>
    %cst_102 = arith.constant 1.000000e+00 : f32
    %257 = vector.broadcast %cst_102 : f32 to vector<4x1xf32>
    %258 = arith.addf %257, %256 : vector<4x1xf32>
    %259 = arith.divf %257, %258 : vector<4x1xf32>
    %cst_103 = arith.constant 0.000000e+00 : f32
    %260 = vector.broadcast %cst_103 : f32 to vector<1x16xf32>
    %261 = vector.extract_strided_slice %242 {offsets = [0, 0], sizes = [15, 16], strides = [1, 1]} : vector<16x16xf32> to vector<15x16xf32>
    %262 = tpu.concatenate %260, %261 in 0 : vector<1x16xf32>, vector<15x16xf32> -> vector<16x16xf32>
    %cst_104 = arith.constant 0.000000e+00 : f32
    %263 = vector.broadcast %cst_104 : f32 to vector<1x16xf32>
    %264 = vector.extract_strided_slice %242 {offsets = [1, 0], sizes = [15, 16], strides = [1, 1]} : vector<16x16xf32> to vector<15x16xf32>
    %265 = tpu.concatenate %264, %263 in 0 : vector<15x16xf32>, vector<1x16xf32> -> vector<16x16xf32>
    %cst_105 = arith.constant 0.000000e+00 : f32
    %266 = vector.broadcast %cst_105 : f32 to vector<1x16xf32>
    %267 = vector.extract_strided_slice %243 {offsets = [0, 0], sizes = [15, 16], strides = [1, 1]} : vector<16x16xf32> to vector<15x16xf32>
    %268 = tpu.concatenate %266, %267 in 0 : vector<1x16xf32>, vector<15x16xf32> -> vector<16x16xf32>
    %cst_106 = arith.constant 0.000000e+00 : f32
    %269 = vector.broadcast %cst_106 : f32 to vector<1x16xf32>
    %270 = vector.extract_strided_slice %243 {offsets = [1, 0], sizes = [15, 16], strides = [1, 1]} : vector<16x16xf32> to vector<15x16xf32>
    %271 = tpu.concatenate %270, %269 in 0 : vector<15x16xf32>, vector<1x16xf32> -> vector<16x16xf32>
    %cst_107 = arith.constant 0.000000e+00 : f32
    %272 = vector.broadcast %cst_107 : f32 to vector<16x16xf32>
    %cst_108 = arith.constant 0.000000e+00 : f32
    %273 = vector.broadcast %cst_108 : f32 to vector<16x16xf32>
    %c0_109 = arith.constant 0 : index
    %274 = memref.load %arg3[%c0_109] : memref<19xf32, #tpu.memory_space<smem>>
    %cst_110 = arith.constant 0.000000e+00 : f32
    %275 = vector.broadcast %cst_110 : f32 to vector<16x1xf32>
    %276 = vector.extract_strided_slice %262 {offsets = [0, 0], sizes = [16, 15], strides = [1, 1]} : vector<16x16xf32> to vector<16x15xf32>
    %277 = tpu.concatenate %275, %276 in 1 : vector<16x1xf32>, vector<16x15xf32> -> vector<16x16xf32>
    %278 = vector.broadcast %274 : f32 to vector<16x16xf32>
    %279 = arith.mulf %278, %277 : vector<16x16xf32>
    %280 = arith.addf %272, %279 : vector<16x16xf32>
    %c9 = arith.constant 9 : index
    %281 = memref.load %arg3[%c9] : memref<19xf32, #tpu.memory_space<smem>>
    %cst_111 = arith.constant 0.000000e+00 : f32
    %282 = vector.broadcast %cst_111 : f32 to vector<16x1xf32>
    %283 = vector.extract_strided_slice %268 {offsets = [0, 0], sizes = [16, 15], strides = [1, 1]} : vector<16x16xf32> to vector<16x15xf32>
    %284 = tpu.concatenate %282, %283 in 1 : vector<16x1xf32>, vector<16x15xf32> -> vector<16x16xf32>
    %285 = vector.broadcast %281 : f32 to vector<16x16xf32>
    %286 = arith.mulf %285, %284 : vector<16x16xf32>
    %287 = arith.addf %273, %286 : vector<16x16xf32>
    %c1 = arith.constant 1 : index
    %288 = memref.load %arg3[%c1] : memref<19xf32, #tpu.memory_space<smem>>
    %289 = vector.broadcast %288 : f32 to vector<16x16xf32>
    %290 = arith.mulf %289, %262 : vector<16x16xf32>
    %291 = arith.addf %280, %290 : vector<16x16xf32>
    %c10 = arith.constant 10 : index
    %292 = memref.load %arg3[%c10] : memref<19xf32, #tpu.memory_space<smem>>
    %293 = vector.broadcast %292 : f32 to vector<16x16xf32>
    %294 = arith.mulf %293, %268 : vector<16x16xf32>
    %295 = arith.addf %287, %294 : vector<16x16xf32>
    %c2 = arith.constant 2 : index
    %296 = memref.load %arg3[%c2] : memref<19xf32, #tpu.memory_space<smem>>
    %cst_112 = arith.constant 0.000000e+00 : f32
    %297 = vector.broadcast %cst_112 : f32 to vector<16x1xf32>
    %298 = vector.extract_strided_slice %262 {offsets = [0, 1], sizes = [16, 15], strides = [1, 1]} : vector<16x16xf32> to vector<16x15xf32>
    %299 = tpu.concatenate %298, %297 in 1 : vector<16x15xf32>, vector<16x1xf32> -> vector<16x16xf32>
    %300 = vector.broadcast %296 : f32 to vector<16x16xf32>
    %301 = arith.mulf %300, %299 : vector<16x16xf32>
    %302 = arith.addf %291, %301 : vector<16x16xf32>
    %c11 = arith.constant 11 : index
    %303 = memref.load %arg3[%c11] : memref<19xf32, #tpu.memory_space<smem>>
    %cst_113 = arith.constant 0.000000e+00 : f32
    %304 = vector.broadcast %cst_113 : f32 to vector<16x1xf32>
    %305 = vector.extract_strided_slice %268 {offsets = [0, 1], sizes = [16, 15], strides = [1, 1]} : vector<16x16xf32> to vector<16x15xf32>
    %306 = tpu.concatenate %305, %304 in 1 : vector<16x15xf32>, vector<16x1xf32> -> vector<16x16xf32>
    %307 = vector.broadcast %303 : f32 to vector<16x16xf32>
    %308 = arith.mulf %307, %306 : vector<16x16xf32>
    %309 = arith.addf %295, %308 : vector<16x16xf32>
    %c3 = arith.constant 3 : index
    %310 = memref.load %arg3[%c3] : memref<19xf32, #tpu.memory_space<smem>>
    %cst_114 = arith.constant 0.000000e+00 : f32
    %311 = vector.broadcast %cst_114 : f32 to vector<16x1xf32>
    %312 = vector.extract_strided_slice %242 {offsets = [0, 0], sizes = [16, 15], strides = [1, 1]} : vector<16x16xf32> to vector<16x15xf32>
    %313 = tpu.concatenate %311, %312 in 1 : vector<16x1xf32>, vector<16x15xf32> -> vector<16x16xf32>
    %314 = vector.broadcast %310 : f32 to vector<16x16xf32>
    %315 = arith.mulf %314, %313 : vector<16x16xf32>
    %316 = arith.addf %302, %315 : vector<16x16xf32>
    %c12 = arith.constant 12 : index
    %317 = memref.load %arg3[%c12] : memref<19xf32, #tpu.memory_space<smem>>
    %cst_115 = arith.constant 0.000000e+00 : f32
    %318 = vector.broadcast %cst_115 : f32 to vector<16x1xf32>
    %319 = vector.extract_strided_slice %243 {offsets = [0, 0], sizes = [16, 15], strides = [1, 1]} : vector<16x16xf32> to vector<16x15xf32>
    %320 = tpu.concatenate %318, %319 in 1 : vector<16x1xf32>, vector<16x15xf32> -> vector<16x16xf32>
    %321 = vector.broadcast %317 : f32 to vector<16x16xf32>
    %322 = arith.mulf %321, %320 : vector<16x16xf32>
    %323 = arith.addf %309, %322 : vector<16x16xf32>
    %c4 = arith.constant 4 : index
    %324 = memref.load %arg3[%c4] : memref<19xf32, #tpu.memory_space<smem>>
    %325 = vector.broadcast %324 : f32 to vector<16x16xf32>
    %326 = arith.mulf %325, %242 : vector<16x16xf32>
    %327 = arith.addf %316, %326 : vector<16x16xf32>
    %c13 = arith.constant 13 : index
    %328 = memref.load %arg3[%c13] : memref<19xf32, #tpu.memory_space<smem>>
    %329 = vector.broadcast %328 : f32 to vector<16x16xf32>
    %330 = arith.mulf %329, %243 : vector<16x16xf32>
    %331 = arith.addf %323, %330 : vector<16x16xf32>
    %c5 = arith.constant 5 : index
    %332 = memref.load %arg3[%c5] : memref<19xf32, #tpu.memory_space<smem>>
    %cst_116 = arith.constant 0.000000e+00 : f32
    %333 = vector.broadcast %cst_116 : f32 to vector<16x1xf32>
    %334 = vector.extract_strided_slice %242 {offsets = [0, 1], sizes = [16, 15], strides = [1, 1]} : vector<16x16xf32> to vector<16x15xf32>
    %335 = tpu.concatenate %334, %333 in 1 : vector<16x15xf32>, vector<16x1xf32> -> vector<16x16xf32>
    %336 = vector.broadcast %332 : f32 to vector<16x16xf32>
    %337 = arith.mulf %336, %335 : vector<16x16xf32>
    %338 = arith.addf %327, %337 : vector<16x16xf32>
    %c14 = arith.constant 14 : index
    %339 = memref.load %arg3[%c14] : memref<19xf32, #tpu.memory_space<smem>>
    %cst_117 = arith.constant 0.000000e+00 : f32
    %340 = vector.broadcast %cst_117 : f32 to vector<16x1xf32>
    %341 = vector.extract_strided_slice %243 {offsets = [0, 1], sizes = [16, 15], strides = [1, 1]} : vector<16x16xf32> to vector<16x15xf32>
    %342 = tpu.concatenate %341, %340 in 1 : vector<16x15xf32>, vector<16x1xf32> -> vector<16x16xf32>
    %343 = vector.broadcast %339 : f32 to vector<16x16xf32>
    %344 = arith.mulf %343, %342 : vector<16x16xf32>
    %345 = arith.addf %331, %344 : vector<16x16xf32>
    %c6 = arith.constant 6 : index
    %346 = memref.load %arg3[%c6] : memref<19xf32, #tpu.memory_space<smem>>
    %cst_118 = arith.constant 0.000000e+00 : f32
    %347 = vector.broadcast %cst_118 : f32 to vector<16x1xf32>
    %348 = vector.extract_strided_slice %265 {offsets = [0, 0], sizes = [16, 15], strides = [1, 1]} : vector<16x16xf32> to vector<16x15xf32>
    %349 = tpu.concatenate %347, %348 in 1 : vector<16x1xf32>, vector<16x15xf32> -> vector<16x16xf32>
    %350 = vector.broadcast %346 : f32 to vector<16x16xf32>
    %351 = arith.mulf %350, %349 : vector<16x16xf32>
    %352 = arith.addf %338, %351 : vector<16x16xf32>
    %c15 = arith.constant 15 : index
    %353 = memref.load %arg3[%c15] : memref<19xf32, #tpu.memory_space<smem>>
    %cst_119 = arith.constant 0.000000e+00 : f32
    %354 = vector.broadcast %cst_119 : f32 to vector<16x1xf32>
    %355 = vector.extract_strided_slice %271 {offsets = [0, 0], sizes = [16, 15], strides = [1, 1]} : vector<16x16xf32> to vector<16x15xf32>
    %356 = tpu.concatenate %354, %355 in 1 : vector<16x1xf32>, vector<16x15xf32> -> vector<16x16xf32>
    %357 = vector.broadcast %353 : f32 to vector<16x16xf32>
    %358 = arith.mulf %357, %356 : vector<16x16xf32>
    %359 = arith.addf %345, %358 : vector<16x16xf32>
    %c7 = arith.constant 7 : index
    %360 = memref.load %arg3[%c7] : memref<19xf32, #tpu.memory_space<smem>>
    %361 = vector.broadcast %360 : f32 to vector<16x16xf32>
    %362 = arith.mulf %361, %265 : vector<16x16xf32>
    %363 = arith.addf %352, %362 : vector<16x16xf32>
    %c16 = arith.constant 16 : index
    %364 = memref.load %arg3[%c16] : memref<19xf32, #tpu.memory_space<smem>>
    %365 = vector.broadcast %364 : f32 to vector<16x16xf32>
    %366 = arith.mulf %365, %271 : vector<16x16xf32>
    %367 = arith.addf %359, %366 : vector<16x16xf32>
    %c8 = arith.constant 8 : index
    %368 = memref.load %arg3[%c8] : memref<19xf32, #tpu.memory_space<smem>>
    %cst_120 = arith.constant 0.000000e+00 : f32
    %369 = vector.broadcast %cst_120 : f32 to vector<16x1xf32>
    %370 = vector.extract_strided_slice %265 {offsets = [0, 1], sizes = [16, 15], strides = [1, 1]} : vector<16x16xf32> to vector<16x15xf32>
    %371 = tpu.concatenate %370, %369 in 1 : vector<16x15xf32>, vector<16x1xf32> -> vector<16x16xf32>
    %372 = vector.broadcast %368 : f32 to vector<16x16xf32>
    %373 = arith.mulf %372, %371 : vector<16x16xf32>
    %374 = arith.addf %363, %373 : vector<16x16xf32>
    %c17 = arith.constant 17 : index
    %375 = memref.load %arg3[%c17] : memref<19xf32, #tpu.memory_space<smem>>
    %cst_121 = arith.constant 0.000000e+00 : f32
    %376 = vector.broadcast %cst_121 : f32 to vector<16x1xf32>
    %377 = vector.extract_strided_slice %271 {offsets = [0, 1], sizes = [16, 15], strides = [1, 1]} : vector<16x16xf32> to vector<16x15xf32>
    %378 = tpu.concatenate %377, %376 in 1 : vector<16x15xf32>, vector<16x1xf32> -> vector<16x16xf32>
    %379 = vector.broadcast %375 : f32 to vector<16x16xf32>
    %380 = arith.mulf %379, %378 : vector<16x16xf32>
    %381 = arith.addf %367, %380 : vector<16x16xf32>
    %382 = arith.addf %374, %381 : vector<16x16xf32>
    %c18 = arith.constant 18 : index
    %383 = memref.load %arg3[%c18] : memref<19xf32, #tpu.memory_space<smem>>
    %384 = vector.broadcast %383 : f32 to vector<16x16xf32>
    %385 = arith.addf %382, %384 : vector<16x16xf32>
    %cst_122 = arith.constant 0.000000e+00 : f32
    %386 = vector.broadcast %cst_122 : f32 to vector<16x16xf32>
    %387 = arith.maximumf %385, %386 : vector<16x16xf32>
    %388 = arith.negf %387 : vector<16x16xf32>
    %389 = math.exp %388 : vector<16x16xf32>
    %cst_123 = arith.constant 1.000000e+00 : f32
    %390 = vector.broadcast %cst_123 : f32 to vector<16x16xf32>
    %391 = arith.addf %390, %389 : vector<16x16xf32>
    %392 = arith.divf %390, %391 : vector<16x16xf32>
    %cst_124 = arith.constant 0.000000e+00 : f32
    %393 = vector.broadcast %cst_124 : f32 to vector<1x16xf32>
    %394 = vector.extract_strided_slice %240 {offsets = [0, 0], sizes = [3, 16], strides = [1, 1]} : vector<4x16xf32> to vector<3x16xf32>
    %395 = tpu.concatenate %393, %394 in 0 : vector<1x16xf32>, vector<3x16xf32> -> vector<4x16xf32>
    %cst_125 = arith.constant 0.000000e+00 : f32
    %396 = vector.broadcast %cst_125 : f32 to vector<1x16xf32>
    %397 = vector.extract_strided_slice %240 {offsets = [1, 0], sizes = [3, 16], strides = [1, 1]} : vector<4x16xf32> to vector<3x16xf32>
    %398 = tpu.concatenate %397, %396 in 0 : vector<3x16xf32>, vector<1x16xf32> -> vector<4x16xf32>
    %cst_126 = arith.constant 0.000000e+00 : f32
    %399 = vector.broadcast %cst_126 : f32 to vector<1x16xf32>
    %400 = vector.extract_strided_slice %241 {offsets = [0, 0], sizes = [3, 16], strides = [1, 1]} : vector<4x16xf32> to vector<3x16xf32>
    %401 = tpu.concatenate %399, %400 in 0 : vector<1x16xf32>, vector<3x16xf32> -> vector<4x16xf32>
    %cst_127 = arith.constant 0.000000e+00 : f32
    %402 = vector.broadcast %cst_127 : f32 to vector<1x16xf32>
    %403 = vector.extract_strided_slice %241 {offsets = [1, 0], sizes = [3, 16], strides = [1, 1]} : vector<4x16xf32> to vector<3x16xf32>
    %404 = tpu.concatenate %403, %402 in 0 : vector<3x16xf32>, vector<1x16xf32> -> vector<4x16xf32>
    %cst_128 = arith.constant 0.000000e+00 : f32
    %405 = vector.broadcast %cst_128 : f32 to vector<4x16xf32>
    %cst_129 = arith.constant 0.000000e+00 : f32
    %406 = vector.broadcast %cst_129 : f32 to vector<4x16xf32>
    %c0_130 = arith.constant 0 : index
    %407 = memref.load %arg4[%c0_130] : memref<19xf32, #tpu.memory_space<smem>>
    %cst_131 = arith.constant 0.000000e+00 : f32
    %408 = vector.broadcast %cst_131 : f32 to vector<4x1xf32>
    %409 = vector.extract_strided_slice %395 {offsets = [0, 0], sizes = [4, 15], strides = [1, 1]} : vector<4x16xf32> to vector<4x15xf32>
    %410 = tpu.concatenate %408, %409 in 1 : vector<4x1xf32>, vector<4x15xf32> -> vector<4x16xf32>
    %411 = vector.broadcast %407 : f32 to vector<4x16xf32>
    %412 = arith.mulf %411, %410 : vector<4x16xf32>
    %413 = arith.addf %405, %412 : vector<4x16xf32>
    %c9_132 = arith.constant 9 : index
    %414 = memref.load %arg4[%c9_132] : memref<19xf32, #tpu.memory_space<smem>>
    %cst_133 = arith.constant 0.000000e+00 : f32
    %415 = vector.broadcast %cst_133 : f32 to vector<4x1xf32>
    %416 = vector.extract_strided_slice %401 {offsets = [0, 0], sizes = [4, 15], strides = [1, 1]} : vector<4x16xf32> to vector<4x15xf32>
    %417 = tpu.concatenate %415, %416 in 1 : vector<4x1xf32>, vector<4x15xf32> -> vector<4x16xf32>
    %418 = vector.broadcast %414 : f32 to vector<4x16xf32>
    %419 = arith.mulf %418, %417 : vector<4x16xf32>
    %420 = arith.addf %406, %419 : vector<4x16xf32>
    %c1_134 = arith.constant 1 : index
    %421 = memref.load %arg4[%c1_134] : memref<19xf32, #tpu.memory_space<smem>>
    %422 = vector.broadcast %421 : f32 to vector<4x16xf32>
    %423 = arith.mulf %422, %395 : vector<4x16xf32>
    %424 = arith.addf %413, %423 : vector<4x16xf32>
    %c10_135 = arith.constant 10 : index
    %425 = memref.load %arg4[%c10_135] : memref<19xf32, #tpu.memory_space<smem>>
    %426 = vector.broadcast %425 : f32 to vector<4x16xf32>
    %427 = arith.mulf %426, %401 : vector<4x16xf32>
    %428 = arith.addf %420, %427 : vector<4x16xf32>
    %c2_136 = arith.constant 2 : index
    %429 = memref.load %arg4[%c2_136] : memref<19xf32, #tpu.memory_space<smem>>
    %cst_137 = arith.constant 0.000000e+00 : f32
    %430 = vector.broadcast %cst_137 : f32 to vector<4x1xf32>
    %431 = vector.extract_strided_slice %395 {offsets = [0, 1], sizes = [4, 15], strides = [1, 1]} : vector<4x16xf32> to vector<4x15xf32>
    %432 = tpu.concatenate %431, %430 in 1 : vector<4x15xf32>, vector<4x1xf32> -> vector<4x16xf32>
    %433 = vector.broadcast %429 : f32 to vector<4x16xf32>
    %434 = arith.mulf %433, %432 : vector<4x16xf32>
    %435 = arith.addf %424, %434 : vector<4x16xf32>
    %c11_138 = arith.constant 11 : index
    %436 = memref.load %arg4[%c11_138] : memref<19xf32, #tpu.memory_space<smem>>
    %cst_139 = arith.constant 0.000000e+00 : f32
    %437 = vector.broadcast %cst_139 : f32 to vector<4x1xf32>
    %438 = vector.extract_strided_slice %401 {offsets = [0, 1], sizes = [4, 15], strides = [1, 1]} : vector<4x16xf32> to vector<4x15xf32>
    %439 = tpu.concatenate %438, %437 in 1 : vector<4x15xf32>, vector<4x1xf32> -> vector<4x16xf32>
    %440 = vector.broadcast %436 : f32 to vector<4x16xf32>
    %441 = arith.mulf %440, %439 : vector<4x16xf32>
    %442 = arith.addf %428, %441 : vector<4x16xf32>
    %c3_140 = arith.constant 3 : index
    %443 = memref.load %arg4[%c3_140] : memref<19xf32, #tpu.memory_space<smem>>
    %cst_141 = arith.constant 0.000000e+00 : f32
    %444 = vector.broadcast %cst_141 : f32 to vector<4x1xf32>
    %445 = vector.extract_strided_slice %240 {offsets = [0, 0], sizes = [4, 15], strides = [1, 1]} : vector<4x16xf32> to vector<4x15xf32>
    %446 = tpu.concatenate %444, %445 in 1 : vector<4x1xf32>, vector<4x15xf32> -> vector<4x16xf32>
    %447 = vector.broadcast %443 : f32 to vector<4x16xf32>
    %448 = arith.mulf %447, %446 : vector<4x16xf32>
    %449 = arith.addf %435, %448 : vector<4x16xf32>
    %c12_142 = arith.constant 12 : index
    %450 = memref.load %arg4[%c12_142] : memref<19xf32, #tpu.memory_space<smem>>
    %cst_143 = arith.constant 0.000000e+00 : f32
    %451 = vector.broadcast %cst_143 : f32 to vector<4x1xf32>
    %452 = vector.extract_strided_slice %241 {offsets = [0, 0], sizes = [4, 15], strides = [1, 1]} : vector<4x16xf32> to vector<4x15xf32>
    %453 = tpu.concatenate %451, %452 in 1 : vector<4x1xf32>, vector<4x15xf32> -> vector<4x16xf32>
    %454 = vector.broadcast %450 : f32 to vector<4x16xf32>
    %455 = arith.mulf %454, %453 : vector<4x16xf32>
    %456 = arith.addf %442, %455 : vector<4x16xf32>
    %c4_144 = arith.constant 4 : index
    %457 = memref.load %arg4[%c4_144] : memref<19xf32, #tpu.memory_space<smem>>
    %458 = vector.broadcast %457 : f32 to vector<4x16xf32>
    %459 = arith.mulf %458, %240 : vector<4x16xf32>
    %460 = arith.addf %449, %459 : vector<4x16xf32>
    %c13_145 = arith.constant 13 : index
    %461 = memref.load %arg4[%c13_145] : memref<19xf32, #tpu.memory_space<smem>>
    %462 = vector.broadcast %461 : f32 to vector<4x16xf32>
    %463 = arith.mulf %462, %241 : vector<4x16xf32>
    %464 = arith.addf %456, %463 : vector<4x16xf32>
    %c5_146 = arith.constant 5 : index
    %465 = memref.load %arg4[%c5_146] : memref<19xf32, #tpu.memory_space<smem>>
    %cst_147 = arith.constant 0.000000e+00 : f32
    %466 = vector.broadcast %cst_147 : f32 to vector<4x1xf32>
    %467 = vector.extract_strided_slice %240 {offsets = [0, 1], sizes = [4, 15], strides = [1, 1]} : vector<4x16xf32> to vector<4x15xf32>
    %468 = tpu.concatenate %467, %466 in 1 : vector<4x15xf32>, vector<4x1xf32> -> vector<4x16xf32>
    %469 = vector.broadcast %465 : f32 to vector<4x16xf32>
    %470 = arith.mulf %469, %468 : vector<4x16xf32>
    %471 = arith.addf %460, %470 : vector<4x16xf32>
    %c14_148 = arith.constant 14 : index
    %472 = memref.load %arg4[%c14_148] : memref<19xf32, #tpu.memory_space<smem>>
    %cst_149 = arith.constant 0.000000e+00 : f32
    %473 = vector.broadcast %cst_149 : f32 to vector<4x1xf32>
    %474 = vector.extract_strided_slice %241 {offsets = [0, 1], sizes = [4, 15], strides = [1, 1]} : vector<4x16xf32> to vector<4x15xf32>
    %475 = tpu.concatenate %474, %473 in 1 : vector<4x15xf32>, vector<4x1xf32> -> vector<4x16xf32>
    %476 = vector.broadcast %472 : f32 to vector<4x16xf32>
    %477 = arith.mulf %476, %475 : vector<4x16xf32>
    %478 = arith.addf %464, %477 : vector<4x16xf32>
    %c6_150 = arith.constant 6 : index
    %479 = memref.load %arg4[%c6_150] : memref<19xf32, #tpu.memory_space<smem>>
    %cst_151 = arith.constant 0.000000e+00 : f32
    %480 = vector.broadcast %cst_151 : f32 to vector<4x1xf32>
    %481 = vector.extract_strided_slice %398 {offsets = [0, 0], sizes = [4, 15], strides = [1, 1]} : vector<4x16xf32> to vector<4x15xf32>
    %482 = tpu.concatenate %480, %481 in 1 : vector<4x1xf32>, vector<4x15xf32> -> vector<4x16xf32>
    %483 = vector.broadcast %479 : f32 to vector<4x16xf32>
    %484 = arith.mulf %483, %482 : vector<4x16xf32>
    %485 = arith.addf %471, %484 : vector<4x16xf32>
    %c15_152 = arith.constant 15 : index
    %486 = memref.load %arg4[%c15_152] : memref<19xf32, #tpu.memory_space<smem>>
    %cst_153 = arith.constant 0.000000e+00 : f32
    %487 = vector.broadcast %cst_153 : f32 to vector<4x1xf32>
    %488 = vector.extract_strided_slice %404 {offsets = [0, 0], sizes = [4, 15], strides = [1, 1]} : vector<4x16xf32> to vector<4x15xf32>
    %489 = tpu.concatenate %487, %488 in 1 : vector<4x1xf32>, vector<4x15xf32> -> vector<4x16xf32>
    %490 = vector.broadcast %486 : f32 to vector<4x16xf32>
    %491 = arith.mulf %490, %489 : vector<4x16xf32>
    %492 = arith.addf %478, %491 : vector<4x16xf32>
    %c7_154 = arith.constant 7 : index
    %493 = memref.load %arg4[%c7_154] : memref<19xf32, #tpu.memory_space<smem>>
    %494 = vector.broadcast %493 : f32 to vector<4x16xf32>
    %495 = arith.mulf %494, %398 : vector<4x16xf32>
    %496 = arith.addf %485, %495 : vector<4x16xf32>
    %c16_155 = arith.constant 16 : index
    %497 = memref.load %arg4[%c16_155] : memref<19xf32, #tpu.memory_space<smem>>
    %498 = vector.broadcast %497 : f32 to vector<4x16xf32>
    %499 = arith.mulf %498, %404 : vector<4x16xf32>
    %500 = arith.addf %492, %499 : vector<4x16xf32>
    %c8_156 = arith.constant 8 : index
    %501 = memref.load %arg4[%c8_156] : memref<19xf32, #tpu.memory_space<smem>>
    %cst_157 = arith.constant 0.000000e+00 : f32
    %502 = vector.broadcast %cst_157 : f32 to vector<4x1xf32>
    %503 = vector.extract_strided_slice %398 {offsets = [0, 1], sizes = [4, 15], strides = [1, 1]} : vector<4x16xf32> to vector<4x15xf32>
    %504 = tpu.concatenate %503, %502 in 1 : vector<4x15xf32>, vector<4x1xf32> -> vector<4x16xf32>
    %505 = vector.broadcast %501 : f32 to vector<4x16xf32>
    %506 = arith.mulf %505, %504 : vector<4x16xf32>
    %507 = arith.addf %496, %506 : vector<4x16xf32>
    %c17_158 = arith.constant 17 : index
    %508 = memref.load %arg4[%c17_158] : memref<19xf32, #tpu.memory_space<smem>>
    %cst_159 = arith.constant 0.000000e+00 : f32
    %509 = vector.broadcast %cst_159 : f32 to vector<4x1xf32>
    %510 = vector.extract_strided_slice %404 {offsets = [0, 1], sizes = [4, 15], strides = [1, 1]} : vector<4x16xf32> to vector<4x15xf32>
    %511 = tpu.concatenate %510, %509 in 1 : vector<4x15xf32>, vector<4x1xf32> -> vector<4x16xf32>
    %512 = vector.broadcast %508 : f32 to vector<4x16xf32>
    %513 = arith.mulf %512, %511 : vector<4x16xf32>
    %514 = arith.addf %500, %513 : vector<4x16xf32>
    %515 = arith.addf %507, %514 : vector<4x16xf32>
    %c18_160 = arith.constant 18 : index
    %516 = memref.load %arg4[%c18_160] : memref<19xf32, #tpu.memory_space<smem>>
    %517 = vector.broadcast %516 : f32 to vector<4x16xf32>
    %518 = arith.addf %515, %517 : vector<4x16xf32>
    %cst_161 = arith.constant 0.000000e+00 : f32
    %519 = vector.broadcast %cst_161 : f32 to vector<4x16xf32>
    %520 = arith.maximumf %518, %519 : vector<4x16xf32>
    %521 = arith.negf %520 : vector<4x16xf32>
    %522 = math.exp %521 : vector<4x16xf32>
    %cst_162 = arith.constant 1.000000e+00 : f32
    %523 = vector.broadcast %cst_162 : f32 to vector<4x16xf32>
    %524 = arith.addf %523, %522 : vector<4x16xf32>
    %525 = arith.divf %523, %524 : vector<4x16xf32>
    %cst_163 = arith.constant 0.000000e+00 : f32
    %526 = vector.broadcast %cst_163 : f32 to vector<1x16xf32>
    %527 = vector.extract_strided_slice %245 {offsets = [0, 0], sizes = [3, 16], strides = [1, 1]} : vector<4x16xf32> to vector<3x16xf32>
    %528 = tpu.concatenate %526, %527 in 0 : vector<1x16xf32>, vector<3x16xf32> -> vector<4x16xf32>
    %cst_164 = arith.constant 0.000000e+00 : f32
    %529 = vector.broadcast %cst_164 : f32 to vector<1x16xf32>
    %530 = vector.extract_strided_slice %245 {offsets = [1, 0], sizes = [3, 16], strides = [1, 1]} : vector<4x16xf32> to vector<3x16xf32>
    %531 = tpu.concatenate %530, %529 in 0 : vector<3x16xf32>, vector<1x16xf32> -> vector<4x16xf32>
    %cst_165 = arith.constant 0.000000e+00 : f32
    %532 = vector.broadcast %cst_165 : f32 to vector<1x16xf32>
    %533 = vector.extract_strided_slice %239 {offsets = [0, 0], sizes = [3, 16], strides = [1, 1]} : vector<4x16xf32> to vector<3x16xf32>
    %534 = tpu.concatenate %532, %533 in 0 : vector<1x16xf32>, vector<3x16xf32> -> vector<4x16xf32>
    %cst_166 = arith.constant 0.000000e+00 : f32
    %535 = vector.broadcast %cst_166 : f32 to vector<1x16xf32>
    %536 = vector.extract_strided_slice %239 {offsets = [1, 0], sizes = [3, 16], strides = [1, 1]} : vector<4x16xf32> to vector<3x16xf32>
    %537 = tpu.concatenate %536, %535 in 0 : vector<3x16xf32>, vector<1x16xf32> -> vector<4x16xf32>
    %cst_167 = arith.constant 0.000000e+00 : f32
    %538 = vector.broadcast %cst_167 : f32 to vector<4x16xf32>
    %cst_168 = arith.constant 0.000000e+00 : f32
    %539 = vector.broadcast %cst_168 : f32 to vector<4x16xf32>
    %c0_169 = arith.constant 0 : index
    %540 = memref.load %arg5[%c0_169] : memref<19xf32, #tpu.memory_space<smem>>
    %cst_170 = arith.constant 0.000000e+00 : f32
    %541 = vector.broadcast %cst_170 : f32 to vector<4x1xf32>
    %542 = vector.extract_strided_slice %528 {offsets = [0, 0], sizes = [4, 15], strides = [1, 1]} : vector<4x16xf32> to vector<4x15xf32>
    %543 = tpu.concatenate %541, %542 in 1 : vector<4x1xf32>, vector<4x15xf32> -> vector<4x16xf32>
    %544 = vector.broadcast %540 : f32 to vector<4x16xf32>
    %545 = arith.mulf %544, %543 : vector<4x16xf32>
    %546 = arith.addf %538, %545 : vector<4x16xf32>
    %c9_171 = arith.constant 9 : index
    %547 = memref.load %arg5[%c9_171] : memref<19xf32, #tpu.memory_space<smem>>
    %cst_172 = arith.constant 0.000000e+00 : f32
    %548 = vector.broadcast %cst_172 : f32 to vector<4x1xf32>
    %549 = vector.extract_strided_slice %534 {offsets = [0, 0], sizes = [4, 15], strides = [1, 1]} : vector<4x16xf32> to vector<4x15xf32>
    %550 = tpu.concatenate %548, %549 in 1 : vector<4x1xf32>, vector<4x15xf32> -> vector<4x16xf32>
    %551 = vector.broadcast %547 : f32 to vector<4x16xf32>
    %552 = arith.mulf %551, %550 : vector<4x16xf32>
    %553 = arith.addf %539, %552 : vector<4x16xf32>
    %c1_173 = arith.constant 1 : index
    %554 = memref.load %arg5[%c1_173] : memref<19xf32, #tpu.memory_space<smem>>
    %555 = vector.broadcast %554 : f32 to vector<4x16xf32>
    %556 = arith.mulf %555, %528 : vector<4x16xf32>
    %557 = arith.addf %546, %556 : vector<4x16xf32>
    %c10_174 = arith.constant 10 : index
    %558 = memref.load %arg5[%c10_174] : memref<19xf32, #tpu.memory_space<smem>>
    %559 = vector.broadcast %558 : f32 to vector<4x16xf32>
    %560 = arith.mulf %559, %534 : vector<4x16xf32>
    %561 = arith.addf %553, %560 : vector<4x16xf32>
    %c2_175 = arith.constant 2 : index
    %562 = memref.load %arg5[%c2_175] : memref<19xf32, #tpu.memory_space<smem>>
    %cst_176 = arith.constant 0.000000e+00 : f32
    %563 = vector.broadcast %cst_176 : f32 to vector<4x1xf32>
    %564 = vector.extract_strided_slice %528 {offsets = [0, 1], sizes = [4, 15], strides = [1, 1]} : vector<4x16xf32> to vector<4x15xf32>
    %565 = tpu.concatenate %564, %563 in 1 : vector<4x15xf32>, vector<4x1xf32> -> vector<4x16xf32>
    %566 = vector.broadcast %562 : f32 to vector<4x16xf32>
    %567 = arith.mulf %566, %565 : vector<4x16xf32>
    %568 = arith.addf %557, %567 : vector<4x16xf32>
    %c11_177 = arith.constant 11 : index
    %569 = memref.load %arg5[%c11_177] : memref<19xf32, #tpu.memory_space<smem>>
    %cst_178 = arith.constant 0.000000e+00 : f32
    %570 = vector.broadcast %cst_178 : f32 to vector<4x1xf32>
    %571 = vector.extract_strided_slice %534 {offsets = [0, 1], sizes = [4, 15], strides = [1, 1]} : vector<4x16xf32> to vector<4x15xf32>
    %572 = tpu.concatenate %571, %570 in 1 : vector<4x15xf32>, vector<4x1xf32> -> vector<4x16xf32>
    %573 = vector.broadcast %569 : f32 to vector<4x16xf32>
    %574 = arith.mulf %573, %572 : vector<4x16xf32>
    %575 = arith.addf %561, %574 : vector<4x16xf32>
    %c3_179 = arith.constant 3 : index
    %576 = memref.load %arg5[%c3_179] : memref<19xf32, #tpu.memory_space<smem>>
    %cst_180 = arith.constant 0.000000e+00 : f32
    %577 = vector.broadcast %cst_180 : f32 to vector<4x1xf32>
    %578 = vector.extract_strided_slice %245 {offsets = [0, 0], sizes = [4, 15], strides = [1, 1]} : vector<4x16xf32> to vector<4x15xf32>
    %579 = tpu.concatenate %577, %578 in 1 : vector<4x1xf32>, vector<4x15xf32> -> vector<4x16xf32>
    %580 = vector.broadcast %576 : f32 to vector<4x16xf32>
    %581 = arith.mulf %580, %579 : vector<4x16xf32>
    %582 = arith.addf %568, %581 : vector<4x16xf32>
    %c12_181 = arith.constant 12 : index
    %583 = memref.load %arg5[%c12_181] : memref<19xf32, #tpu.memory_space<smem>>
    %cst_182 = arith.constant 0.000000e+00 : f32
    %584 = vector.broadcast %cst_182 : f32 to vector<4x1xf32>
    %585 = vector.extract_strided_slice %239 {offsets = [0, 0], sizes = [4, 15], strides = [1, 1]} : vector<4x16xf32> to vector<4x15xf32>
    %586 = tpu.concatenate %584, %585 in 1 : vector<4x1xf32>, vector<4x15xf32> -> vector<4x16xf32>
    %587 = vector.broadcast %583 : f32 to vector<4x16xf32>
    %588 = arith.mulf %587, %586 : vector<4x16xf32>
    %589 = arith.addf %575, %588 : vector<4x16xf32>
    %c4_183 = arith.constant 4 : index
    %590 = memref.load %arg5[%c4_183] : memref<19xf32, #tpu.memory_space<smem>>
    %591 = vector.broadcast %590 : f32 to vector<4x16xf32>
    %592 = arith.mulf %591, %245 : vector<4x16xf32>
    %593 = arith.addf %582, %592 : vector<4x16xf32>
    %c13_184 = arith.constant 13 : index
    %594 = memref.load %arg5[%c13_184] : memref<19xf32, #tpu.memory_space<smem>>
    %595 = vector.broadcast %594 : f32 to vector<4x16xf32>
    %596 = arith.mulf %595, %239 : vector<4x16xf32>
    %597 = arith.addf %589, %596 : vector<4x16xf32>
    %c5_185 = arith.constant 5 : index
    %598 = memref.load %arg5[%c5_185] : memref<19xf32, #tpu.memory_space<smem>>
    %cst_186 = arith.constant 0.000000e+00 : f32
    %599 = vector.broadcast %cst_186 : f32 to vector<4x1xf32>
    %600 = vector.extract_strided_slice %245 {offsets = [0, 1], sizes = [4, 15], strides = [1, 1]} : vector<4x16xf32> to vector<4x15xf32>
    %601 = tpu.concatenate %600, %599 in 1 : vector<4x15xf32>, vector<4x1xf32> -> vector<4x16xf32>
    %602 = vector.broadcast %598 : f32 to vector<4x16xf32>
    %603 = arith.mulf %602, %601 : vector<4x16xf32>
    %604 = arith.addf %593, %603 : vector<4x16xf32>
    %c14_187 = arith.constant 14 : index
    %605 = memref.load %arg5[%c14_187] : memref<19xf32, #tpu.memory_space<smem>>
    %cst_188 = arith.constant 0.000000e+00 : f32
    %606 = vector.broadcast %cst_188 : f32 to vector<4x1xf32>
    %607 = vector.extract_strided_slice %239 {offsets = [0, 1], sizes = [4, 15], strides = [1, 1]} : vector<4x16xf32> to vector<4x15xf32>
    %608 = tpu.concatenate %607, %606 in 1 : vector<4x15xf32>, vector<4x1xf32> -> vector<4x16xf32>
    %609 = vector.broadcast %605 : f32 to vector<4x16xf32>
    %610 = arith.mulf %609, %608 : vector<4x16xf32>
    %611 = arith.addf %597, %610 : vector<4x16xf32>
    %c6_189 = arith.constant 6 : index
    %612 = memref.load %arg5[%c6_189] : memref<19xf32, #tpu.memory_space<smem>>
    %cst_190 = arith.constant 0.000000e+00 : f32
    %613 = vector.broadcast %cst_190 : f32 to vector<4x1xf32>
    %614 = vector.extract_strided_slice %531 {offsets = [0, 0], sizes = [4, 15], strides = [1, 1]} : vector<4x16xf32> to vector<4x15xf32>
    %615 = tpu.concatenate %613, %614 in 1 : vector<4x1xf32>, vector<4x15xf32> -> vector<4x16xf32>
    %616 = vector.broadcast %612 : f32 to vector<4x16xf32>
    %617 = arith.mulf %616, %615 : vector<4x16xf32>
    %618 = arith.addf %604, %617 : vector<4x16xf32>
    %c15_191 = arith.constant 15 : index
    %619 = memref.load %arg5[%c15_191] : memref<19xf32, #tpu.memory_space<smem>>
    %cst_192 = arith.constant 0.000000e+00 : f32
    %620 = vector.broadcast %cst_192 : f32 to vector<4x1xf32>
    %621 = vector.extract_strided_slice %537 {offsets = [0, 0], sizes = [4, 15], strides = [1, 1]} : vector<4x16xf32> to vector<4x15xf32>
    %622 = tpu.concatenate %620, %621 in 1 : vector<4x1xf32>, vector<4x15xf32> -> vector<4x16xf32>
    %623 = vector.broadcast %619 : f32 to vector<4x16xf32>
    %624 = arith.mulf %623, %622 : vector<4x16xf32>
    %625 = arith.addf %611, %624 : vector<4x16xf32>
    %c7_193 = arith.constant 7 : index
    %626 = memref.load %arg5[%c7_193] : memref<19xf32, #tpu.memory_space<smem>>
    %627 = vector.broadcast %626 : f32 to vector<4x16xf32>
    %628 = arith.mulf %627, %531 : vector<4x16xf32>
    %629 = arith.addf %618, %628 : vector<4x16xf32>
    %c16_194 = arith.constant 16 : index
    %630 = memref.load %arg5[%c16_194] : memref<19xf32, #tpu.memory_space<smem>>
    %631 = vector.broadcast %630 : f32 to vector<4x16xf32>
    %632 = arith.mulf %631, %537 : vector<4x16xf32>
    %633 = arith.addf %625, %632 : vector<4x16xf32>
    %c8_195 = arith.constant 8 : index
    %634 = memref.load %arg5[%c8_195] : memref<19xf32, #tpu.memory_space<smem>>
    %cst_196 = arith.constant 0.000000e+00 : f32
    %635 = vector.broadcast %cst_196 : f32 to vector<4x1xf32>
    %636 = vector.extract_strided_slice %531 {offsets = [0, 1], sizes = [4, 15], strides = [1, 1]} : vector<4x16xf32> to vector<4x15xf32>
    %637 = tpu.concatenate %636, %635 in 1 : vector<4x15xf32>, vector<4x1xf32> -> vector<4x16xf32>
    %638 = vector.broadcast %634 : f32 to vector<4x16xf32>
    %639 = arith.mulf %638, %637 : vector<4x16xf32>
    %640 = arith.addf %629, %639 : vector<4x16xf32>
    %c17_197 = arith.constant 17 : index
    %641 = memref.load %arg5[%c17_197] : memref<19xf32, #tpu.memory_space<smem>>
    %cst_198 = arith.constant 0.000000e+00 : f32
    %642 = vector.broadcast %cst_198 : f32 to vector<4x1xf32>
    %643 = vector.extract_strided_slice %537 {offsets = [0, 1], sizes = [4, 15], strides = [1, 1]} : vector<4x16xf32> to vector<4x15xf32>
    %644 = tpu.concatenate %643, %642 in 1 : vector<4x15xf32>, vector<4x1xf32> -> vector<4x16xf32>
    %645 = vector.broadcast %641 : f32 to vector<4x16xf32>
    %646 = arith.mulf %645, %644 : vector<4x16xf32>
    %647 = arith.addf %633, %646 : vector<4x16xf32>
    %648 = arith.addf %640, %647 : vector<4x16xf32>
    %c18_199 = arith.constant 18 : index
    %649 = memref.load %arg5[%c18_199] : memref<19xf32, #tpu.memory_space<smem>>
    %650 = vector.broadcast %649 : f32 to vector<4x16xf32>
    %651 = arith.addf %648, %650 : vector<4x16xf32>
    %cst_200 = arith.constant 0.000000e+00 : f32
    %652 = vector.broadcast %cst_200 : f32 to vector<4x16xf32>
    %653 = arith.maximumf %651, %652 : vector<4x16xf32>
    %654 = arith.negf %653 : vector<4x16xf32>
    %655 = math.exp %654 : vector<4x16xf32>
    %cst_201 = arith.constant 1.000000e+00 : f32
    %656 = vector.broadcast %cst_201 : f32 to vector<4x16xf32>
    %657 = arith.addf %656, %655 : vector<4x16xf32>
    %658 = arith.divf %656, %657 : vector<4x16xf32>
    %c0_202 = arith.constant 0 : index
    %659 = memref.load %arg1[%c0_202] : memref<2xf32, #tpu.memory_space<smem>>
    %c1_203 = arith.constant 1 : index
    %660 = memref.load %arg1[%c1_203] : memref<2xf32, #tpu.memory_space<smem>>
    %cst_204 = arith.constant 0.333333343 : f32
    %661 = arith.mulf %660, %cst_204 : f32
    %662 = vector.broadcast %659 : f32 to vector<4x1xf32>
    %663 = arith.mulf %662, %259 : vector<4x1xf32>
    %664 = vector.extract_strided_slice %392 {offsets = [0, 0], sizes = [1, 16], strides = [1, 1]} : vector<16x16xf32> to vector<1x16xf32>
    %665 = vector.extract_strided_slice %525 {offsets = [0, 0], sizes = [4, 1], strides = [1, 1]} : vector<4x16xf32> to vector<4x1xf32>
    %666 = vector.broadcast %664 : vector<1x16xf32> to vector<4x16xf32>
    %667 = vector.broadcast %665 : vector<4x1xf32> to vector<4x16xf32>
    %668 = arith.addf %666, %667 : vector<4x16xf32>
    %669 = arith.addf %668, %658 : vector<4x16xf32>
    %670 = vector.broadcast %661 : f32 to vector<4x16xf32>
    %671 = arith.mulf %670, %669 : vector<4x16xf32>
    %672 = vector.broadcast %663 : vector<4x1xf32> to vector<4x16xf32>
    %673 = arith.addf %672, %671 : vector<4x16xf32>
    %674 = vector.broadcast %659 : f32 to vector<4x1xf32>
    %675 = arith.mulf %674, %259 : vector<4x1xf32>
    %676 = vector.extract_strided_slice %392 {offsets = [1, 0], sizes = [1, 16], strides = [1, 1]} : vector<16x16xf32> to vector<1x16xf32>
    %677 = vector.extract_strided_slice %525 {offsets = [0, 1], sizes = [4, 1], strides = [1, 1]} : vector<4x16xf32> to vector<4x1xf32>
    %678 = vector.broadcast %676 : vector<1x16xf32> to vector<4x16xf32>
    %679 = vector.broadcast %677 : vector<4x1xf32> to vector<4x16xf32>
    %680 = arith.addf %678, %679 : vector<4x16xf32>
    %681 = arith.addf %680, %658 : vector<4x16xf32>
    %682 = vector.broadcast %661 : f32 to vector<4x16xf32>
    %683 = arith.mulf %682, %681 : vector<4x16xf32>
    %684 = vector.broadcast %675 : vector<4x1xf32> to vector<4x16xf32>
    %685 = arith.addf %684, %683 : vector<4x16xf32>
    %686 = vector.broadcast %659 : f32 to vector<4x1xf32>
    %687 = arith.mulf %686, %259 : vector<4x1xf32>
    %688 = vector.extract_strided_slice %392 {offsets = [2, 0], sizes = [1, 16], strides = [1, 1]} : vector<16x16xf32> to vector<1x16xf32>
    %689 = vector.extract_strided_slice %525 {offsets = [0, 2], sizes = [4, 1], strides = [1, 1]} : vector<4x16xf32> to vector<4x1xf32>
    %690 = vector.broadcast %688 : vector<1x16xf32> to vector<4x16xf32>
    %691 = vector.broadcast %689 : vector<4x1xf32> to vector<4x16xf32>
    %692 = arith.addf %690, %691 : vector<4x16xf32>
    %693 = arith.addf %692, %658 : vector<4x16xf32>
    %694 = vector.broadcast %661 : f32 to vector<4x16xf32>
    %695 = arith.mulf %694, %693 : vector<4x16xf32>
    %696 = vector.broadcast %687 : vector<4x1xf32> to vector<4x16xf32>
    %697 = arith.addf %696, %695 : vector<4x16xf32>
    %698 = vector.broadcast %659 : f32 to vector<4x1xf32>
    %699 = arith.mulf %698, %259 : vector<4x1xf32>
    %700 = vector.extract_strided_slice %392 {offsets = [3, 0], sizes = [1, 16], strides = [1, 1]} : vector<16x16xf32> to vector<1x16xf32>
    %701 = vector.extract_strided_slice %525 {offsets = [0, 3], sizes = [4, 1], strides = [1, 1]} : vector<4x16xf32> to vector<4x1xf32>
    %702 = vector.broadcast %700 : vector<1x16xf32> to vector<4x16xf32>
    %703 = vector.broadcast %701 : vector<4x1xf32> to vector<4x16xf32>
    %704 = arith.addf %702, %703 : vector<4x16xf32>
    %705 = arith.addf %704, %658 : vector<4x16xf32>
    %706 = vector.broadcast %661 : f32 to vector<4x16xf32>
    %707 = arith.mulf %706, %705 : vector<4x16xf32>
    %708 = vector.broadcast %699 : vector<4x1xf32> to vector<4x16xf32>
    %709 = arith.addf %708, %707 : vector<4x16xf32>
    %710 = vector.broadcast %659 : f32 to vector<4x1xf32>
    %711 = arith.mulf %710, %259 : vector<4x1xf32>
    %712 = vector.extract_strided_slice %392 {offsets = [4, 0], sizes = [1, 16], strides = [1, 1]} : vector<16x16xf32> to vector<1x16xf32>
    %713 = vector.extract_strided_slice %525 {offsets = [0, 4], sizes = [4, 1], strides = [1, 1]} : vector<4x16xf32> to vector<4x1xf32>
    %714 = vector.broadcast %712 : vector<1x16xf32> to vector<4x16xf32>
    %715 = vector.broadcast %713 : vector<4x1xf32> to vector<4x16xf32>
    %716 = arith.addf %714, %715 : vector<4x16xf32>
    %717 = arith.addf %716, %658 : vector<4x16xf32>
    %718 = vector.broadcast %661 : f32 to vector<4x16xf32>
    %719 = arith.mulf %718, %717 : vector<4x16xf32>
    %720 = vector.broadcast %711 : vector<4x1xf32> to vector<4x16xf32>
    %721 = arith.addf %720, %719 : vector<4x16xf32>
    %722 = vector.broadcast %659 : f32 to vector<4x1xf32>
    %723 = arith.mulf %722, %259 : vector<4x1xf32>
    %724 = vector.extract_strided_slice %392 {offsets = [5, 0], sizes = [1, 16], strides = [1, 1]} : vector<16x16xf32> to vector<1x16xf32>
    %725 = vector.extract_strided_slice %525 {offsets = [0, 5], sizes = [4, 1], strides = [1, 1]} : vector<4x16xf32> to vector<4x1xf32>
    %726 = vector.broadcast %724 : vector<1x16xf32> to vector<4x16xf32>
    %727 = vector.broadcast %725 : vector<4x1xf32> to vector<4x16xf32>
    %728 = arith.addf %726, %727 : vector<4x16xf32>
    %729 = arith.addf %728, %658 : vector<4x16xf32>
    %730 = vector.broadcast %661 : f32 to vector<4x16xf32>
    %731 = arith.mulf %730, %729 : vector<4x16xf32>
    %732 = vector.broadcast %723 : vector<4x1xf32> to vector<4x16xf32>
    %733 = arith.addf %732, %731 : vector<4x16xf32>
    %734 = vector.broadcast %659 : f32 to vector<4x1xf32>
    %735 = arith.mulf %734, %259 : vector<4x1xf32>
    %736 = vector.extract_strided_slice %392 {offsets = [6, 0], sizes = [1, 16], strides = [1, 1]} : vector<16x16xf32> to vector<1x16xf32>
    %737 = vector.extract_strided_slice %525 {offsets = [0, 6], sizes = [4, 1], strides = [1, 1]} : vector<4x16xf32> to vector<4x1xf32>
    %738 = vector.broadcast %736 : vector<1x16xf32> to vector<4x16xf32>
    %739 = vector.broadcast %737 : vector<4x1xf32> to vector<4x16xf32>
    %740 = arith.addf %738, %739 : vector<4x16xf32>
    %741 = arith.addf %740, %658 : vector<4x16xf32>
    %742 = vector.broadcast %661 : f32 to vector<4x16xf32>
    %743 = arith.mulf %742, %741 : vector<4x16xf32>
    %744 = vector.broadcast %735 : vector<4x1xf32> to vector<4x16xf32>
    %745 = arith.addf %744, %743 : vector<4x16xf32>
    %746 = vector.broadcast %659 : f32 to vector<4x1xf32>
    %747 = arith.mulf %746, %259 : vector<4x1xf32>
    %748 = vector.extract_strided_slice %392 {offsets = [7, 0], sizes = [1, 16], strides = [1, 1]} : vector<16x16xf32> to vector<1x16xf32>
    %749 = vector.extract_strided_slice %525 {offsets = [0, 7], sizes = [4, 1], strides = [1, 1]} : vector<4x16xf32> to vector<4x1xf32>
    %750 = vector.broadcast %748 : vector<1x16xf32> to vector<4x16xf32>
    %751 = vector.broadcast %749 : vector<4x1xf32> to vector<4x16xf32>
    %752 = arith.addf %750, %751 : vector<4x16xf32>
    %753 = arith.addf %752, %658 : vector<4x16xf32>
    %754 = vector.broadcast %661 : f32 to vector<4x16xf32>
    %755 = arith.mulf %754, %753 : vector<4x16xf32>
    %756 = vector.broadcast %747 : vector<4x1xf32> to vector<4x16xf32>
    %757 = arith.addf %756, %755 : vector<4x16xf32>
    %758 = vector.broadcast %659 : f32 to vector<4x1xf32>
    %759 = arith.mulf %758, %259 : vector<4x1xf32>
    %760 = vector.extract_strided_slice %392 {offsets = [8, 0], sizes = [1, 16], strides = [1, 1]} : vector<16x16xf32> to vector<1x16xf32>
    %761 = vector.extract_strided_slice %525 {offsets = [0, 8], sizes = [4, 1], strides = [1, 1]} : vector<4x16xf32> to vector<4x1xf32>
    %762 = vector.broadcast %760 : vector<1x16xf32> to vector<4x16xf32>
    %763 = vector.broadcast %761 : vector<4x1xf32> to vector<4x16xf32>
    %764 = arith.addf %762, %763 : vector<4x16xf32>
    %765 = arith.addf %764, %658 : vector<4x16xf32>
    %766 = vector.broadcast %661 : f32 to vector<4x16xf32>
    %767 = arith.mulf %766, %765 : vector<4x16xf32>
    %768 = vector.broadcast %759 : vector<4x1xf32> to vector<4x16xf32>
    %769 = arith.addf %768, %767 : vector<4x16xf32>
    %770 = vector.broadcast %659 : f32 to vector<4x1xf32>
    %771 = arith.mulf %770, %259 : vector<4x1xf32>
    %772 = vector.extract_strided_slice %392 {offsets = [9, 0], sizes = [1, 16], strides = [1, 1]} : vector<16x16xf32> to vector<1x16xf32>
    %773 = vector.extract_strided_slice %525 {offsets = [0, 9], sizes = [4, 1], strides = [1, 1]} : vector<4x16xf32> to vector<4x1xf32>
    %774 = vector.broadcast %772 : vector<1x16xf32> to vector<4x16xf32>
    %775 = vector.broadcast %773 : vector<4x1xf32> to vector<4x16xf32>
    %776 = arith.addf %774, %775 : vector<4x16xf32>
    %777 = arith.addf %776, %658 : vector<4x16xf32>
    %778 = vector.broadcast %661 : f32 to vector<4x16xf32>
    %779 = arith.mulf %778, %777 : vector<4x16xf32>
    %780 = vector.broadcast %771 : vector<4x1xf32> to vector<4x16xf32>
    %781 = arith.addf %780, %779 : vector<4x16xf32>
    %782 = vector.broadcast %659 : f32 to vector<4x1xf32>
    %783 = arith.mulf %782, %259 : vector<4x1xf32>
    %784 = vector.extract_strided_slice %392 {offsets = [10, 0], sizes = [1, 16], strides = [1, 1]} : vector<16x16xf32> to vector<1x16xf32>
    %785 = vector.extract_strided_slice %525 {offsets = [0, 10], sizes = [4, 1], strides = [1, 1]} : vector<4x16xf32> to vector<4x1xf32>
    %786 = vector.broadcast %784 : vector<1x16xf32> to vector<4x16xf32>
    %787 = vector.broadcast %785 : vector<4x1xf32> to vector<4x16xf32>
    %788 = arith.addf %786, %787 : vector<4x16xf32>
    %789 = arith.addf %788, %658 : vector<4x16xf32>
    %790 = vector.broadcast %661 : f32 to vector<4x16xf32>
    %791 = arith.mulf %790, %789 : vector<4x16xf32>
    %792 = vector.broadcast %783 : vector<4x1xf32> to vector<4x16xf32>
    %793 = arith.addf %792, %791 : vector<4x16xf32>
    %794 = vector.broadcast %659 : f32 to vector<4x1xf32>
    %795 = arith.mulf %794, %259 : vector<4x1xf32>
    %796 = vector.extract_strided_slice %392 {offsets = [11, 0], sizes = [1, 16], strides = [1, 1]} : vector<16x16xf32> to vector<1x16xf32>
    %797 = vector.extract_strided_slice %525 {offsets = [0, 11], sizes = [4, 1], strides = [1, 1]} : vector<4x16xf32> to vector<4x1xf32>
    %798 = vector.broadcast %796 : vector<1x16xf32> to vector<4x16xf32>
    %799 = vector.broadcast %797 : vector<4x1xf32> to vector<4x16xf32>
    %800 = arith.addf %798, %799 : vector<4x16xf32>
    %801 = arith.addf %800, %658 : vector<4x16xf32>
    %802 = vector.broadcast %661 : f32 to vector<4x16xf32>
    %803 = arith.mulf %802, %801 : vector<4x16xf32>
    %804 = vector.broadcast %795 : vector<4x1xf32> to vector<4x16xf32>
    %805 = arith.addf %804, %803 : vector<4x16xf32>
    %806 = vector.broadcast %659 : f32 to vector<4x1xf32>
    %807 = arith.mulf %806, %259 : vector<4x1xf32>
    %808 = vector.extract_strided_slice %392 {offsets = [12, 0], sizes = [1, 16], strides = [1, 1]} : vector<16x16xf32> to vector<1x16xf32>
    %809 = vector.extract_strided_slice %525 {offsets = [0, 12], sizes = [4, 1], strides = [1, 1]} : vector<4x16xf32> to vector<4x1xf32>
    %810 = vector.broadcast %808 : vector<1x16xf32> to vector<4x16xf32>
    %811 = vector.broadcast %809 : vector<4x1xf32> to vector<4x16xf32>
    %812 = arith.addf %810, %811 : vector<4x16xf32>
    %813 = arith.addf %812, %658 : vector<4x16xf32>
    %814 = vector.broadcast %661 : f32 to vector<4x16xf32>
    %815 = arith.mulf %814, %813 : vector<4x16xf32>
    %816 = vector.broadcast %807 : vector<4x1xf32> to vector<4x16xf32>
    %817 = arith.addf %816, %815 : vector<4x16xf32>
    %818 = vector.broadcast %659 : f32 to vector<4x1xf32>
    %819 = arith.mulf %818, %259 : vector<4x1xf32>
    %820 = vector.extract_strided_slice %392 {offsets = [13, 0], sizes = [1, 16], strides = [1, 1]} : vector<16x16xf32> to vector<1x16xf32>
    %821 = vector.extract_strided_slice %525 {offsets = [0, 13], sizes = [4, 1], strides = [1, 1]} : vector<4x16xf32> to vector<4x1xf32>
    %822 = vector.broadcast %820 : vector<1x16xf32> to vector<4x16xf32>
    %823 = vector.broadcast %821 : vector<4x1xf32> to vector<4x16xf32>
    %824 = arith.addf %822, %823 : vector<4x16xf32>
    %825 = arith.addf %824, %658 : vector<4x16xf32>
    %826 = vector.broadcast %661 : f32 to vector<4x16xf32>
    %827 = arith.mulf %826, %825 : vector<4x16xf32>
    %828 = vector.broadcast %819 : vector<4x1xf32> to vector<4x16xf32>
    %829 = arith.addf %828, %827 : vector<4x16xf32>
    %830 = vector.broadcast %659 : f32 to vector<4x1xf32>
    %831 = arith.mulf %830, %259 : vector<4x1xf32>
    %832 = vector.extract_strided_slice %392 {offsets = [14, 0], sizes = [1, 16], strides = [1, 1]} : vector<16x16xf32> to vector<1x16xf32>
    %833 = vector.extract_strided_slice %525 {offsets = [0, 14], sizes = [4, 1], strides = [1, 1]} : vector<4x16xf32> to vector<4x1xf32>
    %834 = vector.broadcast %832 : vector<1x16xf32> to vector<4x16xf32>
    %835 = vector.broadcast %833 : vector<4x1xf32> to vector<4x16xf32>
    %836 = arith.addf %834, %835 : vector<4x16xf32>
    %837 = arith.addf %836, %658 : vector<4x16xf32>
    %838 = vector.broadcast %661 : f32 to vector<4x16xf32>
    %839 = arith.mulf %838, %837 : vector<4x16xf32>
    %840 = vector.broadcast %831 : vector<4x1xf32> to vector<4x16xf32>
    %841 = arith.addf %840, %839 : vector<4x16xf32>
    %842 = vector.broadcast %659 : f32 to vector<4x1xf32>
    %843 = arith.mulf %842, %259 : vector<4x1xf32>
    %844 = vector.extract_strided_slice %392 {offsets = [15, 0], sizes = [1, 16], strides = [1, 1]} : vector<16x16xf32> to vector<1x16xf32>
    %845 = vector.extract_strided_slice %525 {offsets = [0, 15], sizes = [4, 1], strides = [1, 1]} : vector<4x16xf32> to vector<4x1xf32>
    %846 = vector.broadcast %844 : vector<1x16xf32> to vector<4x16xf32>
    %847 = vector.broadcast %845 : vector<4x1xf32> to vector<4x16xf32>
    %848 = arith.addf %846, %847 : vector<4x16xf32>
    %849 = arith.addf %848, %658 : vector<4x16xf32>
    %850 = vector.broadcast %661 : f32 to vector<4x16xf32>
    %851 = arith.mulf %850, %849 : vector<4x16xf32>
    %852 = vector.broadcast %843 : vector<4x1xf32> to vector<4x16xf32>
    %853 = arith.addf %852, %851 : vector<4x16xf32>
    %854 = tpu.concatenate %673, %685, %697, %709, %721, %733, %745, %757, %769, %781, %793, %805, %817, %829, %841, %853 in 1 : vector<4x16xf32>, vector<4x16xf32>, vector<4x16xf32>, vector<4x16xf32>, vector<4x16xf32>, vector<4x16xf32>, vector<4x16xf32>, vector<4x16xf32>, vector<4x16xf32>, vector<4x16xf32>, vector<4x16xf32>, vector<4x16xf32>, vector<4x16xf32>, vector<4x16xf32>, vector<4x16xf32>, vector<4x16xf32> -> vector<4x256xf32>
    %855 = arith.mulf %1, %854 : vector<4x256xf32>
    %c0_205 = arith.constant 0 : index
    %c0_206 = arith.constant 0 : index
    %c0_207 = arith.constant 0 : index
    %856 = vector.load %arg7[%c0_205, %c0_206, %c0_207] : memref<1x4x256xf32, #tpu.memory_space<vmem>>, vector<1x4x256xf32>
    %857 = vector.shape_cast %856 : vector<1x4x256xf32> to vector<4x256xf32>
    %858 = vector.shape_cast %855 : vector<4x256xf32> to vector<1x4x256xf32>
    tpu.vector_store %arg7[%c0_205, %c0_206, %c0_207], %858 {strides = array<i32>} : memref<1x4x256xf32, #tpu.memory_space<vmem>>, vector<1x4x256xf32>,
    return
  }
  func.func @transform_0(%arg0: i32) -> i32 {
    %c0_i32 = arith.constant 0 : i32
    %c0_i32_0 = arith.constant 0 : i32
    return %c0_i32 : i32
  }
  func.func @transform_1(%arg0: i32) -> i32 {
    %c0_i32 = arith.constant 0 : i32
    %c0_i32_0 = arith.constant 0 : i32
    return %c0_i32 : i32
  }
  func.func @transform_2(%arg0: i32) -> i32 {
    %c0_i32 = arith.constant 0 : i32
    %c0_i32_0 = arith.constant 0 : i32
    return %c0_i32 : i32
  }
  func.func @transform_3(%arg0: i32) -> i32 {
    %c0_i32 = arith.constant 0 : i32
    %c0_i32_0 = arith.constant 0 : i32
    return %c0_i32 : i32
  }
  func.func @transform_4(%arg0: i32) -> i32 {
    %c0_i32 = arith.constant 0 : i32
    %c0_i32_0 = arith.constant 0 : i32
    return %c0_i32 : i32
  }
  func.func @transform_5(%arg0: i32) -> (i32, i32, i32) {
    %c0_i32 = arith.constant 0 : i32
    %c0_i32_0 = arith.constant 0 : i32
    %c0_i32_1 = arith.constant 0 : i32
    return %arg0, %c0_i32, %c0_i32_0 : i32, i32, i32
  }
  func.func @transform_6(%arg0: i32) -> (i32, i32, i32) {
    %c0_i32 = arith.constant 0 : i32
    %c0_i32_0 = arith.constant 0 : i32
    %c0_i32_1 = arith.constant 0 : i32
    return %arg0, %c0_i32, %c0_i32_0 : i32, i32, i32
  }
}

</mosaic_0001>

<llo_original>
// kernel: tpu_custom_call.1
$region0: #{tpu_custom_call.1}
  #allocation0 [shape = 'u32[]', space=smem, size = 0x4, offset = 0x4, fixed_abs, tag = 'smem constant byte address 0x4 - core index']
  #allocation1 [shape = 'u32[144,128]{1,0:T(1,128)}', space=vmem, size = 0x12000, scoped, tag = 'internal scratch']
  #allocation2 [shape = 'f32[1]{0:T(128)S(6)}', space=smem, size = 0x200, scoped, tag = 'scoped memory for tpu_custom_call.1']
  %s0 = inlined_call_operand.vmem [shape: f32[2], index: 0, kind: input, shape index: {}]
  %s1 = inlined_call_operand.<no memory space> [shape: f32[1], index: 1, kind: input, shape index: {}]
  %s2 = inlined_call_operand.vmem [shape: f32[19], index: 2, kind: input, shape index: {}]
  %s3 = inlined_call_operand.hbm [shape: f32[19], index: 3, kind: input, shape index: {}]
  %s4 = inlined_call_operand.hbm [shape: f32[19], index: 4, kind: input, shape index: {}]
  %s5 = inlined_call_operand.vmem [shape: f32[2,4,256], index: 5, kind: input, shape index: {}]
  %s6 = inlined_call_operand.hbm [shape: f32[2,4,256], index: 6, kind: output, shape index: {}]
  %s7 = sld [smem:[#allocation0]]
  $region73: #{tpu_custom_call.1} parent=0
    _
  %s9 = ssub.s32 1, %s7
  %s10 = scalar_select 0, %s9, %s7
  %11 = sst [smem:[#allocation2]] %s1
  $region1: #{tpu_custom_call.1} parent=0
    #allocation3 [shape = 'u8[512]{0}', space=smem, size = 0x200, scoped, tag = 'input window, operand 0, single buffered']
    #allocation4 [shape = 's32[2]{0}', space=sflag, size = 0x8, scoped, tag = 'scoped memory for tpu_custom_call.1']
    #allocation5 [shape = 's32[2]{0}', space=sflag, size = 0x8, scoped, tag = 'scoped memory for tpu_custom_call.1']
    #allocation6 [shape = 's32[2]{0}', space=sflag, size = 0x8, scoped, tag = 'scoped memory for tpu_custom_call.1']
    #allocation7 [shape = 'u8[512]{0}', space=smem, size = 0x200, scoped, tag = 'input window, operand 2, single buffered']
    #allocation8 [shape = 's32[1]{0}', space=sflag, size = 0x4, scoped, tag = 'scoped memory for tpu_custom_call.1']
    #allocation9 [shape = 'u8[512]{0}', space=smem, size = 0x200, scoped, tag = 'input window, operand 3, single buffered']
    #allocation10 [shape = 'u8[512]{0}', space=smem, size = 0x200, scoped, tag = 'input window, operand 4, single buffered']
    #allocation11 [shape = 's32[1]{0}', space=sflag, size = 0x4, scoped, tag = 'scoped memory for tpu_custom_call.1']
    #allocation12 [shape = 'u8[8192]{0}', space=vmem, size = 0x2000, scoped, tag = 'output window, operand 0']
    %12 = vsyncpa [#allocation6], 0
    %13 = vsyncpa [#allocation8], 0
    %14 = vsyncpa [#allocation5], 0
    %15 = vsyncpa [#allocation11], 0
    %16 = vsyncpa [#allocation4], 0
    %s17 = scalar_lea.sflag [#allocation4], 1
    %18 = vsyncpa %s17, 0
    loop: start=0, step=1, limit=4
    $region2: #{tpu_custom_call.1} parent=1 // loop_pre_header
      _
    $region3: #{tpu_custom_call.1} parent=1 // loop_header
      %s20 = sphi 0, %s24
      %p21 = scmp.ge.s32.totalorder %s20, 4
      %s28 = sphi 0, %s28
      %s30 = sphi 0, %s28
      %s31 = sphi 0, %s30
      %s45 = sphi 0, %s31
      %s49 = sphi 0, %s49
      %s51 = sphi 0, %s49
      %s52 = sphi 0, %s51
      %s66 = sphi 0, %s52
      %s70 = sphi 0, %s70
      %s72 = sphi 0, %s70
      %s73 = sphi 0, %s72
      %s87 = sphi 0, %s73
      %s91 = sphi 0, %s91
      %s93 = sphi 0, %s91
      %s94 = sphi 0, %s93
      %s108 = sphi 0, %s94
      %s112 = sphi 0, %s112
      %s114 = sphi 0, %s112
      %s115 = sphi 0, %s114
      %s129 = sphi 0, %s115
      %s135 = sphi 0, %s137
      %s138 = sphi 0, %s135
      %s139 = sphi 0, %s138
      %s155 = sphi 0, %s139
      %s161 = sphi 0, %s163
      %s164 = sphi 0, %s161
      %s165 = sphi 0, %s164
      %s181 = sphi 0, %s165
    $region4: #{tpu_custom_call.1} parent=1 // loop_header_branch
      %23 = sbr.rel (%p21) target = $region8
    $region5: #{tpu_custom_call.1} parent=1 // loop_body
      %s25 = ssub.s32 %s20, 1
      %s26 = ssub.s32 %s20, 2
      %s27 = sadd.s32 %s20, 1
      %s29 = sadd.s32 %s28, 1
      %p32 = scmp.eq.s32.totalorder %s20, 1
      %p33 = scmp.ne.s32.totalorder %s28, %s30
      %p34 = scmp.eq.s32.totalorder %s20, 0
      %p35 = por %p33, %p34
      %p36 = scmp.ne.s32.totalorder %s28, %s30
      %p37 = scmp.eq.s32.totalorder %s25, 1
      %p38 = por %p36, %p37
      %p39 = scmp.ne.s32.totalorder %s30, %s31
      %p40 = scmp.eq.s32.totalorder %s25, 0
      %p41 = por %p39, %p40
      %p42 = scmp.ne.s32.totalorder %s30, %s31
      %p43 = scmp.eq.s32.totalorder %s26, 1
      %p44 = por %p42, %p43
      %p46 = scmp.ne.s32.totalorder %s31, %s45
      %p47 = scmp.eq.s32.totalorder %s26, 0
      %p48 = por %p46, %p47
      %s50 = sadd.s32 %s49, 1
      %p53 = scmp.eq.s32.totalorder %s20, 1
      %p54 = scmp.ne.s32.totalorder %s49, %s51
      %p55 = scmp.eq.s32.totalorder %s20, 0
      %p56 = por %p54, %p55
      %p57 = scmp.ne.s32.totalorder %s49, %s51
      %p58 = scmp.eq.s32.totalorder %s25, 1
      %p59 = por %p57, %p58
      %p60 = scmp.ne.s32.totalorder %s51, %s52
      %p61 = scmp.eq.s32.totalorder %s25, 0
      %p62 = por %p60, %p61
      %p63 = scmp.ne.s32.totalorder %s51, %s52
      %p64 = scmp.eq.s32.totalorder %s26, 1
      %p65 = por %p63, %p64
      %p67 = scmp.ne.s32.totalorder %s52, %s66
      %p68 = scmp.eq.s32.totalorder %s26, 0
      %p69 = por %p67, %p68
      %s71 = sadd.s32 %s70, 1
      %p74 = scmp.eq.s32.totalorder %s20, 1
      %p75 = scmp.ne.s32.totalorder %s70, %s72
      %p76 = scmp.eq.s32.totalorder %s20, 0
      %p77 = por %p75, %p76
      %p78 = scmp.ne.s32.totalorder %s70, %s72
      %p79 = scmp.eq.s32.totalorder %s25, 1
      %p80 = por %p78, %p79
      %p81 = scmp.ne.s32.totalorder %s72, %s73
      %p82 = scmp.eq.s32.totalorder %s25, 0
      %p83 = por %p81, %p82
      %p84 = scmp.ne.s32.totalorder %s72, %s73
      %p85 = scmp.eq.s32.totalorder %s26, 1
      %p86 = por %p84, %p85
      %p88 = scmp.ne.s32.totalorder %s73, %s87
      %p89 = scmp.eq.s32.totalorder %s26, 0
      %p90 = por %p88, %p89
      %s92 = sadd.s32 %s91, 1
      %p95 = scmp.eq.s32.totalorder %s20, 1
      %p96 = scmp.ne.s32.totalorder %s91, %s93
      %p97 = scmp.eq.s32.totalorder %s20, 0
      %p98 = por %p96, %p97
      %p99 = scmp.ne.s32.totalorder %s91, %s93
      %p100 = scmp.eq.s32.totalorder %s25, 1
      %p101 = por %p99, %p100
      %p102 = scmp.ne.s32.totalorder %s93, %s94
      %p103 = scmp.eq.s32.totalorder %s25, 0
      %p104 = por %p102, %p103
      %p105 = scmp.ne.s32.totalorder %s93, %s94
      %p106 = scmp.eq.s32.totalorder %s26, 1
      %p107 = por %p105, %p106
      %p109 = scmp.ne.s32.totalorder %s94, %s108
      %p110 = scmp.eq.s32.totalorder %s26, 0
      %p111 = por %p109, %p110
      %s113 = sadd.s32 %s112, 1
      %p116 = scmp.eq.s32.totalorder %s20, 1
      %p117 = scmp.ne.s32.totalorder %s112, %s114
      %p118 = scmp.eq.s32.totalorder %s20, 0
      %p119 = por %p117, %p118
      %p120 = scmp.ne.s32.totalorder %s112, %s114
      %p121 = scmp.eq.s32.totalorder %s25, 1
      %p122 = por %p120, %p121
      %p123 = scmp.ne.s32.totalorder %s114, %s115
      %p124 = scmp.eq.s32.totalorder %s25, 0
      %p125 = por %p123, %p124
      %p126 = scmp.ne.s32.totalorder %s114, %s115
      %p127 = scmp.eq.s32.totalorder %s26, 1
      %p128 = por %p126, %p127
      %p130 = scmp.ne.s32.totalorder %s115, %s129
      %p131 = scmp.eq.s32.totalorder %s26, 0
      %p132 = por %p130, %p131
      %s133 = ssub.s32 %s20, %s27
      %p134 = scmp.eq.s32.totalorder %s133, 0
      %s136 = sadd.s32 %s135, 1
      %s137 = scalar_select %p134, %s135, %s136
      %p140 = pneg %p134
      %p141 = scmp.eq.s32.totalorder %s20, 1
      %p142 = por %p140, %p141
      %p143 = scmp.ne.s32.totalorder %s135, %s138
      %p144 = scmp.eq.s32.totalorder %s20, 0
      %p145 = por %p143, %p144
      %p146 = scmp.ne.s32.totalorder %s135, %s138
      %p147 = scmp.eq.s32.totalorder %s25, 1
      %p148 = por %p146, %p147
      %p149 = scmp.ne.s32.totalorder %s138, %s139
      %p150 = scmp.eq.s32.totalorder %s25, 0
      %p151 = por %p149, %p150
      %p152 = scmp.ne.s32.totalorder %s138, %s139
      %p153 = scmp.eq.s32.totalorder %s26, 1
      %p154 = por %p152, %p153
      %p156 = scmp.ne.s32.totalorder %s139, %s155
      %p157 = scmp.eq.s32.totalorder %s26, 0
      %p158 = por %p156, %p157
      %s159 = ssub.s32 %s20, %s27
      %p160 = scmp.eq.s32.totalorder %s159, 0
      %s162 = sadd.s32 %s161, 1
      %s163 = scalar_select %p160, %s161, %s162
      %p166 = pneg %p160
      %p167 = scmp.eq.s32.totalorder %s20, 1
      %p168 = por %p166, %p167
      %p169 = scmp.ne.s32.totalorder %s161, %s164
      %p170 = scmp.eq.s32.totalorder %s20, 0
      %p171 = por %p169, %p170
      %p172 = scmp.ne.s32.totalorder %s161, %s164
      %p173 = scmp.eq.s32.totalorder %s25, 1
      %p174 = por %p172, %p173
      %p175 = scmp.ne.s32.totalorder %s164, %s165
      %p176 = scmp.eq.s32.totalorder %s25, 0
      %p177 = por %p175, %p176
      %p178 = scmp.ne.s32.totalorder %s164, %s165
      %p179 = scmp.eq.s32.totalorder %s26, 1
      %p180 = por %p178, %p179
      %p182 = scmp.ne.s32.totalorder %s165, %s181
      %p183 = scmp.eq.s32.totalorder %s26, 0
      %p184 = por %p182, %p183
      %p185 = scmp.le.s32.totalorder 1, %s20
      %p186 = scmp.lt.s32.totalorder %s20, 3
      %p187 = pnand %p185, %p186
      %p188 = pneg %p187
      // Predicated region
      $region9: #{tpu_custom_call.1} parent=5 // pred_check
        _
      $region10: #{tpu_custom_call.1} parent=5 // pred_check_branch
        %190 = sbr.rel (%p187) target = $region12
      $region11: #{tpu_custom_call.1} parent=5 // pred_region
        %s191 = ssub.s32 %s20, 1
        // Predicated region
        $region13: #{tpu_custom_call.1} parent=11 // pred_check
          %p192 = pneg %p41
        $region14: #{tpu_custom_call.1} parent=11 // pred_check_branch
          %194 = sbr.rel (%p192) target = $region16
        $region15: #{tpu_custom_call.1} parent=11 // pred_region
          %s196 = ssub.s32 16, 16
          %197 = vsyncadd [#allocation6], %s196
          %s199 = sshll.u32 %s0, 4
          %s200 = int_to_ptr.vmem [resolvable:$true] %s199
          %202 = dma.vmem_to_smem %s200, 16, [#allocation3], [#allocation6]
        $region16: #{tpu_custom_call.1} parent=11 // pred_fallthru
          _
        // Predicated region
        $region17: #{tpu_custom_call.1} parent=11 // pred_check
          %p203 = pneg %p62
        $region18: #{tpu_custom_call.1} parent=11 // pred_check_branch
          %205 = sbr.rel (%p203) target = $region20
        $region19: #{tpu_custom_call.1} parent=11 // pred_region
          _
        $region20: #{tpu_custom_call.1} parent=11 // pred_fallthru
          _
        // Predicated region
        $region21: #{tpu_custom_call.1} parent=11 // pred_check
          %p206 = pneg %p83
        $region22: #{tpu_custom_call.1} parent=11 // pred_check_branch
          %208 = sbr.rel (%p206) target = $region24
        $region23: #{tpu_custom_call.1} parent=11 // pred_region
          %s210 = ssub.s32 16, 16
          %211 = vsyncadd [#allocation8], %s210
          %s213 = sshll.u32 %s2, 4
          %s214 = int_to_ptr.vmem [resolvable:$true] %s213
          %216 = dma.vmem_to_smem %s214, 16, [#allocation7], [#allocation8]
        $region24: #{tpu_custom_call.1} parent=11 // pred_fallthru
          _
        // Predicated region
        $region25: #{tpu_custom_call.1} parent=11 // pred_check
          %p217 = pneg %p104
        $region26: #{tpu_custom_call.1} parent=11 // pred_check_branch
          %219 = sbr.rel (%p217) target = $region28
        $region27: #{tpu_custom_call.1} parent=11 // pred_region
          %s221 = ssub.s32 16, 16
          %222 = vsyncadd [#allocation5], %s221
          %225 = dma.hbm_to_smem %s3, 16, [#allocation9], [#allocation5]
        $region28: #{tpu_custom_call.1} parent=11 // pred_fallthru
          _
        // Predicated region
        $region29: #{tpu_custom_call.1} parent=11 // pred_check
          %p226 = pneg %p125
        $region30: #{tpu_custom_call.1} parent=11 // pred_check_branch
          %228 = sbr.rel (%p226) target = $region32
        $region31: #{tpu_custom_call.1} parent=11 // pred_region
          %s230 = ssub.s32 16, 16
          %231 = vsyncadd [#allocation11], %s230
          %234 = dma.hbm_to_smem %s4, 16, [#allocation10], [#allocation11]
        $region32: #{tpu_custom_call.1} parent=11 // pred_fallthru
          _
      $region12: #{tpu_custom_call.1} parent=5 // pred_fallthru
        _
      %p235 = scmp.lt.s32.totalorder %s20, 2
      // Predicated region
      $region33: #{tpu_custom_call.1} parent=5 // pred_check
        %p236 = pneg %p235
      $region34: #{tpu_custom_call.1} parent=5 // pred_check_branch
        %238 = sbr.rel (%p236) target = $region36
      $region35: #{tpu_custom_call.1} parent=5 // pred_region
        // Predicated region
        $region37: #{tpu_custom_call.1} parent=35 // pred_check
          %p239 = pneg %p145
        $region38: #{tpu_custom_call.1} parent=35 // pred_check_branch
          %241 = sbr.rel (%p239) target = $region40
        $region39: #{tpu_custom_call.1} parent=35 // pred_region
          %p242 = scmp.lt.s32.totalorder %s20, 1
          %s243 = scalar_select %p242, %s20, 1
          %s244 = smul.addr %s243, 2
          %s245 = smul.addr %s244, 4
          %s246 = scalar_lea.vmem %s5, %s245
        $region40: #{tpu_custom_call.1} parent=35 // pred_fallthru
          _
      $region36: #{tpu_custom_call.1} parent=5 // pred_fallthru
        _
      %p247 = scmp.le.s32.totalorder 1, %s20
      %p248 = scmp.lt.s32.totalorder %s20, 3
      %p249 = pnand %p247, %p248
      %p250 = pneg %p249
      // Predicated region
      $region41: #{tpu_custom_call.1} parent=5 // pred_check
        _
      $region42: #{tpu_custom_call.1} parent=5 // pred_check_branch
        %252 = sbr.rel (%p249) target = $region44
      $region43: #{tpu_custom_call.1} parent=5 // pred_region
        %s253 = ssub.s32 %s20, 1
        // Predicated region
        $region45: #{tpu_custom_call.1} parent=43 // pred_check
          %p254 = pneg %p41
        $region46: #{tpu_custom_call.1} parent=43 // pred_check_branch
          %256 = sbr.rel (%p254) target = $region48
        $region47: #{tpu_custom_call.1} parent=43 // pred_region
          %257 = dma.done [#allocation6], 16
        $region48: #{tpu_custom_call.1} parent=43 // pred_fallthru
          _
        // Predicated region
        $region49: #{tpu_custom_call.1} parent=43 // pred_check
          %p258 = pneg %p83
        $region50: #{tpu_custom_call.1} parent=43 // pred_check_branch
          %260 = sbr.rel (%p258) target = $region52
        $region51: #{tpu_custom_call.1} parent=43 // pred_region
          %261 = dma.done [#allocation8], 16
        $region52: #{tpu_custom_call.1} parent=43 // pred_fallthru
          _
        // Predicated region
        $region53: #{tpu_custom_call.1} parent=43 // pred_check
          %p262 = pneg %p104
        $region54: #{tpu_custom_call.1} parent=43 // pred_check_branch
          %264 = sbr.rel (%p262) target = $region56
        $region55: #{tpu_custom_call.1} parent=43 // pred_region
          %265 = dma.done [#allocation5], 16
        $region56: #{tpu_custom_call.1} parent=43 // pred_fallthru
          _
        // Predicated region
        $region57: #{tpu_custom_call.1} parent=43 // pred_check
          %p266 = pneg %p125
        $region58: #{tpu_custom_call.1} parent=43 // pred_check_branch
          %268 = sbr.rel (%p266) target = $region60
        $region59: #{tpu_custom_call.1} parent=43 // pred_region
          %269 = dma.done [#allocation11], 16
        $region60: #{tpu_custom_call.1} parent=43 // pred_fallthru
          _
        %270 = sfence
        %p271 = pneg %p41
        %p272 = pneg %p38
        %p273 = pneg %p62
        %p274 = pneg %p59
        %p275 = pneg %p83
        %p276 = pneg %p80
        %p277 = pneg %p104
        %p278 = pneg %p101
        %p279 = pneg %p125
        %p280 = pneg %p122
        %p281 = scmp.lt.s32.totalorder %s25, 1
        %s282 = scalar_select %p281, %s25, 1
        %s283 = smul.addr %s282, 2
        %s284 = smul.addr %s283, 4
        %s285 = scalar_lea.vmem %s5, %s284
        %p286 = pneg %p151
        %p287 = pneg %p148
        %p288 = pneg %p177
        %p289 = pneg %p174
        %s290 = sand.u32 %s164, 1
        %s291 = scalar_lea.sflag [#allocation4], %s290
        %s292 = sand.u32 %s164, 1
        %s293 = smul.addr %s292, 8
        %s294 = scalar_lea.vmem [#allocation12], %s293
        %p295 = scmp.lt.s32.totalorder %s25, 1
        %s296 = scalar_select %p295, %s25, 1
        %s297 = smul.addr %s296, 2
        %s298 = smul.addr %s297, 4
        %s299 = scalar_lea.vmem %s5, %s298
        %v300 = vld [vmem:[%s299] sm:$0xff]
        %vm301 = vcmask 125952
        %v302 = vsel %vm301, %v300, 0.0
        %303 = vadd.xlane.f32.xlu0 %v302
        %v304 = vpop.xlane.xlu0 %303
        %v305 = vrcp.pop 16.0
        %v306 = vmul.f32 %v304, %v305
        %v307 = vsel %vm301, %v300, -inf
        %308 = vmax.xlane.f32.xlu0 %v307
        %v309 = vpop.xlane.xlu0 %308
        %v310 = vrot.slane %v302, 4
        %v311 = vadd.f32 %v302, %v310
        %v312 = vrot.slane %v311, 2
        %v313 = vadd.f32 %v311, %v312
        %v314 = vrot.slane %v313, 1
        %v315 = vadd.f32 %v313, %v314
        %v316 = vrcp.pop 4.0
        %v317 = vmul.f32 %v315, %v316
        %v318 = vrot.slane %v307, 4
        %v319 = vmax.f32 %v307, %v318
        %v320 = vrot.slane %v319, 2
        %v321 = vmax.f32 %v319, %v320
        %v322 = vrot.slane %v321, 1
        %v323 = vmax.f32 %v321, %v322
        %325 = vrot.lane.b32.xlu0 %v300, 112
        %v326 = vpop.permute.xlu0 %325
        %v328 = vsel %vm301, %v326, 0.0
        %329 = vadd.xlane.f32.xlu0 %v328
        %v330 = vpop.xlane.xlu0 %329
        %v331 = vmul.f32 %v330, %v305
        %vm332 = vcmask 257152
        %v333 = vsel %vm332, %v300, -inf
        %334 = vmax.xlane.f32.xlu0 %v333
        %v335 = vpop.xlane.xlu0 %334
        %v336 = vsel %vm332, %v300, 0.0
        %v337 = vrot.slane %v336, 4
        %v338 = vadd.f32 %v336, %v337
        %v339 = vrot.slane %v338, 2
        %v340 = vadd.f32 %v338, %v339
        %v341 = vrot.slane %v340, 1
        %v342 = vadd.f32 %v340, %v341
        %v343 = vmul.f32 %v342, %v316
        %v344 = vrot.slane %v333, 4
        %v345 = vmax.f32 %v333, %v344
        %v346 = vrot.slane %v345, 2
        %v347 = vmax.f32 %v345, %v346
        %v348 = vrot.slane %v347, 1
        %v349 = vmax.f32 %v347, %v348
        %v350 = vadd.f32 %v300, %v326
        %v351 = vmax.f32 %v300, %v326
        %352 = vrot.lane.b32.xlu0 %v300, 96
        %v353 = vpop.permute.xlu0 %352
        %v355 = vsel %vm301, %v353, 0.0
        %356 = vadd.xlane.f32.xlu0 %v355
        %v357 = vpop.xlane.xlu0 %356
        %v358 = vmul.f32 %v357, %v305
        %vm359 = vcmask 388352
        %v360 = vsel %vm359, %v300, -inf
        %361 = vmax.xlane.f32.xlu0 %v360
        %v362 = vpop.xlane.xlu0 %361
        %v363 = vsel %vm359, %v300, 0.0
        %v364 = vrot.slane %v363, 4
        %v365 = vadd.f32 %v363, %v364
        %v366 = vrot.slane %v365, 2
        %v367 = vadd.f32 %v365, %v366
        %v368 = vrot.slane %v367, 1
        %v369 = vadd.f32 %v367, %v368
        %v370 = vmul.f32 %v369, %v316
        %v371 = vrot.slane %v360, 4
        %v372 = vmax.f32 %v360, %v371
        %v373 = vrot.slane %v372, 2
        %v374 = vmax.f32 %v372, %v373
        %v375 = vrot.slane %v374, 1
        %v376 = vmax.f32 %v374, %v375
        %v377 = vadd.f32 %v350, %v353
        %v378 = vmax.f32 %v351, %v353
        %379 = vrot.lane.b32.xlu0 %v300, 80
        %v380 = vpop.permute.xlu0 %379
        %v382 = vsel %vm301, %v380, 0.0
        %383 = vadd.xlane.f32.xlu0 %v382
        %v384 = vpop.xlane.xlu0 %383
        %v385 = vmul.f32 %v384, %v305
        %vm386 = vcmask 519552
        %v387 = vsel %vm386, %v300, -inf
        %388 = vmax.xlane.f32.xlu0 %v387
        %v389 = vpop.xlane.xlu0 %388
        %v390 = vsel %vm386, %v300, 0.0
        %v391 = vrot.slane %v390, 4
        %v392 = vadd.f32 %v390, %v391
        %v393 = vrot.slane %v392, 2
        %v394 = vadd.f32 %v392, %v393
        %v395 = vrot.slane %v394, 1
        %v396 = vadd.f32 %v394, %v395
        %v397 = vmul.f32 %v396, %v316
        %v398 = vrot.slane %v387, 4
        %v399 = vmax.f32 %v387, %v398
        %v400 = vrot.slane %v399, 2
        %v401 = vmax.f32 %v399, %v400
        %v402 = vrot.slane %v401, 1
        %v403 = vmax.f32 %v401, %v402
        %v404 = vadd.f32 %v377, %v380
        %v405 = vmax.f32 %v378, %v380
        %406 = vrot.lane.b32.xlu0 %v300, 64
        %v407 = vpop.permute.xlu0 %406
        %v409 = vsel %vm301, %v407, 0.0
        %410 = vadd.xlane.f32.xlu0 %v409
        %v411 = vpop.xlane.xlu0 %410
        %v412 = vmul.f32 %v411, %v305
        %vm413 = vcmask 650752
        %v414 = vsel %vm413, %v300, -inf
        %415 = vmax.xlane.f32.xlu0 %v414
        %v416 = vpop.xlane.xlu0 %415
        %v417 = vsel %vm413, %v300, 0.0
        %v418 = vrot.slane %v417, 4
        %v419 = vadd.f32 %v417, %v418
        %v420 = vrot.slane %v419, 2
        %v421 = vadd.f32 %v419, %v420
        %v422 = vrot.slane %v421, 1
        %v423 = vadd.f32 %v421, %v422
        %v424 = vmul.f32 %v423, %v316
        %v425 = vrot.slane %v414, 4
        %v426 = vmax.f32 %v414, %v425
        %v427 = vrot.slane %v426, 2
        %v428 = vmax.f32 %v426, %v427
        %v429 = vrot.slane %v428, 1
        %v430 = vmax.f32 %v428, %v429
        %v431 = vadd.f32 %v404, %v407
        %v432 = vmax.f32 %v405, %v407
        %433 = vrot.lane.b32.xlu0 %v300, 48
        %v434 = vpop.permute.xlu0 %433
        %v436 = vsel %vm301, %v434, 0.0
        %437 = vadd.xlane.f32.xlu0 %v436
        %v438 = vpop.xlane.xlu0 %437
        %v439 = vmul.f32 %v438, %v305
        %vm440 = vcmask 781952
        %v441 = vsel %vm440, %v300, -inf
        %442 = vmax.xlane.f32.xlu0 %v441
        %v443 = vpop.xlane.xlu0 %442
        %v444 = vsel %vm440, %v300, 0.0
        %v445 = vrot.slane %v444, 4
        %v446 = vadd.f32 %v444, %v445
        %v447 = vrot.slane %v446, 2
        %v448 = vadd.f32 %v446, %v447
        %v449 = vrot.slane %v448, 1
        %v450 = vadd.f32 %v448, %v449
        %v451 = vmul.f32 %v450, %v316
        %v452 = vrot.slane %v441, 4
        %v453 = vmax.f32 %v441, %v452
        %v454 = vrot.slane %v453, 2
        %v455 = vmax.f32 %v453, %v454
        %v456 = vrot.slane %v455, 1
        %v457 = vmax.f32 %v455, %v456
        %v458 = vadd.f32 %v431, %v434
        %v459 = vmax.f32 %v432, %v434
        %460 = vrot.lane.b32.xlu0 %v300, 32
        %v461 = vpop.permute.xlu0 %460
        %v463 = vsel %vm301, %v461, 0.0
        %464 = vadd.xlane.f32.xlu0 %v463
        %v465 = vpop.xlane.xlu0 %464
        %v466 = vmul.f32 %v465, %v305
        %vm467 = vcmask 913152
        %v468 = vsel %vm467, %v300, -inf
        %469 = vmax.xlane.f32.xlu0 %v468
        %v470 = vpop.xlane.xlu0 %469
        %v471 = vsel %vm467, %v300, 0.0
        %v472 = vrot.slane %v471, 4
        %v473 = vadd.f32 %v471, %v472
        %v474 = vrot.slane %v473, 2
        %v475 = vadd.f32 %v473, %v474
        %v476 = vrot.slane %v475, 1
        %v477 = vadd.f32 %v475, %v476
        %v478 = vmul.f32 %v477, %v316
        %v479 = vrot.slane %v468, 4
        %v480 = vmax.f32 %v468, %v479
        %v481 = vrot.slane %v480, 2
        %v482 = vmax.f32 %v480, %v481
        %v483 = vrot.slane %v482, 1
        %v484 = vmax.f32 %v482, %v483
        %v485 = vadd.f32 %v458, %v461
        %v486 = vmax.f32 %v459, %v461
        %487 = vrot.lane.b32.xlu0 %v300, 16
        %v488 = vpop.permute.xlu0 %487
        %v490 = vsel %vm301, %v488, 0.0
        %491 = vadd.xlane.f32.xlu0 %v490
        %v492 = vpop.xlane.xlu0 %491
        %v493 = vmul.f32 %v492, %v305
        %vm494 = vcmask 1044352
        %v495 = vsel %vm494, %v300, -inf
        %496 = vmax.xlane.f32.xlu0 %v495
        %v497 = vpop.xlane.xlu0 %496
        %v498 = vsel %vm494, %v300, 0.0
        %v499 = vrot.slane %v498, 4
        %v500 = vadd.f32 %v498, %v499
        %v501 = vrot.slane %v500, 2
        %v502 = vadd.f32 %v500, %v501
        %v503 = vrot.slane %v502, 1
        %v504 = vadd.f32 %v502, %v503
        %v505 = vmul.f32 %v504, %v316
        %v506 = vrot.slane %v495, 4
        %v507 = vmax.f32 %v495, %v506
        %v508 = vrot.slane %v507, 2
        %v509 = vmax.f32 %v507, %v508
        %v510 = vrot.slane %v509, 1
        %v511 = vmax.f32 %v509, %v510
        %v512 = vadd.f32 %v485, %v488
        %v513 = vmax.f32 %v486, %v488
        %v514 = vcombine.high %v300, %v300
        %v516 = vsel %vm301, %v514, 0.0
        %517 = vadd.xlane.f32.xlu0 %v516
        %v518 = vpop.xlane.xlu0 %517
        %v519 = vmul.f32 %v518, %v305
        %v520 = vsel %vm301, %v514, -inf
        %521 = vmax.xlane.f32.xlu0 %v520
        %v522 = vpop.xlane.xlu0 %521
        %v523 = vrot.slane %v516, 4
        %v524 = vadd.f32 %v516, %v523
        %v525 = vrot.slane %v524, 2
        %v526 = vadd.f32 %v524, %v525
        %v527 = vrot.slane %v526, 1
        %v528 = vadd.f32 %v526, %v527
        %v529 = vmul.f32 %v528, %v316
        %v530 = vrot.slane %v520, 4
        %v531 = vmax.f32 %v520, %v530
        %v532 = vrot.slane %v531, 2
        %v533 = vmax.f32 %v531, %v532
        %v534 = vrot.slane %v533, 1
        %v535 = vmax.f32 %v533, %v534
        %v536 = vrot.slane %v300, 4
        %v538 = vadd.f32 %v512, %v536
        %v539 = vmax.f32 %v513, %v536
        %540 = vrot.lane.b32.xlu0 %v514, 112
        %v541 = vpop.permute.xlu0 %540
        %v543 = vsel %vm301, %v541, 0.0
        %544 = vadd.xlane.f32.xlu0 %v543
        %v545 = vpop.xlane.xlu0 %544
        %v546 = vmul.f32 %v545, %v305
        %v547 = vsel %vm301, %v541, -inf
        %548 = vmax.xlane.f32.xlu0 %v547
        %v549 = vpop.xlane.xlu0 %548
        %v550 = vrot.slane %v543, 4
        %v551 = vadd.f32 %v543, %v550
        %v552 = vrot.slane %v551, 2
        %v553 = vadd.f32 %v551, %v552
        %v554 = vrot.slane %v553, 1
        %v555 = vadd.f32 %v553, %v554
        %v556 = vmul.f32 %v555, %v316
        %v557 = vrot.slane %v547, 4
        %v558 = vmax.f32 %v547, %v557
        %v559 = vrot.slane %v558, 2
        %v560 = vmax.f32 %v558, %v559
        %v561 = vrot.slane %v560, 1
        %v562 = vmax.f32 %v560, %v561
        %v563 = vrot.slane %v326, 4
        %v565 = vadd.f32 %v538, %v563
        %v566 = vmax.f32 %v539, %v563
        %567 = vrot.lane.b32.xlu0 %v514, 96
        %v568 = vpop.permute.xlu0 %567
        %v570 = vsel %vm301, %v568, 0.0
        %571 = vadd.xlane.f32.xlu0 %v570
        %v572 = vpop.xlane.xlu0 %571
        %v573 = vmul.f32 %v572, %v305
        %v574 = vsel %vm301, %v568, -inf
        %575 = vmax.xlane.f32.xlu0 %v574
        %v576 = vpop.xlane.xlu0 %575
        %v577 = vrot.slane %v570, 4
        %v578 = vadd.f32 %v570, %v577
        %v579 = vrot.slane %v578, 2
        %v580 = vadd.f32 %v578, %v579
        %v581 = vrot.slane %v580, 1
        %v582 = vadd.f32 %v580, %v581
        %v583 = vmul.f32 %v582, %v316
        %v584 = vrot.slane %v574, 4
        %v585 = vmax.f32 %v574, %v584
        %v586 = vrot.slane %v585, 2
        %v587 = vmax.f32 %v585, %v586
        %v588 = vrot.slane %v587, 1
        %v589 = vmax.f32 %v587, %v588
        %v590 = vrot.slane %v353, 4
        %v592 = vadd.f32 %v565, %v590
        %v593 = vmax.f32 %v566, %v590
        %594 = vrot.lane.b32.xlu0 %v514, 80
        %v595 = vpop.permute.xlu0 %594
        %v597 = vsel %vm301, %v595, 0.0
        %598 = vadd.xlane.f32.xlu0 %v597
        %v599 = vpop.xlane.xlu0 %598
        %v600 = vmul.f32 %v599, %v305
        %v601 = vsel %vm301, %v595, -inf
        %602 = vmax.xlane.f32.xlu0 %v601
        %v603 = vpop.xlane.xlu0 %602
        %v604 = vrot.slane %v597, 4
        %v605 = vadd.f32 %v597, %v604
        %v606 = vrot.slane %v605, 2
        %v607 = vadd.f32 %v605, %v606
        %v608 = vrot.slane %v607, 1
        %v609 = vadd.f32 %v607, %v608
        %v610 = vmul.f32 %v609, %v316
        %v611 = vrot.slane %v601, 4
        %v612 = vmax.f32 %v601, %v611
        %v613 = vrot.slane %v612, 2
        %v614 = vmax.f32 %v612, %v613
        %v615 = vrot.slane %v614, 1
        %v616 = vmax.f32 %v614, %v615
        %v617 = vrot.slane %v380, 4
        %v619 = vadd.f32 %v592, %v617
        %v620 = vmax.f32 %v593, %v617
        %621 = vrot.lane.b32.xlu0 %v514, 64
        %v622 = vpop.permute.xlu0 %621
        %v624 = vsel %vm301, %v622, 0.0
        %625 = vadd.xlane.f32.xlu0 %v624
        %v626 = vpop.xlane.xlu0 %625
        %v627 = vmul.f32 %v626, %v305
        %v628 = vsel %vm301, %v622, -inf
        %629 = vmax.xlane.f32.xlu0 %v628
        %v630 = vpop.xlane.xlu0 %629
        %v631 = vrot.slane %v624, 4
        %v632 = vadd.f32 %v624, %v631
        %v633 = vrot.slane %v632, 2
        %v634 = vadd.f32 %v632, %v633
        %v635 = vrot.slane %v634, 1
        %v636 = vadd.f32 %v634, %v635
        %v637 = vmul.f32 %v636, %v316
        %v638 = vrot.slane %v628, 4
        %v639 = vmax.f32 %v628, %v638
        %v640 = vrot.slane %v639, 2
        %v641 = vmax.f32 %v639, %v640
        %v642 = vrot.slane %v641, 1
        %v643 = vmax.f32 %v641, %v642
        %v644 = vrot.slane %v407, 4
        %v646 = vadd.f32 %v619, %v644
        %v647 = vmax.f32 %v620, %v644
        %648 = vrot.lane.b32.xlu0 %v514, 48
        %v649 = vpop.permute.xlu0 %648
        %v651 = vsel %vm301, %v649, 0.0
        %652 = vadd.xlane.f32.xlu0 %v651
        %v653 = vpop.xlane.xlu0 %652
        %v654 = vmul.f32 %v653, %v305
        %v655 = vsel %vm301, %v649, -inf
        %656 = vmax.xlane.f32.xlu0 %v655
        %v657 = vpop.xlane.xlu0 %656
        %v658 = vrot.slane %v651, 4
        %v659 = vadd.f32 %v651, %v658
        %v660 = vrot.slane %v659, 2
        %v661 = vadd.f32 %v659, %v660
        %v662 = vrot.slane %v661, 1
        %v663 = vadd.f32 %v661, %v662
        %v664 = vmul.f32 %v663, %v316
        %v665 = vrot.slane %v655, 4
        %v666 = vmax.f32 %v655, %v665
        %v667 = vrot.slane %v666, 2
        %v668 = vmax.f32 %v666, %v667
        %v669 = vrot.slane %v668, 1
        %v670 = vmax.f32 %v668, %v669
        %v671 = vrot.slane %v434, 4
        %v673 = vadd.f32 %v646, %v671
        %v674 = vmax.f32 %v647, %v671
        %675 = vrot.lane.b32.xlu0 %v514, 32
        %v676 = vpop.permute.xlu0 %675
        %v678 = vsel %vm301, %v676, 0.0
        %679 = vadd.xlane.f32.xlu0 %v678
        %v680 = vpop.xlane.xlu0 %679
        %v681 = vmul.f32 %v680, %v305
        %v682 = vsel %vm301, %v676, -inf
        %683 = vmax.xlane.f32.xlu0 %v682
        %v684 = vpop.xlane.xlu0 %683
        %v685 = vrot.slane %v678, 4
        %v686 = vadd.f32 %v678, %v685
        %v687 = vrot.slane %v686, 2
        %v688 = vadd.f32 %v686, %v687
        %v689 = vrot.slane %v688, 1
        %v690 = vadd.f32 %v688, %v689
        %v691 = vmul.f32 %v690, %v316
        %v692 = vrot.slane %v682, 4
        %v693 = vmax.f32 %v682, %v692
        %v694 = vrot.slane %v693, 2
        %v695 = vmax.f32 %v693, %v694
        %v696 = vrot.slane %v695, 1
        %v697 = vmax.f32 %v695, %v696
        %v698 = vrot.slane %v461, 4
        %v700 = vadd.f32 %v673, %v698
        %v701 = vmax.f32 %v674, %v698
        %702 = vrot.lane.b32.xlu0 %v514, 16
        %v703 = vpop.permute.xlu0 %702
        %v705 = vsel %vm301, %v703, 0.0
        %706 = vadd.xlane.f32.xlu0 %v705
        %v707 = vpop.xlane.xlu0 %706
        %v708 = vmul.f32 %v707, %v305
        %v709 = vsel %vm301, %v703, -inf
        %710 = vmax.xlane.f32.xlu0 %v709
        %v711 = vpop.xlane.xlu0 %710
        %v712 = vrot.slane %v705, 4
        %v713 = vadd.f32 %v705, %v712
        %v714 = vrot.slane %v713, 2
        %v715 = vadd.f32 %v713, %v714
        %v716 = vrot.slane %v715, 1
        %v717 = vadd.f32 %v715, %v716
        %v718 = vmul.f32 %v717, %v316
        %v719 = vrot.slane %v709, 4
        %v720 = vmax.f32 %v709, %v719
        %v721 = vrot.slane %v720, 2
        %v722 = vmax.f32 %v720, %v721
        %v723 = vrot.slane %v722, 1
        %v724 = vmax.f32 %v722, %v723
        %v725 = vrot.slane %v488, 4
        %v727 = vadd.f32 %v700, %v725
        %v728 = vmax.f32 %v701, %v725
        %vm729 = vcmask 7168
        %v730 = vsel %vm729, %v306, %v331
        %vm731 = vcmask 15360
        %v732 = vsel %vm731, %v730, %v358
        %vm733 = vcmask 23552
        %v734 = vsel %vm733, %v732, %v385
        %vm735 = vcmask 31744
        %v736 = vsel %vm735, %v734, %v412
        %vm737 = vcmask 39936
        %v738 = vsel %vm737, %v736, %v439
        %vm739 = vcmask 48128
        %v740 = vsel %vm739, %v738, %v466
        %vm741 = vcmask 56320
        %v742 = vsel %vm741, %v740, %v493
        %vm743 = vcmask 64512
        %v744 = vsel %vm743, %v742, %v519
        %vm745 = vcmask 72704
        %v746 = vsel %vm745, %v744, %v546
        %vm747 = vcmask 80896
        %v748 = vsel %vm747, %v746, %v573
        %vm749 = vcmask 89088
        %v750 = vsel %vm749, %v748, %v600
        %vm751 = vcmask 97280
        %v752 = vsel %vm751, %v750, %v627
        %vm753 = vcmask 105472
        %v754 = vsel %vm753, %v752, %v654
        %vm755 = vcmask 113664
        %v756 = vsel %vm755, %v754, %v681
        %vm757 = vcmask 121856
        %v758 = vsel %vm757, %v756, %v708
        %v759 = vsel %vm729, %v309, %v335
        %v760 = vsel %vm731, %v759, %v362
        %v761 = vsel %vm733, %v760, %v389
        %v762 = vsel %vm735, %v761, %v416
        %v763 = vsel %vm737, %v762, %v443
        %v764 = vsel %vm739, %v763, %v470
        %v765 = vsel %vm741, %v764, %v497
        %v766 = vsel %vm743, %v765, %v522
        %v767 = vsel %vm745, %v766, %v549
        %v768 = vsel %vm747, %v767, %v576
        %v769 = vsel %vm749, %v768, %v603
        %v770 = vsel %vm751, %v769, %v630
        %v771 = vsel %vm753, %v770, %v657
        %v772 = vsel %vm755, %v771, %v684
        %v773 = vsel %vm757, %v772, %v711
        %775 = vrot.lane.b32.xlu0 %v343, 112
        %v776 = vpop.permute.xlu0 %775
        %779 = vrot.lane.b32.xlu0 %v370, 96
        %v780 = vpop.permute.xlu0 %779
        %783 = vrot.lane.b32.xlu0 %v397, 80
        %v784 = vpop.permute.xlu0 %783
        %787 = vrot.lane.b32.xlu0 %v424, 64
        %v788 = vpop.permute.xlu0 %787
        %791 = vrot.lane.b32.xlu0 %v451, 48
        %v792 = vpop.permute.xlu0 %791
        %795 = vrot.lane.b32.xlu0 %v478, 32
        %v796 = vpop.permute.xlu0 %795
        %799 = vrot.lane.b32.xlu0 %v505, 16
        %v800 = vpop.permute.xlu0 %799
        %vm802 = vcmask 1040384
        %v803 = vsel %vm802, %v317, %v776
        %vm804 = vcmask 1041408
        %v805 = vsel %vm804, %v803, %v780
        %vm806 = vcmask 1042432
        %v807 = vsel %vm806, %v805, %v784
        %vm808 = vcmask 1043456
        %v809 = vsel %vm808, %v807, %v788
        %vm810 = vcmask 1044480
        %v811 = vsel %vm810, %v809, %v792
        %vm812 = vcmask 1045504
        %v813 = vsel %vm812, %v811, %v796
        %vm814 = vcmask 1046528
        %v815 = vsel %vm814, %v813, %v800
        %v816 = vsel %vm802, %v529, %v556
        %v817 = vsel %vm804, %v816, %v583
        %v818 = vsel %vm806, %v817, %v610
        %v819 = vsel %vm808, %v818, %v637
        %v820 = vsel %vm810, %v819, %v664
        %v821 = vsel %vm812, %v820, %v691
        %v822 = vsel %vm814, %v821, %v718
        %824 = vrot.lane.b32.xlu0 %v349, 112
        %v825 = vpop.permute.xlu0 %824
        %828 = vrot.lane.b32.xlu0 %v376, 96
        %v829 = vpop.permute.xlu0 %828
        %832 = vrot.lane.b32.xlu0 %v403, 80
        %v833 = vpop.permute.xlu0 %832
        %836 = vrot.lane.b32.xlu0 %v430, 64
        %v837 = vpop.permute.xlu0 %836
        %840 = vrot.lane.b32.xlu0 %v457, 48
        %v841 = vpop.permute.xlu0 %840
        %844 = vrot.lane.b32.xlu0 %v484, 32
        %v845 = vpop.permute.xlu0 %844
        %848 = vrot.lane.b32.xlu0 %v511, 16
        %v849 = vpop.permute.xlu0 %848
        %v851 = vsel %vm802, %v323, %v825
        %v852 = vsel %vm804, %v851, %v829
        %v853 = vsel %vm806, %v852, %v833
        %v854 = vsel %vm808, %v853, %v837
        %v855 = vsel %vm810, %v854, %v841
        %v856 = vsel %vm812, %v855, %v845
        %v857 = vsel %vm814, %v856, %v849
        %v858 = vsel %vm802, %v535, %v562
        %v859 = vsel %vm804, %v858, %v589
        %v860 = vsel %vm806, %v859, %v616
        %v861 = vsel %vm808, %v860, %v643
        %v862 = vsel %vm810, %v861, %v670
        %v863 = vsel %vm812, %v862, %v697
        %v864 = vsel %vm814, %v863, %v724
        %v865 = vmul.f32 %v727, 0.0625
        %v866 = vsel %vm808, %v300, 0.0
        %v867 = vsel %vm808, %v514, 0.0
        %v868 = vadd.f32 %v866, %v867
        %869 = vadd.xlane.f32.xlu0 %v868
        %v870 = vpop.xlane.xlu0 %869
        %v871 = vrcp.pop 256.0
        %v872 = vmul.f32 %v870, %v871
        %s873 = sld [smem:[#allocation2]]
        %v874 = vstv %s873
        %v875 = vmul.f32 %v874, %v872
        %v876 = vadd.f32 %v875, 0.0
        %v877 = vxor.u32 %v876, 2147483648
        %v878 = vmul.f32 %v877, 1.442695
        %v879 = vpow.pop %v878
        %v880 = vadd.f32 %v879, 1.0
        %v881 = vrcp.pop %v880
        %v882 = vmul.f32 1.0, %v881
        %v885 = vrot.slane %v815, 7
        %v886 = vrot.slane %v822, 7
        %v887 = vsel %vm802, %v885, %v886
        %v890 = vsel %vm802, 0.0, %v885
        %v891 = vrot.slane %v815, 1
        %v892 = vrot.slane %v822, 1
        %v893 = vsel %vm814, %v891, %v892
        %v896 = vsel %vm814, %v892, 0.0
        %v899 = vrot.slane %v857, 7
        %v900 = vrot.slane %v864, 7
        %v901 = vsel %vm802, %v899, %v900
        %v904 = vsel %vm802, 0.0, %v899
        %v905 = vrot.slane %v857, 1
        %v906 = vrot.slane %v864, 1
        %v907 = vsel %vm814, %v905, %v906
        %v910 = vsel %vm814, %v906, 0.0
        %s911 = sld [smem:[#allocation7]]
        %913 = vrot.lane.b32.xlu0 %v890, 1
        %v914 = vpop.permute.xlu0 %913
        %915 = vrot.lane.b32.xlu0 %v887, 1
        %v916 = vpop.permute.xlu0 %915
        %v919 = vsel %vm729, 0.0, %v914
        %v920 = vsel %vm729, 0.0, %v916
        %v921 = vstv %s911
        %v922 = vmul.f32 %v921, %v919
        %v923 = vmul.f32 %v921, %v920
        %v924 = vadd.f32 %v922, 0.0
        %v925 = vadd.f32 %v923, 0.0
        %s926 = sld [smem:[#allocation7 + $0x9]]
        %928 = vrot.lane.b32.xlu0 %v904, 1
        %v929 = vpop.permute.xlu0 %928
        %930 = vrot.lane.b32.xlu0 %v901, 1
        %v931 = vpop.permute.xlu0 %930
        %v934 = vsel %vm729, 0.0, %v929
        %v935 = vsel %vm729, 0.0, %v931
        %v936 = vstv %s926
        %v937 = vmul.f32 %v936, %v934
        %v938 = vmul.f32 %v936, %v935
        %v939 = vadd.f32 %v937, 0.0
        %v940 = vadd.f32 %v938, 0.0
        %s941 = sld [smem:[#allocation7 + $0x1]]
        %v942 = vstv %s941
        %v943 = vmul.f32 %v942, %v890
        %v944 = vmul.f32 %v942, %v887
        %v945 = vadd.f32 %v924, %v943
        %v946 = vadd.f32 %v925, %v944
        %s947 = sld [smem:[#allocation7 + $0xa]]
        %v948 = vstv %s947
        %v949 = vmul.f32 %v948, %v904
        %v950 = vmul.f32 %v948, %v901
        %v951 = vadd.f32 %v939, %v949
        %v952 = vadd.f32 %v940, %v950
        %s953 = sld [smem:[#allocation7 + $0x2]]
        %954 = vrot.lane.b32.xlu0 %v890, 127
        %v955 = vpop.permute.xlu0 %954
        %956 = vrot.lane.b32.xlu0 %v887, 127
        %v957 = vpop.permute.xlu0 %956
        %v960 = vsel %vm757, %v955, 0.0
        %v961 = vsel %vm757, %v957, 0.0
        %v962 = vstv %s953
        %v963 = vmul.f32 %v962, %v960
        %v964 = vmul.f32 %v962, %v961
        %v965 = vadd.f32 %v945, %v963
        %v966 = vadd.f32 %v946, %v964
        %s967 = sld [smem:[#allocation7 + $0xb]]
        %968 = vrot.lane.b32.xlu0 %v904, 127
        %v969 = vpop.permute.xlu0 %968
        %970 = vrot.lane.b32.xlu0 %v901, 127
        %v971 = vpop.permute.xlu0 %970
        %v974 = vsel %vm757, %v969, 0.0
        %v975 = vsel %vm757, %v971, 0.0
        %v976 = vstv %s967
        %v977 = vmul.f32 %v976, %v974
        %v978 = vmul.f32 %v976, %v975
        %v979 = vadd.f32 %v951, %v977
        %v980 = vadd.f32 %v952, %v978
        %s981 = sld [smem:[#allocation7 + $0x3]]
        %982 = vrot.lane.b32.xlu0 %v815, 1
        %v983 = vpop.permute.xlu0 %982
        %984 = vrot.lane.b32.xlu0 %v822, 1
        %v985 = vpop.permute.xlu0 %984
        %v988 = vsel %vm729, 0.0, %v983
        %v989 = vsel %vm729, 0.0, %v985
        %v990 = vstv %s981
        %v991 = vmul.f32 %v990, %v988
        %v992 = vmul.f32 %v990, %v989
        %v993 = vadd.f32 %v965, %v991
        %v994 = vadd.f32 %v966, %v992
        %s995 = sld [smem:[#allocation7 + $0xc]]
        %996 = vrot.lane.b32.xlu0 %v857, 1
        %v997 = vpop.permute.xlu0 %996
        %998 = vrot.lane.b32.xlu0 %v864, 1
        %v999 = vpop.permute.xlu0 %998
        %v1002 = vsel %vm729, 0.0, %v997
        %v1003 = vsel %vm729, 0.0, %v999
        %v1004 = vstv %s995
        %v1005 = vmul.f32 %v1004, %v1002
        %v1006 = vmul.f32 %v1004, %v1003
        %v1007 = vadd.f32 %v979, %v1005
        %v1008 = vadd.f32 %v980, %v1006
        %s1009 = sld [smem:[#allocation7 + $0x4]]
        %v1010 = vstv %s1009
        %v1011 = vmul.f32 %v1010, %v815
        %v1012 = vmul.f32 %v1010, %v822
        %v1013 = vadd.f32 %v993, %v1011
        %v1014 = vadd.f32 %v994, %v1012
        %s1015 = sld [smem:[#allocation7 + $0xd]]
        %v1016 = vstv %s1015
        %v1017 = vmul.f32 %v1016, %v857
        %v1018 = vmul.f32 %v1016, %v864
        %v1019 = vadd.f32 %v1007, %v1017
        %v1020 = vadd.f32 %v1008, %v1018
        %s1021 = sld [smem:[#allocation7 + $0x5]]
        %1022 = vrot.lane.b32.xlu0 %v815, 127
        %v1023 = vpop.permute.xlu0 %1022
        %1024 = vrot.lane.b32.xlu0 %v822, 127
        %v1025 = vpop.permute.xlu0 %1024
        %v1028 = vsel %vm757, %v1023, 0.0
        %v1029 = vsel %vm757, %v1025, 0.0
        %v1030 = vstv %s1021
        %v1031 = vmul.f32 %v1030, %v1028
        %v1032 = vmul.f32 %v1030, %v1029
        %v1033 = vadd.f32 %v1013, %v1031
        %v1034 = vadd.f32 %v1014, %v1032
        %s1035 = sld [smem:[#allocation7 + $0xe]]
        %1036 = vrot.lane.b32.xlu0 %v857, 127
        %v1037 = vpop.permute.xlu0 %1036
        %1038 = vrot.lane.b32.xlu0 %v864, 127
        %v1039 = vpop.permute.xlu0 %1038
        %v1042 = vsel %vm757, %v1037, 0.0
        %v1043 = vsel %vm757, %v1039, 0.0
        %v1044 = vstv %s1035
        %v1045 = vmul.f32 %v1044, %v1042
        %v1046 = vmul.f32 %v1044, %v1043
        %v1047 = vadd.f32 %v1019, %v1045
        %v1048 = vadd.f32 %v1020, %v1046
        %s1049 = sld [smem:[#allocation7 + $0x6]]
        %1051 = vrot.lane.b32.xlu0 %v893, 1
        %v1052 = vpop.permute.xlu0 %1051
        %1053 = vrot.lane.b32.xlu0 %v896, 1
        %v1054 = vpop.permute.xlu0 %1053
        %v1057 = vsel %vm729, 0.0, %v1052
        %v1058 = vsel %vm729, 0.0, %v1054
        %v1059 = vstv %s1049
        %v1060 = vmul.f32 %v1059, %v1057
        %v1061 = vmul.f32 %v1059, %v1058
        %v1062 = vadd.f32 %v1033, %v1060
        %v1063 = vadd.f32 %v1034, %v1061
        %s1064 = sld [smem:[#allocation7 + $0xf]]
        %1066 = vrot.lane.b32.xlu0 %v907, 1
        %v1067 = vpop.permute.xlu0 %1066
        %1068 = vrot.lane.b32.xlu0 %v910, 1
        %v1069 = vpop.permute.xlu0 %1068
        %v1072 = vsel %vm729, 0.0, %v1067
        %v1073 = vsel %vm729, 0.0, %v1069
        %v1074 = vstv %s1064
        %v1075 = vmul.f32 %v1074, %v1072
        %v1076 = vmul.f32 %v1074, %v1073
        %v1077 = vadd.f32 %v1047, %v1075
        %v1078 = vadd.f32 %v1048, %v1076
        %s1079 = sld [smem:[#allocation7 + $0x7]]
        %v1080 = vstv %s1079
        %v1081 = vmul.f32 %v1080, %v893
        %v1082 = vmul.f32 %v1080, %v896
        %v1083 = vadd.f32 %v1062, %v1081
        %v1084 = vadd.f32 %v1063, %v1082
        %s1085 = sld [smem:[#allocation7 + $0x10]]
        %v1086 = vstv %s1085
        %v1087 = vmul.f32 %v1086, %v907
        %v1088 = vmul.f32 %v1086, %v910
        %v1089 = vadd.f32 %v1077, %v1087
        %v1090 = vadd.f32 %v1078, %v1088
        %s1091 = sld [smem:[#allocation7 + $0x8]]
        %1092 = vrot.lane.b32.xlu0 %v893, 127
        %v1093 = vpop.permute.xlu0 %1092
        %1094 = vrot.lane.b32.xlu0 %v896, 127
        %v1095 = vpop.permute.xlu0 %1094
        %v1098 = vsel %vm757, %v1093, 0.0
        %v1099 = vsel %vm757, %v1095, 0.0
        %v1100 = vstv %s1091
        %v1101 = vmul.f32 %v1100, %v1098
        %v1102 = vmul.f32 %v1100, %v1099
        %v1103 = vadd.f32 %v1083, %v1101
        %v1104 = vadd.f32 %v1084, %v1102
        %s1105 = sld [smem:[#allocation7 + $0x11]]
        %1106 = vrot.lane.b32.xlu0 %v907, 127
        %v1107 = vpop.permute.xlu0 %1106
        %1108 = vrot.lane.b32.xlu0 %v910, 127
        %v1109 = vpop.permute.xlu0 %1108
        %v1112 = vsel %vm757, %v1107, 0.0
        %v1113 = vsel %vm757, %v1109, 0.0
        %v1114 = vstv %s1105
        %v1115 = vmul.f32 %v1114, %v1112
        %v1116 = vmul.f32 %v1114, %v1113
        %v1117 = vadd.f32 %v1089, %v1115
        %v1118 = vadd.f32 %v1090, %v1116
        %v1119 = vadd.f32 %v1103, %v1117
        %v1120 = vadd.f32 %v1104, %v1118
        %s1121 = sld [smem:[#allocation7 + $0x12]]
        %v1122 = vstv %s1121
        %v1123 = vadd.f32 %v1119, %v1122
        %v1124 = vadd.f32 %v1120, %v1122
        %v1125 = vmax.f32 %v1123, 0.0
        %v1126 = vmax.f32 %v1124, 0.0
        %v1127 = vxor.u32 %v1125, 2147483648
        %v1128 = vxor.u32 %v1126, 2147483648
        %v1129 = vmul.f32 %v1127, 1.442695
        %v1130 = vpow.pop %v1129
        %v1131 = vmul.f32 %v1128, 1.442695
        %v1132 = vpow.pop %v1131
        %v1133 = vadd.f32 %v1130, 1.0
        %v1134 = vadd.f32 %v1132, 1.0
        %v1135 = vrcp.pop %v1133
        %v1136 = vmul.f32 1.0, %v1135
        %v1137 = vrcp.pop %v1134
        %v1138 = vmul.f32 1.0, %v1137
        %v1140 = vrot.slane %v758, 7
        %v1142 = vsel %vm802, 0.0, %v1140
        %v1143 = vrot.slane %v758, 1
        %v1145 = vsel %vm806, %v1143, 0.0
        %v1147 = vrot.slane %v773, 7
        %v1149 = vsel %vm802, 0.0, %v1147
        %v1150 = vrot.slane %v773, 1
        %v1152 = vsel %vm806, %v1150, 0.0
        %s1153 = sld [smem:[#allocation9]]
        %1155 = vrot.lane.b32.xlu0 %v1142, 1
        %v1156 = vpop.permute.xlu0 %1155
        %v1158 = vsel %vm729, 0.0, %v1156
        %v1159 = vstv %s1153
        %v1160 = vmul.f32 %v1159, %v1158
        %v1161 = vadd.f32 %v1160, 0.0
        %s1162 = sld [smem:[#allocation9 + $0x9]]
        %1164 = vrot.lane.b32.xlu0 %v1149, 1
        %v1165 = vpop.permute.xlu0 %1164
        %v1167 = vsel %vm729, 0.0, %v1165
        %v1168 = vstv %s1162
        %v1169 = vmul.f32 %v1168, %v1167
        %v1170 = vadd.f32 %v1169, 0.0
        %s1171 = sld [smem:[#allocation9 + $0x1]]
        %v1172 = vstv %s1171
        %v1173 = vmul.f32 %v1172, %v1142
        %v1174 = vadd.f32 %v1161, %v1173
        %s1175 = sld [smem:[#allocation9 + $0xa]]
        %v1176 = vstv %s1175
        %v1177 = vmul.f32 %v1176, %v1149
        %v1178 = vadd.f32 %v1170, %v1177
        %s1179 = sld [smem:[#allocation9 + $0x2]]
        %1180 = vrot.lane.b32.xlu0 %v1142, 127
        %v1181 = vpop.permute.xlu0 %1180
        %v1183 = vsel %vm757, %v1181, 0.0
        %v1184 = vstv %s1179
        %v1185 = vmul.f32 %v1184, %v1183
        %v1186 = vadd.f32 %v1174, %v1185
        %s1187 = sld [smem:[#allocation9 + $0xb]]
        %1188 = vrot.lane.b32.xlu0 %v1149, 127
        %v1189 = vpop.permute.xlu0 %1188
        %v1191 = vsel %vm757, %v1189, 0.0
        %v1192 = vstv %s1187
        %v1193 = vmul.f32 %v1192, %v1191
        %v1194 = vadd.f32 %v1178, %v1193
        %s1195 = sld [smem:[#allocation9 + $0x3]]
        %1196 = vrot.lane.b32.xlu0 %v758, 1
        %v1197 = vpop.permute.xlu0 %1196
        %v1199 = vsel %vm729, 0.0, %v1197
        %v1200 = vstv %s1195
        %v1201 = vmul.f32 %v1200, %v1199
        %v1202 = vadd.f32 %v1186, %v1201
        %s1203 = sld [smem:[#allocation9 + $0xc]]
        %1204 = vrot.lane.b32.xlu0 %v773, 1
        %v1205 = vpop.permute.xlu0 %1204
        %v1207 = vsel %vm729, 0.0, %v1205
        %v1208 = vstv %s1203
        %v1209 = vmul.f32 %v1208, %v1207
        %v1210 = vadd.f32 %v1194, %v1209
        %s1211 = sld [smem:[#allocation9 + $0x4]]
        %v1212 = vstv %s1211
        %v1213 = vmul.f32 %v1212, %v758
        %v1214 = vadd.f32 %v1202, %v1213
        %s1215 = sld [smem:[#allocation9 + $0xd]]
        %v1216 = vstv %s1215
        %v1217 = vmul.f32 %v1216, %v773
        %v1218 = vadd.f32 %v1210, %v1217
        %s1219 = sld [smem:[#allocation9 + $0x5]]
        %1220 = vrot.lane.b32.xlu0 %v758, 127
        %v1221 = vpop.permute.xlu0 %1220
        %v1223 = vsel %vm757, %v1221, 0.0
        %v1224 = vstv %s1219
        %v1225 = vmul.f32 %v1224, %v1223
        %v1226 = vadd.f32 %v1214, %v1225
        %s1227 = sld [smem:[#allocation9 + $0xe]]
        %1228 = vrot.lane.b32.xlu0 %v773, 127
        %v1229 = vpop.permute.xlu0 %1228
        %v1231 = vsel %vm757, %v1229, 0.0
        %v1232 = vstv %s1227
        %v1233 = vmul.f32 %v1232, %v1231
        %v1234 = vadd.f32 %v1218, %v1233
        %s1235 = sld [smem:[#allocation9 + $0x6]]
        %1237 = vrot.lane.b32.xlu0 %v1145, 1
        %v1238 = vpop.permute.xlu0 %1237
        %v1240 = vsel %vm729, 0.0, %v1238
        %v1241 = vstv %s1235
        %v1242 = vmul.f32 %v1241, %v1240
        %v1243 = vadd.f32 %v1226, %v1242
        %s1244 = sld [smem:[#allocation9 + $0xf]]
        %1246 = vrot.lane.b32.xlu0 %v1152, 1
        %v1247 = vpop.permute.xlu0 %1246
        %v1249 = vsel %vm729, 0.0, %v1247
        %v1250 = vstv %s1244
        %v1251 = vmul.f32 %v1250, %v1249
        %v1252 = vadd.f32 %v1234, %v1251
        %s1253 = sld [smem:[#allocation9 + $0x7]]
        %v1254 = vstv %s1253
        %v1255 = vmul.f32 %v1254, %v1145
        %v1256 = vadd.f32 %v1243, %v1255
        %s1257 = sld [smem:[#allocation9 + $0x10]]
        %v1258 = vstv %s1257
        %v1259 = vmul.f32 %v1258, %v1152
        %v1260 = vadd.f32 %v1252, %v1259
        %s1261 = sld [smem:[#allocation9 + $0x8]]
        %1262 = vrot.lane.b32.xlu0 %v1145, 127
        %v1263 = vpop.permute.xlu0 %1262
        %v1265 = vsel %vm757, %v1263, 0.0
        %v1266 = vstv %s1261
        %v1267 = vmul.f32 %v1266, %v1265
        %v1268 = vadd.f32 %v1256, %v1267
        %s1269 = sld [smem:[#allocation9 + $0x11]]
        %1270 = vrot.lane.b32.xlu0 %v1152, 127
        %v1271 = vpop.permute.xlu0 %1270
        %v1273 = vsel %vm757, %v1271, 0.0
        %v1274 = vstv %s1269
        %v1275 = vmul.f32 %v1274, %v1273
        %v1276 = vadd.f32 %v1260, %v1275
        %v1277 = vadd.f32 %v1268, %v1276
        %s1278 = sld [smem:[#allocation9 + $0x12]]
        %v1279 = vstv %s1278
        %v1280 = vadd.f32 %v1277, %v1279
        %v1281 = vmax.f32 %v1280, 0.0
        %v1282 = vxor.u32 %v1281, 2147483648
        %v1283 = vmul.f32 %v1282, 1.442695
        %v1284 = vpow.pop %v1283
        %v1285 = vadd.f32 %v1284, 1.0
        %v1286 = vrcp.pop %v1285
        %v1287 = vmul.f32 1.0, %v1286
        %v1289 = vrot.slane %v865, 7
        %v1291 = vsel %vm802, 0.0, %v1289
        %v1292 = vrot.slane %v865, 1
        %v1294 = vsel %vm806, %v1292, 0.0
        %v1296 = vrot.slane %v728, 7
        %v1298 = vsel %vm802, 0.0, %v1296
        %v1299 = vrot.slane %v728, 1
        %v1301 = vsel %vm806, %v1299, 0.0
        %s1302 = sld [smem:[#allocation10]]
        %1304 = vrot.lane.b32.xlu0 %v1291, 1
        %v1305 = vpop.permute.xlu0 %1304
        %v1307 = vsel %vm729, 0.0, %v1305
        %v1308 = vstv %s1302
        %v1309 = vmul.f32 %v1308, %v1307
        %v1310 = vadd.f32 %v1309, 0.0
        %s1311 = sld [smem:[#allocation10 + $0x9]]
        %1313 = vrot.lane.b32.xlu0 %v1298, 1
        %v1314 = vpop.permute.xlu0 %1313
        %v1316 = vsel %vm729, 0.0, %v1314
        %v1317 = vstv %s1311
        %v1318 = vmul.f32 %v1317, %v1316
        %v1319 = vadd.f32 %v1318, 0.0
        %s1320 = sld [smem:[#allocation10 + $0x1]]
        %v1321 = vstv %s1320
        %v1322 = vmul.f32 %v1321, %v1291
        %v1323 = vadd.f32 %v1310, %v1322
        %s1324 = sld [smem:[#allocation10 + $0xa]]
        %v1325 = vstv %s1324
        %v1326 = vmul.f32 %v1325, %v1298
        %v1327 = vadd.f32 %v1319, %v1326
        %s1328 = sld [smem:[#allocation10 + $0x2]]
        %1329 = vrot.lane.b32.xlu0 %v1291, 127
        %v1330 = vpop.permute.xlu0 %1329
        %v1332 = vsel %vm757, %v1330, 0.0
        %v1333 = vstv %s1328
        %v1334 = vmul.f32 %v1333, %v1332
        %v1335 = vadd.f32 %v1323, %v1334
        %s1336 = sld [smem:[#allocation10 + $0xb]]
        %1337 = vrot.lane.b32.xlu0 %v1298, 127
        %v1338 = vpop.permute.xlu0 %1337
        %v1340 = vsel %vm757, %v1338, 0.0
        %v1341 = vstv %s1336
        %v1342 = vmul.f32 %v1341, %v1340
        %v1343 = vadd.f32 %v1327, %v1342
        %s1344 = sld [smem:[#allocation10 + $0x3]]
        %1345 = vrot.lane.b32.xlu0 %v865, 1
        %v1346 = vpop.permute.xlu0 %1345
        %v1348 = vsel %vm729, 0.0, %v1346
        %v1349 = vstv %s1344
        %v1350 = vmul.f32 %v1349, %v1348
        %v1351 = vadd.f32 %v1335, %v1350
        %s1352 = sld [smem:[#allocation10 + $0xc]]
        %1353 = vrot.lane.b32.xlu0 %v728, 1
        %v1354 = vpop.permute.xlu0 %1353
        %v1356 = vsel %vm729, 0.0, %v1354
        %v1357 = vstv %s1352
        %v1358 = vmul.f32 %v1357, %v1356
        %v1359 = vadd.f32 %v1343, %v1358
        %s1360 = sld [smem:[#allocation10 + $0x4]]
        %v1361 = vstv %s1360
        %v1362 = vmul.f32 %v1361, %v865
        %v1363 = vadd.f32 %v1351, %v1362
        %s1364 = sld [smem:[#allocation10 + $0xd]]
        %v1365 = vstv %s1364
        %v1366 = vmul.f32 %v1365, %v728
        %v1367 = vadd.f32 %v1359, %v1366
        %s1368 = sld [smem:[#allocation10 + $0x5]]
        %1369 = vrot.lane.b32.xlu0 %v865, 127
        %v1370 = vpop.permute.xlu0 %1369
        %v1372 = vsel %vm757, %v1370, 0.0
        %v1373 = vstv %s1368
        %v1374 = vmul.f32 %v1373, %v1372
        %v1375 = vadd.f32 %v1363, %v1374
        %s1376 = sld [smem:[#allocation10 + $0xe]]
        %1377 = vrot.lane.b32.xlu0 %v728, 127
        %v1378 = vpop.permute.xlu0 %1377
        %v1380 = vsel %vm757, %v1378, 0.0
        %v1381 = vstv %s1376
        %v1382 = vmul.f32 %v1381, %v1380
        %v1383 = vadd.f32 %v1367, %v1382
        %s1384 = sld [smem:[#allocation10 + $0x6]]
        %1386 = vrot.lane.b32.xlu0 %v1294, 1
        %v1387 = vpop.permute.xlu0 %1386
        %v1389 = vsel %vm729, 0.0, %v1387
        %v1390 = vstv %s1384
        %v1391 = vmul.f32 %v1390, %v1389
        %v1392 = vadd.f32 %v1375, %v1391
        %s1393 = sld [smem:[#allocation10 + $0xf]]
        %1395 = vrot.lane.b32.xlu0 %v1301, 1
        %v1396 = vpop.permute.xlu0 %1395
        %v1398 = vsel %vm729, 0.0, %v1396
        %v1399 = vstv %s1393
        %v1400 = vmul.f32 %v1399, %v1398
        %v1401 = vadd.f32 %v1383, %v1400
        %s1402 = sld [smem:[#allocation10 + $0x7]]
        %v1403 = vstv %s1402
        %v1404 = vmul.f32 %v1403, %v1294
        %v1405 = vadd.f32 %v1392, %v1404
        %s1406 = sld [smem:[#allocation10 + $0x10]]
        %v1407 = vstv %s1406
        %v1408 = vmul.f32 %v1407, %v1301
        %v1409 = vadd.f32 %v1401, %v1408
        %s1410 = sld [smem:[#allocation10 + $0x8]]
        %1411 = vrot.lane.b32.xlu0 %v1294, 127
        %v1412 = vpop.permute.xlu0 %1411
        %v1414 = vsel %vm757, %v1412, 0.0
        %v1415 = vstv %s1410
        %v1416 = vmul.f32 %v1415, %v1414
        %v1417 = vadd.f32 %v1405, %v1416
        %s1418 = sld [smem:[#allocation10 + $0x11]]
        %1419 = vrot.lane.b32.xlu0 %v1301, 127
        %v1420 = vpop.permute.xlu0 %1419
        %v1422 = vsel %vm757, %v1420, 0.0
        %v1423 = vstv %s1418
        %v1424 = vmul.f32 %v1423, %v1422
        %v1425 = vadd.f32 %v1409, %v1424
        %v1426 = vadd.f32 %v1417, %v1425
        %s1427 = sld [smem:[#allocation10 + $0x12]]
        %v1428 = vstv %s1427
        %v1429 = vadd.f32 %v1426, %v1428
        %v1430 = vmax.f32 %v1429, 0.0
        %v1431 = vxor.u32 %v1430, 2147483648
        %v1432 = vmul.f32 %v1431, 1.442695
        %v1433 = vpow.pop %v1432
        %v1434 = vadd.f32 %v1433, 1.0
        %v1435 = vrcp.pop %v1434
        %v1436 = vmul.f32 1.0, %v1435
        %s1437 = sld [smem:[#allocation3]]
        %s1438 = sld [smem:[#allocation3 + $0x1]]
        %s1439 = smul.f32 %s1438, 0.33333334
        %v1440 = vstv %s1437
        %v1441 = vmul.f32 %v1440, %v882
        %v1442 = vlaneseq
        %v1443 = vshrl.u32 %v1442, 7
        %v1444 = vsub.s32 0, %v1443
        %v1445 = vrot.slane %v1136, %v1444
        %1447 = vset.pattern.permute.xlu0 0
        %1448 = vperm.xlu0 %1447, %v1287
        %v1449 = vpop.permute.xlu0 %1448
        %v1451 = vadd.f32 %v1445, %v1449
        %v1452 = vadd.f32 %v1451, %v1436
        %v1453 = vstv %s1439
        %v1454 = vmul.f32 %v1453, %v1452
        %v1455 = vadd.f32 %v1441, %v1454
        %v1456 = vlaneseq
        %v1457 = vshrl.u32 %v1456, 7
        %v1458 = vsub.s32 1, %v1457
        %v1459 = vrot.slane %v1136, %v1458
        %1460 = vset.pattern.permute.xlu0 1
        %1461 = vperm.xlu0 %1460, %v1287
        %v1462 = vpop.permute.xlu0 %1461
        %v1464 = vadd.f32 %v1459, %v1462
        %v1465 = vadd.f32 %v1464, %v1436
        %v1466 = vmul.f32 %v1453, %v1465
        %v1467 = vadd.f32 %v1441, %v1466
        %v1468 = vlaneseq
        %v1469 = vshrl.u32 %v1468, 7
        %v1470 = vsub.s32 2, %v1469
        %v1471 = vrot.slane %v1136, %v1470
        %1472 = vset.pattern.permute.xlu0 2
        %1473 = vperm.xlu0 %1472, %v1287
        %v1474 = vpop.permute.xlu0 %1473
        %v1476 = vadd.f32 %v1471, %v1474
        %v1477 = vadd.f32 %v1476, %v1436
        %v1478 = vmul.f32 %v1453, %v1477
        %v1479 = vadd.f32 %v1441, %v1478
        %v1480 = vlaneseq
        %v1481 = vshrl.u32 %v1480, 7
        %v1482 = vsub.s32 3, %v1481
        %v1483 = vrot.slane %v1136, %v1482
        %1484 = vset.pattern.permute.xlu0 3
        %1485 = vperm.xlu0 %1484, %v1287
        %v1486 = vpop.permute.xlu0 %1485
        %v1488 = vadd.f32 %v1483, %v1486
        %v1489 = vadd.f32 %v1488, %v1436
        %v1490 = vmul.f32 %v1453, %v1489
        %v1491 = vadd.f32 %v1441, %v1490
        %v1492 = vlaneseq
        %v1493 = vshrl.u32 %v1492, 7
        %v1494 = vsub.s32 4, %v1493
        %v1495 = vrot.slane %v1136, %v1494
        %1496 = vset.pattern.permute.xlu0 4
        %1497 = vperm.xlu0 %1496, %v1287
        %v1498 = vpop.permute.xlu0 %1497
        %v1500 = vadd.f32 %v1495, %v1498
        %v1501 = vadd.f32 %v1500, %v1436
        %v1502 = vmul.f32 %v1453, %v1501
        %v1503 = vadd.f32 %v1441, %v1502
        %v1504 = vlaneseq
        %v1505 = vshrl.u32 %v1504, 7
        %v1506 = vsub.s32 5, %v1505
        %v1507 = vrot.slane %v1136, %v1506
        %1508 = vset.pattern.permute.xlu0 5
        %1509 = vperm.xlu0 %1508, %v1287
        %v1510 = vpop.permute.xlu0 %1509
        %v1512 = vadd.f32 %v1507, %v1510
        %v1513 = vadd.f32 %v1512, %v1436
        %v1514 = vmul.f32 %v1453, %v1513
        %v1515 = vadd.f32 %v1441, %v1514
        %v1516 = vlaneseq
        %v1517 = vshrl.u32 %v1516, 7
        %v1518 = vsub.s32 6, %v1517
        %v1519 = vrot.slane %v1136, %v1518
        %1520 = vset.pattern.permute.xlu0 6
        %1521 = vperm.xlu0 %1520, %v1287
        %v1522 = vpop.permute.xlu0 %1521
        %v1524 = vadd.f32 %v1519, %v1522
        %v1525 = vadd.f32 %v1524, %v1436
        %v1526 = vmul.f32 %v1453, %v1525
        %v1527 = vadd.f32 %v1441, %v1526
        %v1528 = vlaneseq
        %v1529 = vshrl.u32 %v1528, 7
        %v1530 = vsub.s32 7, %v1529
        %v1531 = vrot.slane %v1136, %v1530
        %1532 = vset.pattern.permute.xlu0 7
        %1533 = vperm.xlu0 %1532, %v1287
        %v1534 = vpop.permute.xlu0 %1533
        %v1536 = vadd.f32 %v1531, %v1534
        %v1537 = vadd.f32 %v1536, %v1436
        %v1538 = vmul.f32 %v1453, %v1537
        %v1539 = vadd.f32 %v1441, %v1538
        %v1540 = vlaneseq
        %v1541 = vshrl.u32 %v1540, 7
        %v1542 = vsub.s32 0, %v1541
        %v1543 = vrot.slane %v1138, %v1542
        %1544 = vset.pattern.permute.xlu0 8
        %1545 = vperm.xlu0 %1544, %v1287
        %v1546 = vpop.permute.xlu0 %1545
        %v1548 = vadd.f32 %v1543, %v1546
        %v1549 = vadd.f32 %v1548, %v1436
        %v1550 = vmul.f32 %v1453, %v1549
        %v1551 = vadd.f32 %v1441, %v1550
        %v1552 = vlaneseq
        %v1553 = vshrl.u32 %v1552, 7
        %v1554 = vsub.s32 1, %v1553
        %v1555 = vrot.slane %v1138, %v1554
        %1556 = vset.pattern.permute.xlu0 9
        %1557 = vperm.xlu0 %1556, %v1287
        %v1558 = vpop.permute.xlu0 %1557
        %v1560 = vadd.f32 %v1555, %v1558
        %v1561 = vadd.f32 %v1560, %v1436
        %v1562 = vmul.f32 %v1453, %v1561
        %v1563 = vadd.f32 %v1441, %v1562
        %v1564 = vlaneseq
        %v1565 = vshrl.u32 %v1564, 7
        %v1566 = vsub.s32 2, %v1565
        %v1567 = vrot.slane %v1138, %v1566
        %1568 = vset.pattern.permute.xlu0 10
        %1569 = vperm.xlu0 %1568, %v1287
        %v1570 = vpop.permute.xlu0 %1569
        %v1572 = vadd.f32 %v1567, %v1570
        %v1573 = vadd.f32 %v1572, %v1436
        %v1574 = vmul.f32 %v1453, %v1573
        %v1575 = vadd.f32 %v1441, %v1574
        %v1576 = vlaneseq
        %v1577 = vshrl.u32 %v1576, 7
        %v1578 = vsub.s32 3, %v1577
        %v1579 = vrot.slane %v1138, %v1578
        %1580 = vset.pattern.permute.xlu0 11
        %1581 = vperm.xlu0 %1580, %v1287
        %v1582 = vpop.permute.xlu0 %1581
        %v1584 = vadd.f32 %v1579, %v1582
        %v1585 = vadd.f32 %v1584, %v1436
        %v1586 = vmul.f32 %v1453, %v1585
        %v1587 = vadd.f32 %v1441, %v1586
        %v1588 = vlaneseq
        %v1589 = vshrl.u32 %v1588, 7
        %v1590 = vsub.s32 4, %v1589
        %v1591 = vrot.slane %v1138, %v1590
        %1592 = vset.pattern.permute.xlu0 12
        %1593 = vperm.xlu0 %1592, %v1287
        %v1594 = vpop.permute.xlu0 %1593
        %v1596 = vadd.f32 %v1591, %v1594
        %v1597 = vadd.f32 %v1596, %v1436
        %v1598 = vmul.f32 %v1453, %v1597
        %v1599 = vadd.f32 %v1441, %v1598
        %v1600 = vlaneseq
        %v1601 = vshrl.u32 %v1600, 7
        %v1602 = vsub.s32 5, %v1601
        %v1603 = vrot.slane %v1138, %v1602
        %1604 = vset.pattern.permute.xlu0 13
        %1605 = vperm.xlu0 %1604, %v1287
        %v1606 = vpop.permute.xlu0 %1605
        %v1608 = vadd.f32 %v1603, %v1606
        %v1609 = vadd.f32 %v1608, %v1436
        %v1610 = vmul.f32 %v1453, %v1609
        %v1611 = vadd.f32 %v1441, %v1610
        %v1612 = vlaneseq
        %v1613 = vshrl.u32 %v1612, 7
        %v1614 = vsub.s32 6, %v1613
        %v1615 = vrot.slane %v1138, %v1614
        %1616 = vset.pattern.permute.xlu0 14
        %1617 = vperm.xlu0 %1616, %v1287
        %v1618 = vpop.permute.xlu0 %1617
        %v1620 = vadd.f32 %v1615, %v1618
        %v1621 = vadd.f32 %v1620, %v1436
        %v1622 = vmul.f32 %v1453, %v1621
        %v1623 = vadd.f32 %v1441, %v1622
        %v1624 = vlaneseq
        %v1625 = vshrl.u32 %v1624, 7
        %v1626 = vsub.s32 7, %v1625
        %v1627 = vrot.slane %v1138, %v1626
        %1628 = vset.pattern.permute.xlu0 15
        %1629 = vperm.xlu0 %1628, %v1287
        %v1630 = vpop.permute.xlu0 %1629
        %v1632 = vadd.f32 %v1627, %v1630
        %v1633 = vadd.f32 %v1632, %v1436
        %v1634 = vmul.f32 %v1453, %v1633
        %v1635 = vadd.f32 %v1441, %v1634
        %1637 = vrot.lane.b32.xlu0 %v1467, 16
        %v1638 = vpop.permute.xlu0 %1637
        %1641 = vrot.lane.b32.xlu0 %v1479, 32
        %v1642 = vpop.permute.xlu0 %1641
        %1645 = vrot.lane.b32.xlu0 %v1491, 48
        %v1646 = vpop.permute.xlu0 %1645
        %1649 = vrot.lane.b32.xlu0 %v1503, 64
        %v1650 = vpop.permute.xlu0 %1649
        %1653 = vrot.lane.b32.xlu0 %v1515, 80
        %v1654 = vpop.permute.xlu0 %1653
        %1657 = vrot.lane.b32.xlu0 %v1527, 96
        %v1658 = vpop.permute.xlu0 %1657
        %1661 = vrot.lane.b32.xlu0 %v1539, 112
        %v1662 = vpop.permute.xlu0 %1661
        %1665 = vrot.lane.b32.xlu0 %v1563, 16
        %v1666 = vpop.permute.xlu0 %1665
        %1669 = vrot.lane.b32.xlu0 %v1575, 32
        %v1670 = vpop.permute.xlu0 %1669
        %1673 = vrot.lane.b32.xlu0 %v1587, 48
        %v1674 = vpop.permute.xlu0 %1673
        %1677 = vrot.lane.b32.xlu0 %v1599, 64
        %v1678 = vpop.permute.xlu0 %1677
        %1681 = vrot.lane.b32.xlu0 %v1611, 80
        %v1682 = vpop.permute.xlu0 %1681
        %1685 = vrot.lane.b32.xlu0 %v1623, 96
        %v1686 = vpop.permute.xlu0 %1685
        %1689 = vrot.lane.b32.xlu0 %v1635, 112
        %v1690 = vpop.permute.xlu0 %1689
        %vm1692 = vcmask 130048
        %v1693 = vsel %vm1692, %v1455, %v1638
        %vm1694 = vcmask 261120
        %v1695 = vsel %vm1694, %v1693, %v1642
        %vm1696 = vcmask 392192
        %v1697 = vsel %vm1696, %v1695, %v1646
        %vm1698 = vcmask 523264
        %v1699 = vsel %vm1698, %v1697, %v1650
        %vm1700 = vcmask 654336
        %v1701 = vsel %vm1700, %v1699, %v1654
        %vm1702 = vcmask 785408
        %v1703 = vsel %vm1702, %v1701, %v1658
        %vm1704 = vcmask 916480
        %v1705 = vsel %vm1704, %v1703, %v1662
        %v1706 = vsel %vm1692, %v1551, %v1666
        %v1707 = vsel %vm1694, %v1706, %v1670
        %v1708 = vsel %vm1696, %v1707, %v1674
        %v1709 = vsel %vm1698, %v1708, %v1678
        %v1710 = vsel %vm1700, %v1709, %v1682
        %v1711 = vsel %vm1702, %v1710, %v1686
        %v1712 = vsel %vm1704, %v1711, %v1690
        %v1715 = vcombine.low %v1705, %v1712
        %v1717 = vmul.f32 %v300, %v1715
        %1718 = vst [vmem:[%s294] sm:$0xff] %v1717
        %s1719 = sand.u32 %s164, 1
        %s1720 = scalar_lea.sflag [#allocation4], %s1719
        %s1721 = sand.u32 %s164, 1
        %s1722 = smul.addr %s1721, 8
        %s1723 = scalar_lea.vmem [#allocation12], %s1722
        // Predicated region
        $region61: #{tpu_custom_call.1} parent=43 // pred_check
          %p1724 = pneg %p174
        $region62: #{tpu_custom_call.1} parent=43 // pred_check_branch
          %1726 = sbr.rel (%p1724) target = $region64
        $region63: #{tpu_custom_call.1} parent=43 // pred_region
          %s1728 = ssub.s32 128, 128
          %1729 = vsyncadd %s1720, %s1728
          %s1730 = smul.addr %s25, 2
          %s1731 = smul.addr %s1730, 64
          %s1732 = scalar_lea.hbm %s6, %s1731
          %s1734 = sshll.u32 %s1723, 4
          %s1735 = int_to_ptr.vmem [resolvable:$true] %s1734
          %1737 = dma.vmem_to_hbm [thread:$0]  %s1735, 128, %s1732, %s1720
        $region64: #{tpu_custom_call.1} parent=43 // pred_fallthru
          _
      $region44: #{tpu_custom_call.1} parent=5 // pred_fallthru
        _
      %p1738 = scmp.le.s32.totalorder 2, %s20
      // Predicated region
      $region65: #{tpu_custom_call.1} parent=5 // pred_check
        %p1739 = pneg %p1738
      $region66: #{tpu_custom_call.1} parent=5 // pred_check_branch
        %1741 = sbr.rel (%p1739) target = $region68
      $region67: #{tpu_custom_call.1} parent=5 // pred_region
        %s1742 = ssub.s32 %s20, 2
        // Predicated region
        $region69: #{tpu_custom_call.1} parent=67 // pred_check
          %p1743 = pneg %p180
        $region70: #{tpu_custom_call.1} parent=67 // pred_check_branch
          %1745 = sbr.rel (%p1743) target = $region72
        $region71: #{tpu_custom_call.1} parent=67 // pred_region
          %s1746 = sand.u32 %s165, 1
          %s1747 = scalar_lea.sflag [#allocation4], %s1746
          %s1748 = sand.u32 %s165, 1
          %s1749 = smul.addr %s1748, 8
          %s1750 = scalar_lea.vmem [#allocation12], %s1749
          %1751 = dma.done %s1747, 128
        $region72: #{tpu_custom_call.1} parent=67 // pred_fallthru
          _
      $region68: #{tpu_custom_call.1} parent=5 // pred_fallthru
        _
    $region6: #{tpu_custom_call.1} parent=1 // loop_footer
      %s24 = sadd.s32 1, %s20
    $region7: #{tpu_custom_call.1} parent=1 // loop_footer_branch
      %19 = sbr.rel target = $region3
    $region8: #{tpu_custom_call.1} parent=1 // loop_exit
      _
    %1752 = vsyncpa [#allocation4], 1
    %s1753 = scalar_lea.sflag [#allocation4], 1
    %1754 = vsyncpa %s1753, 1
    %1755 = vsyncpa [#allocation5], 1
    %s1756 = scalar_lea.sflag [#allocation5], 1
    %1757 = vsyncpa %s1756, 1
    %1758 = vsyncpa [#allocation11], 1
    %1759 = vsyncpa [#allocation6], 1
    %s1760 = scalar_lea.sflag [#allocation6], 1
    %1761 = vsyncpa %s1760, 1
    %1762 = vsyncpa [#allocation8], 1

</llo_original>
